<compile_context>
chip_gen: v7x
topology: tpu7x:2x2x1
jax: 0.10.0
libtpu: 0.0.40
codegen_flags: <defaults>
</compile_context>

<pallas_src>
import math

import jax
import jax.numpy as jnp
from jax.experimental import pallas as pl
from jax.experimental.pallas import tpu as pltpu

DIM_IN = 128
NUM_HEADS = 8
HEAD_DIM = DIM_IN // NUM_HEADS   # 16


# ------------------------- Fused forward kernel -------------------------------
def _fused_mha_kernel(x_ref, wqkv_ref, wo_ref, bo_ref, g_ref, o_ref):
    """Fused QKV projection + head-mixing attention + output projection.

    x_ref:    (TM, D)   f32   input rows
    wqkv_ref: (D, 3D)   bf16  fused Q/K/V weights (pre-transposed, resident)
    wo_ref:   (D, D)    bf16  output projection weights (pre-transposed)
    bo_ref:   (1, D)    f32   output projection bias
    g_ref:    (D, D)    bf16  block-diagonal head-segment reducer * 1/sqrt(Dh)
    o_ref:    (TM, D)   f32   output rows
    """
    x = x_ref[...].astype(jnp.bfloat16)

    # Fused Q/K/V projection: one (TM, D) @ (D, 3D) bf16 MXU matmul, f32 acc.
    qkv = jnp.dot(x, wqkv_ref[...], preferred_element_type=jnp.float32)
    q = qkv[:, 0 * DIM_IN:1 * DIM_IN]      # (TM, D) f32, lane-aligned slices
    k = qkv[:, 1 * DIM_IN:2 * DIM_IN]
    v = qkv[:, 2 * DIM_IN:3 * DIM_IN]

    g = g_ref[...]

    # Lane-dense per-position head-mixing attention.  Rolling k/v by 16*o
    # lanes aligns some head t_o(h) with head h; q * roll(k) reduced within
    # each 16-lane segment (constant block-diag matmul g, scale folded in)
    # gives the score of head h against head t_o(h), replicated across the
    # segment.  Over o = 0..7 every head sees all 8 heads, so softmax across
    # the 8 slabs == softmax over the score row of the PyTorch module.
    s_slabs = []
    v_slabs = []
    for o in range(NUM_HEADS):
        if o == 0:
            k_rot, v_rot = k, v
        else:
            k_rot = pltpu.roll(k, shift=o * HEAD_DIM, axis=1)   # XLU
            v_rot = pltpu.roll(v, shift=o * HEAD_DIM, axis=1)   # XLU
        prod = (q * k_rot).astype(jnp.bfloat16)                 # VPU
        s_slabs.append(
            jnp.dot(prod, g, preferred_element_type=jnp.float32))  # MXU
        v_slabs.append(v_rot)

    m = s_slabs[0]
    for s in s_slabs[1:]:
        m = jnp.maximum(m, s)
    e_slabs = [jnp.exp(s - m) for s in s_slabs]                 # EUP
    l = e_slabs[0]
    for e in e_slabs[1:]:
        l = l + e
    acc = e_slabs[0] * v_slabs[0]
    for e, vr in zip(e_slabs[1:], v_slabs[1:]):
        acc = acc + e * vr
    # TODO(synk): nn.Dropout(0.1) on the attention weights is identity in eval
    # mode; training-time stochastic dropout (pltpu.prng_*) is not implemented.
    ctx = acc * pl.reciprocal(l, approx=True)                   # (TM, D) f32

    out = jnp.dot(ctx.astype(jnp.bfloat16), wo_ref[...],
                  preferred_element_type=jnp.float32) + bo_ref[...]
    o_ref[...] = out.astype(o_ref.dtype)


# ------------------------------ Tiling choice ----------------------------------
def _row_tiling(n):
    """Pick (row_tile, padded_rows) for n = B*S independent rows."""
    if 16 <= n <= 2048 and n % 16 == 0:
        # Two balanced tiles, zero padding: v7x's two TensorCores split the
        # "parallel" grid evenly; v5e/v6e only pay one extra ~0.35us step.
        return n // 2, n
    if n <= 1024:
        n_pad = -(-n // 8) * 8
        return n_pad, n_pad          # single tile, pad rows to sublane granule
    row_tile = 512                   # large inputs: big lane-dense tiles
    return row_tile, pl.cdiv(n, row_tile) * row_tile


# --------------------------- One-time operand prep -----------------------------
def prepare_params(params):
    """Hoisted out of the per-call wrapper: fuse Q/K/V weights, pre-cast MXU
    operands to bf16, and build the constant block-diagonal segment reducer."""
    wqkv = jnp.concatenate(
        [params["wq_t"], params["wk_t"], params["wv_t"]], axis=1)
    head_id = jnp.arange(DIM_IN, dtype=jnp.int32) // HEAD_DIM
    g = (head_id[:, None] == head_id[None, :]).astype(jnp.float32)
    g = g * (1.0 / math.sqrt(HEAD_DIM))          # fold the score scale in
    return {
        "wqkv": wqkv.astype(jnp.bfloat16),       # (D, 3D)
        "wo": params["wo_t"].astype(jnp.bfloat16),
        "bo": params["bo"].astype(jnp.float32),
        "g": g.astype(jnp.bfloat16),             # 0 / 0.25 entries: exact
    }


# ------------------------------ Module forward ---------------------------------
@jax.jit
def multi_head_attention(inputs, prep):
    b, s, d = inputs.shape
    assert d == DIM_IN
    n = b * s
    row_tile, n_pad = _row_tiling(n)

    x2d = inputs.reshape(n, d).astype(jnp.float32)
    if n_pad != n:
        x2d = jnp.pad(x2d, ((0, n_pad - n), (0, 0)))

    out = pl.pallas_call(
        _fused_mha_kernel,
        out_shape=jax.ShapeDtypeStruct((n_pad, d), jnp.float32),
        grid_spec=pltpu.PrefetchScalarGridSpec(
            num_scalar_prefetch=0,
            grid=(n_pad // row_tile,),
            in_specs=[
                pl.BlockSpec((row_tile, d), lambda i: (i, 0)),   # x rows
                pl.BlockSpec((d, 3 * d), lambda i: (0, 0)),      # wqkv (resident)
                pl.BlockSpec((d, d), lambda i: (0, 0)),          # wo   (resident)
                pl.BlockSpec((1, d), lambda i: (0, 0)),          # bo   (resident)
                pl.BlockSpec((d, d), lambda i: (0, 0)),          # g    (resident)
            ],
            out_specs=pl.BlockSpec((row_tile, d), lambda i: (i, 0)),
        ),
        compiler_params=pltpu.CompilerParams(
            dimension_semantics=("parallel",),
            vmem_limit_bytes=32 * 1024 * 1024,
        ),
    )(x2d, prep["wqkv"], prep["wo"], prep["bo"], prep["g"])

    return out[:n].reshape(b, s, d)


# --------------------------- Deterministic params ------------------------------
def init_params(key, d=DIM_IN):
    ks = jax.random.split(key, 5)

    def w(k):  # nn.Linear weight is (out, in); store the transpose (in, out)
        return (0.02 * jax.random.normal(k, (d, d), jnp.float32)).T

    return {
        "wq_t": w(ks[0]),
        "wk_t": w(ks[1]),
        "wv_t": w(ks[2]),
        "wo_t": w(ks[3]),
        "bo": 0.02 * jax.random.normal(ks[4], (1, d), jnp.float32),
    }


# ------------------------------- Pure-JAX ref -----------------------------------
def reference(inputs, params):
    b, s, d = inputs.shape
    hp = jax.lax.Precision.HIGHEST
    q = jnp.einsum("bsi,io->bso", inputs, params["wq_t"], precision=hp)
    k = jnp.einsum("bsi,io->bso", inputs, params["wk_t"], precision=hp)
    v = jnp.einsum("bsi,io->bso", inputs, params["wv_t"], precision=hp)
    q = q.reshape(b, s, NUM_HEADS, HEAD_DIM)
    k = k.reshape(b, s, NUM_HEADS, HEAD_DIM)
    v = v.reshape(b, s, NUM_HEADS, HEAD_DIM)
    scores = jnp.einsum("bshd,bstd->bsht", q, k, precision=hp) / math.sqrt(HEAD_DIM)
    w = jax.nn.softmax(scores, axis=-1)
    ctx = jnp.einsum("bsht,bstd->bshd", w, v, precision=hp).reshape(b, s, d)
    return jnp.einsum("bsi,io->bso", ctx, params["wo_t"], precision=hp) + params["bo"]


if __name__ == "__main__":
    key = jax.random.PRNGKey(0)
    k_inp, k_par = jax.random.split(key)

    # Shapes from the original module: inputs = torch.rand(32, 10, 128)
    B, S = 32, 10
    inputs = jax.random.uniform(k_inp, (B, S, DIM_IN), dtype=jnp.float32)
    params = init_params(k_par)
    prep = prepare_params(params)          # one-time operand prep

    out = multi_head_attention(inputs, prep)
    out = jax.block_until_ready(out)
    assert out.shape == (B, S, DIM_IN), out.shape

    ref = jax.block_until_ready(reference(inputs, params))
    if not jnp.allclose(out, ref, atol=2e-3, rtol=2e-3):
        max_err = float(jnp.max(jnp.abs(out - ref)))
        raise AssertionError(
            f"Pallas output does not match reference (max abs err {max_err})")

    print("KERNEL_OK")
</pallas_src>

<mosaic_0001>
module attributes {stable_mosaic.version = 11 : i64} {
  func.func @_fused_mha_kernel(%arg0: i32, %arg1: memref<160x128xf32, #tpu.memory_space<vmem>>, %arg2: memref<128x384xbf16, #tpu.memory_space<vmem>>, %arg3: memref<128x128xbf16, #tpu.memory_space<vmem>>, %arg4: memref<1x128xf32, #tpu.memory_space<vmem>>, %arg5: memref<128x128xbf16, #tpu.memory_space<vmem>>, %arg6: memref<160x128xf32, #tpu.memory_space<vmem>>) attributes {dimension_semantics = [#tpu.dimension_semantics<parallel>], iteration_bounds = array<i64: 2>, scalar_prefetch = 0 : i64, scratch_operands = 0 : i64, tpu.core_type = #tpu.core_type<tc>, window_params = [{transform_indices = @transform_0, window_bounds = array<i64: 160, 128>}, {pipeline_mode = #tpu.pipeline_mode<synchronous>, transform_indices = @transform_1, window_bounds = array<i64: 128, 384>}, {pipeline_mode = #tpu.pipeline_mode<synchronous>, transform_indices = @transform_2, window_bounds = array<i64: 128, 128>}, {pipeline_mode = #tpu.pipeline_mode<synchronous>, transform_indices = @transform_3, window_bounds = array<i64: 1, 128>}, {pipeline_mode = #tpu.pipeline_mode<synchronous>, transform_indices = @transform_4, window_bounds = array<i64: 128, 128>}, {transform_indices = @transform_5, window_bounds = array<i64: 160, 128>}]} {
    %c0 = arith.constant 0 : index
    %c0_0 = arith.constant 0 : index
    %0 = vector.load %arg1[%c0, %c0_0] : memref<160x128xf32, #tpu.memory_space<vmem>>, vector<160x128xf32>
    %1 = arith.truncf %0 : vector<160x128xf32> to vector<160x128xbf16>
    %c0_1 = arith.constant 0 : index
    %c0_2 = arith.constant 0 : index
    %2 = vector.load %arg2[%c0_1, %c0_2] : memref<128x384xbf16, #tpu.memory_space<vmem>>, vector<128x384xbf16>
    %cst = arith.constant dense<0.000000e+00> : vector<160x384xf32>
    %3 = tpu.matmul %1, %2, %cst {dimension_numbers = #tpu.dot_dimension_numbers<[1], [0], [0], [1], [0, 0, 1, 1], [], []>} : vector<160x128xbf16>, vector<128x384xbf16>, vector<160x384xf32> -> vector<160x384xf32>
    %4 = vector.extract_strided_slice %3 {offsets = [0, 0], sizes = [160, 128], strides = [1, 1]} : vector<160x384xf32> to vector<160x128xf32>
    %5 = vector.extract_strided_slice %3 {offsets = [0, 128], sizes = [160, 128], strides = [1, 1]} : vector<160x384xf32> to vector<160x128xf32>
    %6 = vector.extract_strided_slice %3 {offsets = [0, 256], sizes = [160, 128], strides = [1, 1]} : vector<160x384xf32> to vector<160x128xf32>
    %c0_3 = arith.constant 0 : index
    %c0_4 = arith.constant 0 : index
    %7 = vector.load %arg5[%c0_3, %c0_4] : memref<128x128xbf16, #tpu.memory_space<vmem>>, vector<128x128xbf16>
    %8 = arith.mulf %4, %5 : vector<160x128xf32>
    %9 = arith.truncf %8 : vector<160x128xf32> to vector<160x128xbf16>
    %cst_5 = arith.constant dense<0.000000e+00> : vector<160x128xf32>
    %10 = tpu.matmul %9, %7, %cst_5 {dimension_numbers = #tpu.dot_dimension_numbers<[1], [0], [0], [1], [0, 0, 1, 1], [], []>} : vector<160x128xbf16>, vector<128x128xbf16>, vector<160x128xf32> -> vector<160x128xf32>
    %c16_i32 = arith.constant 16 : i32
    %11 = tpu.dynamic_rotate %5 by %c16_i32 dim 1 : vector<160x128xf32>, i32 -> vector<160x128xf32>
    %c16_i32_6 = arith.constant 16 : i32
    %12 = tpu.dynamic_rotate %6 by %c16_i32_6 dim 1 : vector<160x128xf32>, i32 -> vector<160x128xf32>
    %13 = arith.mulf %4, %11 : vector<160x128xf32>
    %14 = arith.truncf %13 : vector<160x128xf32> to vector<160x128xbf16>
    %cst_7 = arith.constant dense<0.000000e+00> : vector<160x128xf32>
    %15 = tpu.matmul %14, %7, %cst_7 {dimension_numbers = #tpu.dot_dimension_numbers<[1], [0], [0], [1], [0, 0, 1, 1], [], []>} : vector<160x128xbf16>, vector<128x128xbf16>, vector<160x128xf32> -> vector<160x128xf32>
    %c32_i32 = arith.constant 32 : i32
    %16 = tpu.dynamic_rotate %5 by %c32_i32 dim 1 : vector<160x128xf32>, i32 -> vector<160x128xf32>
    %c32_i32_8 = arith.constant 32 : i32
    %17 = tpu.dynamic_rotate %6 by %c32_i32_8 dim 1 : vector<160x128xf32>, i32 -> vector<160x128xf32>
    %18 = arith.mulf %4, %16 : vector<160x128xf32>
    %19 = arith.truncf %18 : vector<160x128xf32> to vector<160x128xbf16>
    %cst_9 = arith.constant dense<0.000000e+00> : vector<160x128xf32>
    %20 = tpu.matmul %19, %7, %cst_9 {dimension_numbers = #tpu.dot_dimension_numbers<[1], [0], [0], [1], [0, 0, 1, 1], [], []>} : vector<160x128xbf16>, vector<128x128xbf16>, vector<160x128xf32> -> vector<160x128xf32>
    %c48_i32 = arith.constant 48 : i32
    %21 = tpu.dynamic_rotate %5 by %c48_i32 dim 1 : vector<160x128xf32>, i32 -> vector<160x128xf32>
    %c48_i32_10 = arith.constant 48 : i32
    %22 = tpu.dynamic_rotate %6 by %c48_i32_10 dim 1 : vector<160x128xf32>, i32 -> vector<160x128xf32>
    %23 = arith.mulf %4, %21 : vector<160x128xf32>
    %24 = arith.truncf %23 : vector<160x128xf32> to vector<160x128xbf16>
    %cst_11 = arith.constant dense<0.000000e+00> : vector<160x128xf32>
    %25 = tpu.matmul %24, %7, %cst_11 {dimension_numbers = #tpu.dot_dimension_numbers<[1], [0], [0], [1], [0, 0, 1, 1], [], []>} : vector<160x128xbf16>, vector<128x128xbf16>, vector<160x128xf32> -> vector<160x128xf32>
    %c64_i32 = arith.constant 64 : i32
    %26 = tpu.dynamic_rotate %5 by %c64_i32 dim 1 : vector<160x128xf32>, i32 -> vector<160x128xf32>
    %c64_i32_12 = arith.constant 64 : i32
    %27 = tpu.dynamic_rotate %6 by %c64_i32_12 dim 1 : vector<160x128xf32>, i32 -> vector<160x128xf32>
    %28 = arith.mulf %4, %26 : vector<160x128xf32>
    %29 = arith.truncf %28 : vector<160x128xf32> to vector<160x128xbf16>
    %cst_13 = arith.constant dense<0.000000e+00> : vector<160x128xf32>
    %30 = tpu.matmul %29, %7, %cst_13 {dimension_numbers = #tpu.dot_dimension_numbers<[1], [0], [0], [1], [0, 0, 1, 1], [], []>} : vector<160x128xbf16>, vector<128x128xbf16>, vector<160x128xf32> -> vector<160x128xf32>
    %c80_i32 = arith.constant 80 : i32
    %31 = tpu.dynamic_rotate %5 by %c80_i32 dim 1 : vector<160x128xf32>, i32 -> vector<160x128xf32>
    %c80_i32_14 = arith.constant 80 : i32
    %32 = tpu.dynamic_rotate %6 by %c80_i32_14 dim 1 : vector<160x128xf32>, i32 -> vector<160x128xf32>
    %33 = arith.mulf %4, %31 : vector<160x128xf32>
    %34 = arith.truncf %33 : vector<160x128xf32> to vector<160x128xbf16>
    %cst_15 = arith.constant dense<0.000000e+00> : vector<160x128xf32>
    %35 = tpu.matmul %34, %7, %cst_15 {dimension_numbers = #tpu.dot_dimension_numbers<[1], [0], [0], [1], [0, 0, 1, 1], [], []>} : vector<160x128xbf16>, vector<128x128xbf16>, vector<160x128xf32> -> vector<160x128xf32>
    %c96_i32 = arith.constant 96 : i32
    %36 = tpu.dynamic_rotate %5 by %c96_i32 dim 1 : vector<160x128xf32>, i32 -> vector<160x128xf32>
    %c96_i32_16 = arith.constant 96 : i32
    %37 = tpu.dynamic_rotate %6 by %c96_i32_16 dim 1 : vector<160x128xf32>, i32 -> vector<160x128xf32>
    %38 = arith.mulf %4, %36 : vector<160x128xf32>
    %39 = arith.truncf %38 : vector<160x128xf32> to vector<160x128xbf16>
    %cst_17 = arith.constant dense<0.000000e+00> : vector<160x128xf32>
    %40 = tpu.matmul %39, %7, %cst_17 {dimension_numbers = #tpu.dot_dimension_numbers<[1], [0], [0], [1], [0, 0, 1, 1], [], []>} : vector<160x128xbf16>, vector<128x128xbf16>, vector<160x128xf32> -> vector<160x128xf32>
    %c112_i32 = arith.constant 112 : i32
    %41 = tpu.dynamic_rotate %5 by %c112_i32 dim 1 : vector<160x128xf32>, i32 -> vector<160x128xf32>
    %c112_i32_18 = arith.constant 112 : i32
    %42 = tpu.dynamic_rotate %6 by %c112_i32_18 dim 1 : vector<160x128xf32>, i32 -> vector<160x128xf32>
    %43 = arith.mulf %4, %41 : vector<160x128xf32>
    %44 = arith.truncf %43 : vector<160x128xf32> to vector<160x128xbf16>
    %cst_19 = arith.constant dense<0.000000e+00> : vector<160x128xf32>
    %45 = tpu.matmul %44, %7, %cst_19 {dimension_numbers = #tpu.dot_dimension_numbers<[1], [0], [0], [1], [0, 0, 1, 1], [], []>} : vector<160x128xbf16>, vector<128x128xbf16>, vector<160x128xf32> -> vector<160x128xf32>
    %46 = arith.maximumf %10, %15 : vector<160x128xf32>
    %47 = arith.maximumf %46, %20 : vector<160x128xf32>
    %48 = arith.maximumf %47, %25 : vector<160x128xf32>
    %49 = arith.maximumf %48, %30 : vector<160x128xf32>
    %50 = arith.maximumf %49, %35 : vector<160x128xf32>
    %51 = arith.maximumf %50, %40 : vector<160x128xf32>
    %52 = arith.maximumf %51, %45 : vector<160x128xf32>
    %53 = arith.subf %10, %52 : vector<160x128xf32>
    %54 = math.exp %53 : vector<160x128xf32>
    %55 = arith.subf %15, %52 : vector<160x128xf32>
    %56 = math.exp %55 : vector<160x128xf32>
    %57 = arith.subf %20, %52 : vector<160x128xf32>
    %58 = math.exp %57 : vector<160x128xf32>
    %59 = arith.subf %25, %52 : vector<160x128xf32>
    %60 = math.exp %59 : vector<160x128xf32>
    %61 = arith.subf %30, %52 : vector<160x128xf32>
    %62 = math.exp %61 : vector<160x128xf32>
    %63 = arith.subf %35, %52 : vector<160x128xf32>
    %64 = math.exp %63 : vector<160x128xf32>
    %65 = arith.subf %40, %52 : vector<160x128xf32>
    %66 = math.exp %65 : vector<160x128xf32>
    %67 = arith.subf %45, %52 : vector<160x128xf32>
    %68 = math.exp %67 : vector<160x128xf32>
    %69 = arith.addf %54, %56 : vector<160x128xf32>
    %70 = arith.addf %69, %58 : vector<160x128xf32>
    %71 = arith.addf %70, %60 : vector<160x128xf32>
    %72 = arith.addf %71, %62 : vector<160x128xf32>
    %73 = arith.addf %72, %64 : vector<160x128xf32>
    %74 = arith.addf %73, %66 : vector<160x128xf32>
    %75 = arith.addf %74, %68 : vector<160x128xf32>
    %76 = arith.mulf %54, %6 : vector<160x128xf32>
    %77 = arith.mulf %56, %12 : vector<160x128xf32>
    %78 = arith.addf %76, %77 : vector<160x128xf32>
    %79 = arith.mulf %58, %17 : vector<160x128xf32>
    %80 = arith.addf %78, %79 : vector<160x128xf32>
    %81 = arith.mulf %60, %22 : vector<160x128xf32>
    %82 = arith.addf %80, %81 : vector<160x128xf32>
    %83 = arith.mulf %62, %27 : vector<160x128xf32>
    %84 = arith.addf %82, %83 : vector<160x128xf32>
    %85 = arith.mulf %64, %32 : vector<160x128xf32>
    %86 = arith.addf %84, %85 : vector<160x128xf32>
    %87 = arith.mulf %66, %37 : vector<160x128xf32>
    %88 = arith.addf %86, %87 : vector<160x128xf32>
    %89 = arith.mulf %68, %42 : vector<160x128xf32>
    %90 = arith.addf %88, %89 : vector<160x128xf32>
    %91 = tpu.reciprocal %75 {approx = true} : vector<160x128xf32> -> vector<160x128xf32>
    %92 = arith.mulf %90, %91 : vector<160x128xf32>
    %93 = arith.truncf %92 : vector<160x128xf32> to vector<160x128xbf16>
    %c0_20 = arith.constant 0 : index
    %c0_21 = arith.constant 0 : index
    %94 = vector.load %arg3[%c0_20, %c0_21] : memref<128x128xbf16, #tpu.memory_space<vmem>>, vector<128x128xbf16>
    %cst_22 = arith.constant dense<0.000000e+00> : vector<160x128xf32>
    %95 = tpu.matmul %93, %94, %cst_22 {dimension_numbers = #tpu.dot_dimension_numbers<[1], [0], [0], [1], [0, 0, 1, 1], [], []>} : vector<160x128xbf16>, vector<128x128xbf16>, vector<160x128xf32> -> vector<160x128xf32>
    %c0_23 = arith.constant 0 : index
    %c0_24 = arith.constant 0 : index
    %96 = vector.load %arg4[%c0_23, %c0_24] : memref<1x128xf32, #tpu.memory_space<vmem>>, vector<1x128xf32>
    %97 = vector.broadcast %96 : vector<1x128xf32> to vector<160x128xf32>
    %98 = arith.addf %95, %97 : vector<160x128xf32>
    %c0_25 = arith.constant 0 : index
    %c0_26 = arith.constant 0 : index
    %99 = vector.load %arg6[%c0_25, %c0_26] : memref<160x128xf32, #tpu.memory_space<vmem>>, vector<160x128xf32>
    tpu.vector_store %arg6[%c0_25, %c0_26], %98 {strides = array<i32>} : memref<160x128xf32, #tpu.memory_space<vmem>>, vector<160x128xf32>,
    return
  }
  func.func @transform_0(%arg0: i32) -> (i32, i32) {
    %c0_i32 = arith.constant 0 : i32
    %c0_i32_0 = arith.constant 0 : i32
    return %arg0, %c0_i32 : i32, i32
  }
  func.func @transform_1(%arg0: i32) -> (i32, i32) {
    %c0_i32 = arith.constant 0 : i32
    %c0_i32_0 = arith.constant 0 : i32
    %c0_i32_1 = arith.constant 0 : i32
    return %c0_i32, %c0_i32_0 : i32, i32
  }
  func.func @transform_2(%arg0: i32) -> (i32, i32) {
    %c0_i32 = arith.constant 0 : i32
    %c0_i32_0 = arith.constant 0 : i32
    %c0_i32_1 = arith.constant 0 : i32
    return %c0_i32, %c0_i32_0 : i32, i32
  }
  func.func @transform_3(%arg0: i32) -> (i32, i32) {
    %c0_i32 = arith.constant 0 : i32
    %c0_i32_0 = arith.constant 0 : i32
    %c0_i32_1 = arith.constant 0 : i32
    return %c0_i32, %c0_i32_0 : i32, i32
  }
  func.func @transform_4(%arg0: i32) -> (i32, i32) {
    %c0_i32 = arith.constant 0 : i32
    %c0_i32_0 = arith.constant 0 : i32
    %c0_i32_1 = arith.constant 0 : i32
    return %c0_i32, %c0_i32_0 : i32, i32
  }
  func.func @transform_5(%arg0: i32) -> (i32, i32) {
    %c0_i32 = arith.constant 0 : i32
    %c0_i32_0 = arith.constant 0 : i32
    return %arg0, %c0_i32 : i32, i32
  }
}

</mosaic_0001>

<llo_original>
// kernel: multi_head_attention.1
$region0: #{multi_head_attention.1}
  #allocation0 [shape = 'u32[]', space=smem, size = 0x4, offset = 0x4, fixed_abs, tag = 'smem constant byte address 0x4 - core index']
  #allocation1 [shape = 'u32[144,128]{1,0:T(1,128)}', space=vmem, size = 0x12000, scoped, tag = 'internal scratch']
  %s0 = inlined_call_operand.vmem [shape: f32[320,128], index: 0, kind: input, shape index: {}]
  %s1 = inlined_call_operand.vmem [shape: bf16[128,384], index: 1, kind: input, shape index: {}]
  %s2 = inlined_call_operand.vmem [shape: bf16[128,128], index: 2, kind: input, shape index: {}]
  %s3 = inlined_call_operand.vmem [shape: f32[1,128], index: 3, kind: input, shape index: {}]
  %s4 = inlined_call_operand.vmem [shape: bf16[128,128], index: 4, kind: input, shape index: {}]
  %s5 = inlined_call_operand.vmem [shape: f32[320,128], index: 5, kind: output, shape index: {}]
  %s6 = sld [smem:[#allocation0]]
  $region53: #{multi_head_attention.1} parent=0
    _
  %s8 = ssub.s32 1, %s6
  %s9 = scalar_select 0, %s8, %s6
  loop: start=0, step=1, limit=4
  $region2: #{multi_head_attention.1} parent=0 // loop_pre_header
    _
  $region3: #{multi_head_attention.1} parent=0 // loop_header
    %s11 = sphi 0, %s15
    %p12 = scmp.ge.s32.totalorder %s11, 4
    %s21 = sphi 0, %s23
    %s24 = sphi 0, %s21
    %s25 = sphi 0, %s24
    %s41 = sphi 0, %s25
    %s45 = sphi 0, %s45
    %s47 = sphi 0, %s45
    %s48 = sphi 0, %s47
    %s62 = sphi 0, %s48
    %s66 = sphi 0, %s66
    %s68 = sphi 0, %s66
    %s69 = sphi 0, %s68
    %s83 = sphi 0, %s69
    %s87 = sphi 0, %s87
    %s89 = sphi 0, %s87
    %s90 = sphi 0, %s89
    %s104 = sphi 0, %s90
    %s108 = sphi 0, %s108
    %s110 = sphi 0, %s108
    %s111 = sphi 0, %s110
    %s125 = sphi 0, %s111
    %s131 = sphi 0, %s133
    %s134 = sphi 0, %s131
    %s135 = sphi 0, %s134
    %s151 = sphi 0, %s135
  $region4: #{multi_head_attention.1} parent=0 // loop_header_branch
    %14 = sbr.rel (%p12) target = $region8
  $region5: #{multi_head_attention.1} parent=0 // loop_body
    %s16 = ssub.s32 %s11, 1
    %s17 = ssub.s32 %s11, 2
    %s18 = sadd.s32 %s11, 1
    %s19 = ssub.s32 %s11, %s18
    %p20 = scmp.eq.s32.totalorder %s19, 0
    %s22 = sadd.s32 %s21, 1
    %s23 = scalar_select %p20, %s21, %s22
    %p26 = pneg %p20
    %p27 = scmp.eq.s32.totalorder %s11, 1
    %p28 = por %p26, %p27
    %p29 = scmp.ne.s32.totalorder %s21, %s24
    %p30 = scmp.eq.s32.totalorder %s11, 0
    %p31 = por %p29, %p30
    %p32 = scmp.ne.s32.totalorder %s21, %s24
    %p33 = scmp.eq.s32.totalorder %s16, 1
    %p34 = por %p32, %p33
    %p35 = scmp.ne.s32.totalorder %s24, %s25
    %p36 = scmp.eq.s32.totalorder %s16, 0
    %p37 = por %p35, %p36
    %p38 = scmp.ne.s32.totalorder %s24, %s25
    %p39 = scmp.eq.s32.totalorder %s17, 1
    %p40 = por %p38, %p39
    %p42 = scmp.ne.s32.totalorder %s25, %s41
    %p43 = scmp.eq.s32.totalorder %s17, 0
    %p44 = por %p42, %p43
    %s46 = sadd.s32 %s45, 1
    %p49 = scmp.eq.s32.totalorder %s11, 1
    %p50 = scmp.ne.s32.totalorder %s45, %s47
    %p51 = scmp.eq.s32.totalorder %s11, 0
    %p52 = por %p50, %p51
    %p53 = scmp.ne.s32.totalorder %s45, %s47
    %p54 = scmp.eq.s32.totalorder %s16, 1
    %p55 = por %p53, %p54
    %p56 = scmp.ne.s32.totalorder %s47, %s48
    %p57 = scmp.eq.s32.totalorder %s16, 0
    %p58 = por %p56, %p57
    %p59 = scmp.ne.s32.totalorder %s47, %s48
    %p60 = scmp.eq.s32.totalorder %s17, 1
    %p61 = por %p59, %p60
    %p63 = scmp.ne.s32.totalorder %s48, %s62
    %p64 = scmp.eq.s32.totalorder %s17, 0
    %p65 = por %p63, %p64
    %s67 = sadd.s32 %s66, 1
    %p70 = scmp.eq.s32.totalorder %s11, 1
    %p71 = scmp.ne.s32.totalorder %s66, %s68
    %p72 = scmp.eq.s32.totalorder %s11, 0
    %p73 = por %p71, %p72
    %p74 = scmp.ne.s32.totalorder %s66, %s68
    %p75 = scmp.eq.s32.totalorder %s16, 1
    %p76 = por %p74, %p75
    %p77 = scmp.ne.s32.totalorder %s68, %s69
    %p78 = scmp.eq.s32.totalorder %s16, 0
    %p79 = por %p77, %p78
    %p80 = scmp.ne.s32.totalorder %s68, %s69
    %p81 = scmp.eq.s32.totalorder %s17, 1
    %p82 = por %p80, %p81
    %p84 = scmp.ne.s32.totalorder %s69, %s83
    %p85 = scmp.eq.s32.totalorder %s17, 0
    %p86 = por %p84, %p85
    %s88 = sadd.s32 %s87, 1
    %p91 = scmp.eq.s32.totalorder %s11, 1
    %p92 = scmp.ne.s32.totalorder %s87, %s89
    %p93 = scmp.eq.s32.totalorder %s11, 0
    %p94 = por %p92, %p93
    %p95 = scmp.ne.s32.totalorder %s87, %s89
    %p96 = scmp.eq.s32.totalorder %s16, 1
    %p97 = por %p95, %p96
    %p98 = scmp.ne.s32.totalorder %s89, %s90
    %p99 = scmp.eq.s32.totalorder %s16, 0
    %p100 = por %p98, %p99
    %p101 = scmp.ne.s32.totalorder %s89, %s90
    %p102 = scmp.eq.s32.totalorder %s17, 1
    %p103 = por %p101, %p102
    %p105 = scmp.ne.s32.totalorder %s90, %s104
    %p106 = scmp.eq.s32.totalorder %s17, 0
    %p107 = por %p105, %p106
    %s109 = sadd.s32 %s108, 1
    %p112 = scmp.eq.s32.totalorder %s11, 1
    %p113 = scmp.ne.s32.totalorder %s108, %s110
    %p114 = scmp.eq.s32.totalorder %s11, 0
    %p115 = por %p113, %p114
    %p116 = scmp.ne.s32.totalorder %s108, %s110
    %p117 = scmp.eq.s32.totalorder %s16, 1
    %p118 = por %p116, %p117
    %p119 = scmp.ne.s32.totalorder %s110, %s111
    %p120 = scmp.eq.s32.totalorder %s16, 0
    %p121 = por %p119, %p120
    %p122 = scmp.ne.s32.totalorder %s110, %s111
    %p123 = scmp.eq.s32.totalorder %s17, 1
    %p124 = por %p122, %p123
    %p126 = scmp.ne.s32.totalorder %s111, %s125
    %p127 = scmp.eq.s32.totalorder %s17, 0
    %p128 = por %p126, %p127
    %s129 = ssub.s32 %s11, %s18
    %p130 = scmp.eq.s32.totalorder %s129, 0
    %s132 = sadd.s32 %s131, 1
    %s133 = scalar_select %p130, %s131, %s132
    %p136 = pneg %p130
    %p137 = scmp.eq.s32.totalorder %s11, 1
    %p138 = por %p136, %p137
    %p139 = scmp.ne.s32.totalorder %s131, %s134
    %p140 = scmp.eq.s32.totalorder %s11, 0
    %p141 = por %p139, %p140
    %p142 = scmp.ne.s32.totalorder %s131, %s134
    %p143 = scmp.eq.s32.totalorder %s16, 1
    %p144 = por %p142, %p143
    %p145 = scmp.ne.s32.totalorder %s134, %s135
    %p146 = scmp.eq.s32.totalorder %s16, 0
    %p147 = por %p145, %p146
    %p148 = scmp.ne.s32.totalorder %s134, %s135
    %p149 = scmp.eq.s32.totalorder %s17, 1
    %p150 = por %p148, %p149
    %p152 = scmp.ne.s32.totalorder %s135, %s151
    %p153 = scmp.eq.s32.totalorder %s17, 0
    %p154 = por %p152, %p153
    %p155 = scmp.le.s32.totalorder 1, %s11
    %p156 = scmp.lt.s32.totalorder %s11, 3
    %p157 = pnand %p155, %p156
    %p158 = pneg %p157
    // Predicated region
    $region9: #{multi_head_attention.1} parent=5 // pred_check
      _
    $region10: #{multi_head_attention.1} parent=5 // pred_check_branch
      %160 = sbr.rel (%p157) target = $region12
    $region11: #{multi_head_attention.1} parent=5 // pred_region
      %s161 = ssub.s32 %s11, 1
      // Predicated region
      $region13: #{multi_head_attention.1} parent=11 // pred_check
        %p162 = pneg %p58
      $region14: #{multi_head_attention.1} parent=11 // pred_check_branch
        %164 = sbr.rel (%p162) target = $region16
      $region15: #{multi_head_attention.1} parent=11 // pred_region
        _
      $region16: #{multi_head_attention.1} parent=11 // pred_fallthru
        _
      // Predicated region
      $region17: #{multi_head_attention.1} parent=11 // pred_check
        %p165 = pneg %p79
      $region18: #{multi_head_attention.1} parent=11 // pred_check_branch
        %167 = sbr.rel (%p165) target = $region20
      $region19: #{multi_head_attention.1} parent=11 // pred_region
        _
      $region20: #{multi_head_attention.1} parent=11 // pred_fallthru
        _
      // Predicated region
      $region21: #{multi_head_attention.1} parent=11 // pred_check
        %p168 = pneg %p100
      $region22: #{multi_head_attention.1} parent=11 // pred_check_branch
        %170 = sbr.rel (%p168) target = $region24
      $region23: #{multi_head_attention.1} parent=11 // pred_region
        _
      $region24: #{multi_head_attention.1} parent=11 // pred_fallthru
        _
      // Predicated region
      $region25: #{multi_head_attention.1} parent=11 // pred_check
        %p171 = pneg %p121
      $region26: #{multi_head_attention.1} parent=11 // pred_check_branch
        %173 = sbr.rel (%p171) target = $region28
      $region27: #{multi_head_attention.1} parent=11 // pred_region
        _
      $region28: #{multi_head_attention.1} parent=11 // pred_fallthru
        _
    $region12: #{multi_head_attention.1} parent=5 // pred_fallthru
      _
    %p174 = scmp.lt.s32.totalorder %s11, 2
    // Predicated region
    $region29: #{multi_head_attention.1} parent=5 // pred_check
      %p175 = pneg %p174
    $region30: #{multi_head_attention.1} parent=5 // pred_check_branch
      %177 = sbr.rel (%p175) target = $region32
    $region31: #{multi_head_attention.1} parent=5 // pred_region
      // Predicated region
      $region33: #{multi_head_attention.1} parent=31 // pred_check
        %p178 = pneg %p31
      $region34: #{multi_head_attention.1} parent=31 // pred_check_branch
        %180 = sbr.rel (%p178) target = $region36
      $region35: #{multi_head_attention.1} parent=31 // pred_region
        %s181 = smul.u32 20, %s11
        %p182 = scmp.lt.s32.totalorder %s181, 39
        %s183 = scalar_select %p182, %s181, 39
        %s184 = smul.addr %s183, 8
        %s185 = scalar_lea.vmem %s0, %s184
        %s186 = smul.u32 20, %s11
      $region36: #{multi_head_attention.1} parent=31 // pred_fallthru
        _
    $region32: #{multi_head_attention.1} parent=5 // pred_fallthru
      _
    %p187 = scmp.le.s32.totalorder 1, %s11
    %p188 = scmp.lt.s32.totalorder %s11, 3
    %p189 = pnand %p187, %p188
    %p190 = pneg %p189
    // Predicated region
    $region37: #{multi_head_attention.1} parent=5 // pred_check
      _
    $region38: #{multi_head_attention.1} parent=5 // pred_check_branch
      %192 = sbr.rel (%p189) target = $region40
    $region39: #{multi_head_attention.1} parent=5 // pred_region
      %s193 = ssub.s32 %s11, 1
      %s194 = smul.u32 20, %s16
      %p195 = scmp.lt.s32.totalorder %s194, 39
      %s196 = scalar_select %p195, %s194, 39
      %s197 = smul.addr %s196, 8
      %s198 = scalar_lea.vmem %s0, %s197
      %p199 = pneg %p37
      %p200 = pneg %p34
      %p201 = pneg %p58
      %p202 = pneg %p55
      %p203 = pneg %p79
      %p204 = pneg %p76
      %p205 = pneg %p100
      %p206 = pneg %p97
      %p207 = pneg %p121
      %p208 = pneg %p118
      %p209 = pneg %p147
      %p210 = pneg %p144
      %s211 = smul.u32 20, %s16
      %p212 = scmp.lt.s32.totalorder %s211, 39
      %s213 = scalar_select %p212, %s211, 39
      %s214 = smul.addr %s213, 8
      %s215 = scalar_lea.vmem %s5, %s214
      %s216 = smul.u32 20, %s16
      %p217 = scmp.lt.s32.totalorder %s216, 39
      %s218 = scalar_select %p217, %s216, 39
      %s219 = smul.addr %s218, 8
      %s220 = scalar_lea.vmem %s0, %s219
      %s221 = smul.u32 20, %s16
      %s222 = smul.u32 20, %s16
      %p223 = scmp.lt.s32.totalorder %s222, 39
      %s224 = scalar_select %p223, %s222, 39
      %s225 = smul.addr %s224, 8
      %s226 = scalar_lea.vmem %s5, %s225
      %s227 = smul.u32 20, %s16
      %v229 = vld [vmem:[%s220] sm:$0xff]
      %v230 = vld [vmem:[%s220 + $0x8] sm:$0xff]
      %v231 = vld [vmem:[%s220 + $0x10] sm:$0xff]
      %v232 = vld [vmem:[%s220 + $0x18] sm:$0xff]
      %v233 = vld [vmem:[%s220 + $0x20] sm:$0xff]
      %v234 = vld [vmem:[%s220 + $0x28] sm:$0xff]
      %v235 = vld [vmem:[%s220 + $0x30] sm:$0xff]
      %v236 = vld [vmem:[%s220 + $0x38] sm:$0xff]
      %v237 = vld [vmem:[%s220 + $0x40] sm:$0xff]
      %v238 = vld [vmem:[%s220 + $0x48] sm:$0xff]
      %v239 = vld [vmem:[%s220 + $0x50] sm:$0xff]
      %v240 = vld [vmem:[%s220 + $0x58] sm:$0xff]
      %v241 = vld [vmem:[%s220 + $0x60] sm:$0xff]
      %v242 = vld [vmem:[%s220 + $0x68] sm:$0xff]
      %v243 = vld [vmem:[%s220 + $0x70] sm:$0xff]
      %v244 = vld [vmem:[%s220 + $0x78] sm:$0xff]
      %v245 = vld [vmem:[%s220 + $0x80] sm:$0xff]
      %v246 = vld [vmem:[%s220 + $0x88] sm:$0xff]
      %v247 = vld [vmem:[%s220 + $0x90] sm:$0xff]
      %v248 = vld [vmem:[%s220 + $0x98] sm:$0xff]
      %v249 = vpack.c.bf16 %v230, %v229
      %v250 = vpack.c.bf16 %v232, %v231
      %v251 = vpack.c.bf16 %v234, %v233
      %v252 = vpack.c.bf16 %v236, %v235
      %v253 = vpack.c.bf16 %v238, %v237
      %v254 = vpack.c.bf16 %v240, %v239
      %v255 = vpack.c.bf16 %v242, %v241
      %v256 = vpack.c.bf16 %v244, %v243
      %v257 = vpack.c.bf16 %v246, %v245
      %v258 = vpack.c.bf16 %v248, %v247
      %v259 = vld [vmem:[%s1] sm:$0xff]
      %v260 = vld [vmem:[%s1 + $0x8] sm:$0xf]
      %v261 = vld [vmem:[%s1 + $0xc] sm:$0xff]
      %v262 = vld [vmem:[%s1 + $0x14] sm:$0xf]
      %v263 = vld [vmem:[%s1 + $0x18] sm:$0xff]
      %v264 = vld [vmem:[%s1 + $0x20] sm:$0xf]
      %v265 = vld [vmem:[%s1 + $0x24] sm:$0xff]
      %v266 = vld [vmem:[%s1 + $0x2c] sm:$0xf]
      %v267 = vld [vmem:[%s1 + $0x30] sm:$0xff]
      %v268 = vld [vmem:[%s1 + $0x38] sm:$0xf]
      %v269 = vld [vmem:[%s1 + $0x3c] sm:$0xff]
      %v270 = vld [vmem:[%s1 + $0x44] sm:$0xf]
      %v271 = vld [vmem:[%s1 + $0x48] sm:$0xff]
      %v272 = vld [vmem:[%s1 + $0x50] sm:$0xf]
      %v273 = vld [vmem:[%s1 + $0x54] sm:$0xff]
      %v274 = vld [vmem:[%s1 + $0x5c] sm:$0xf]
      %v275 = vld [vmem:[%s1 + $0x60] sm:$0xff]
      %v276 = vld [vmem:[%s1 + $0x68] sm:$0xf]
      %v277 = vld [vmem:[%s1 + $0x6c] sm:$0xff]
      %v278 = vld [vmem:[%s1 + $0x74] sm:$0xf]
      %v279 = vld [vmem:[%s1 + $0x78] sm:$0xff]
      %v280 = vld [vmem:[%s1 + $0x80] sm:$0xf]
      %v281 = vld [vmem:[%s1 + $0x84] sm:$0xff]
      %v282 = vld [vmem:[%s1 + $0x8c] sm:$0xf]
      %v283 = vld [vmem:[%s1 + $0x90] sm:$0xff]
      %v284 = vld [vmem:[%s1 + $0x98] sm:$0xf]
      %v285 = vld [vmem:[%s1 + $0x9c] sm:$0xff]
      %v286 = vld [vmem:[%s1 + $0xa4] sm:$0xf]
      %v287 = vld [vmem:[%s1 + $0xa8] sm:$0xff]
      %v288 = vld [vmem:[%s1 + $0xb0] sm:$0xf]
      %v289 = vld [vmem:[%s1 + $0xb4] sm:$0xff]
      %v290 = vld [vmem:[%s1 + $0xbc] sm:$0xf]
      %v323 = vunpack.c.l.b16 %v259
      %v324 = vunpack.c.h.b16 %v259
      %v325 = vunpack.c.l.b16 %v260
      %v326 = vunpack.c.l.b16 %v261
      %v327 = vunpack.c.h.b16 %v261
      %v328 = vunpack.c.l.b16 %v262
      %v329 = vunpack.c.l.b16 %v263
      %v330 = vunpack.c.h.b16 %v263
      %v331 = vunpack.c.l.b16 %v264
      %v332 = vunpack.c.l.b16 %v265
      %v333 = vunpack.c.h.b16 %v265
      %v334 = vunpack.c.l.b16 %v266
      %v335 = vunpack.c.l.b16 %v267
      %v336 = vunpack.c.h.b16 %v267
      %v337 = vunpack.c.l.b16 %v268
      %v338 = vunpack.c.l.b16 %v269
      %v339 = vunpack.c.h.b16 %v269
      %v340 = vunpack.c.l.b16 %v270
      %v341 = vunpack.c.l.b16 %v271
      %v342 = vunpack.c.h.b16 %v271
      %v343 = vunpack.c.l.b16 %v272
      %v344 = vunpack.c.l.b16 %v273
      %v345 = vunpack.c.h.b16 %v273
      %v346 = vunpack.c.l.b16 %v274
      %v347 = vunpack.c.l.b16 %v275
      %v348 = vunpack.c.h.b16 %v275
      %v349 = vunpack.c.l.b16 %v276
      %v350 = vunpack.c.l.b16 %v277
      %v351 = vunpack.c.h.b16 %v277
      %v352 = vunpack.c.l.b16 %v278
      %v353 = vunpack.c.l.b16 %v279
      %v354 = vunpack.c.h.b16 %v279
      %v355 = vunpack.c.l.b16 %v280
      %v356 = vunpack.c.l.b16 %v281
      %v357 = vunpack.c.h.b16 %v281
      %v358 = vunpack.c.l.b16 %v282
      %v359 = vunpack.c.l.b16 %v283
      %v360 = vunpack.c.h.b16 %v283
      %v361 = vunpack.c.l.b16 %v284
      %v362 = vunpack.c.l.b16 %v285
      %v363 = vunpack.c.h.b16 %v285
      %v364 = vunpack.c.l.b16 %v286
      %v365 = vunpack.c.l.b16 %v287
      %v366 = vunpack.c.h.b16 %v287
      %v367 = vunpack.c.l.b16 %v288
      %v368 = vunpack.c.l.b16 %v289
      %v369 = vunpack.c.h.b16 %v289
      %v370 = vunpack.c.l.b16 %v290
      %v371 = vpack.c.b16 %v326, %v323
      %v372 = vpack.c.b16 %v327, %v324
      %v373 = vpack.c.b16 %v328, %v325
      %v374 = vpack.c.b16 %v332, %v329
      %v375 = vpack.c.b16 %v333, %v330
      %v376 = vpack.c.b16 %v334, %v331
      %v377 = vpack.c.b16 %v338, %v335
      %v378 = vpack.c.b16 %v339, %v336
      %v379 = vpack.c.b16 %v340, %v337
      %v380 = vpack.c.b16 %v344, %v341
      %v381 = vpack.c.b16 %v345, %v342
      %v382 = vpack.c.b16 %v346, %v343
      %v383 = vpack.c.b16 %v350, %v347
      %v384 = vpack.c.b16 %v351, %v348
      %v385 = vpack.c.b16 %v352, %v349
      %v386 = vpack.c.b16 %v356, %v353
      %v387 = vpack.c.b16 %v357, %v354
      %v388 = vpack.c.b16 %v358, %v355
      %v389 = vpack.c.b16 %v362, %v359
      %v390 = vpack.c.b16 %v363, %v360
      %v391 = vpack.c.b16 %v364, %v361
      %v392 = vpack.c.b16 %v368, %v365
      %v393 = vpack.c.b16 %v369, %v366
      %v394 = vpack.c.b16 %v370, %v367
      %419 = vmatprep.subr.bf16.mxu0 %v372
      %420 = vmatpush1.bf16.msra.mxu0 %v371
      %421 = vmatprep.subr.bf16.mxu0 %v375
      %422 = vmatpush1.bf16.msra.mxu0 %v374
      %423 = vmatprep.subr.bf16.mxu0 %v378
      %424 = vmatpush1.bf16.msra.mxu0 %v377
      %425 = vmatprep.subr.bf16.mxu0 %v381
      %426 = vmatpush1.bf16.msra.mxu0 %v380
      %427 = vmatprep.subr.bf16.mxu0 %v384
      %428 = vmatpush1.bf16.msra.mxu0 %v383
      %429 = vmatprep.subr.bf16.mxu0 %v387
      %430 = vmatpush1.bf16.msra.mxu0 %v386
      %431 = vmatprep.subr.bf16.mxu0 %v390
      %432 = vmatpush1.bf16.msra.mxu0 %v389
      %433 = vmatprep.subr.bf16.mxu0 %v393
      %434 = vmatpush1.bf16.msra.mxu0 %v392
      %435 = vmatprep.subr.bf16.mxu0 0
      %436 = vmatpush1.bf16.msra.mxu0 0
      %437 = vmatprep.subr.bf16.mxu0 0
      %438 = vmatpush1.bf16.msra.mxu0 0
      %439 = vmatprep.subr.bf16.mxu0 0
      %440 = vmatpush1.bf16.msra.mxu0 0
      %441 = vmatprep.subr.bf16.mxu0 0
      %442 = vmatpush1.bf16.msra.mxu0 0
      %443 = vmatprep.subr.bf16.mxu0 0
      %444 = vmatpush1.bf16.msra.mxu0 0
      %445 = vmatprep.subr.bf16.mxu0 0
      %446 = vmatpush1.bf16.msra.mxu0 0
      %447 = vmatprep.subr.bf16.mxu0 0
      %448 = vmatpush1.bf16.msra.mxu0 0
      %449 = vmatprep.subr.bf16.mxu0 0
      %450 = vmatpush1.bf16.msra.mxu0 0
      %451 = vmatprep.mubr.bf16.mxu0 0
      %452 = vmatmul.mubr.bf16.gmra.mrb[0].mxu0 %v249
      %v453 = vpop.f32.mrb[0].mxu0
      %v454 = vadd.f32 0.0, %v453
      %v455 = vpop.f32.mrb[0].mxu0
      %v456 = vadd.f32 0.0, %v455
      %v457 = vpop.f32.mrb[0].mxu0
      %v458 = vadd.f32 0.0, %v457
      %v459 = vpop.f32.mrb[0].mxu0
      %v460 = vadd.f32 0.0, %v459
      %461 = vmatprep.mubr.bf16.mxu0 0
      %462 = vmatmul.mubr.bf16.gmra.mrb[0].mxu0 %v250
      %v463 = vpop.f32.mrb[0].mxu0
      %v464 = vadd.f32 0.0, %v463
      %v465 = vpop.f32.mrb[0].mxu0
      %v466 = vadd.f32 0.0, %v465
      %v467 = vpop.f32.mrb[0].mxu0
      %v468 = vadd.f32 0.0, %v467
      %v469 = vpop.f32.mrb[0].mxu0
      %v470 = vadd.f32 0.0, %v469
      %471 = vmatprep.mubr.bf16.mxu0 0
      %472 = vmatmul.mubr.bf16.gmra.mrb[0].mxu0 %v251
      %v473 = vpop.f32.mrb[0].mxu0
      %v474 = vadd.f32 0.0, %v473
      %v475 = vpop.f32.mrb[0].mxu0
      %v476 = vadd.f32 0.0, %v475
      %v477 = vpop.f32.mrb[0].mxu0
      %v478 = vadd.f32 0.0, %v477
      %v479 = vpop.f32.mrb[0].mxu0
      %v480 = vadd.f32 0.0, %v479
      %481 = vmatprep.mubr.bf16.mxu0 0
      %482 = vmatmul.mubr.bf16.gmra.mrb[0].mxu0 %v252
      %v483 = vpop.f32.mrb[0].mxu0
      %v484 = vadd.f32 0.0, %v483
      %v485 = vpop.f32.mrb[0].mxu0
      %v486 = vadd.f32 0.0, %v485
      %v487 = vpop.f32.mrb[0].mxu0
      %v488 = vadd.f32 0.0, %v487
      %v489 = vpop.f32.mrb[0].mxu0
      %v490 = vadd.f32 0.0, %v489
      %491 = vmatprep.mubr.bf16.mxu0 0
      %492 = vmatmul.mubr.bf16.gmra.mrb[0].mxu0 %v253
      %v493 = vpop.f32.mrb[0].mxu0
      %v494 = vadd.f32 0.0, %v493
      %v495 = vpop.f32.mrb[0].mxu0
      %v496 = vadd.f32 0.0, %v495
      %v497 = vpop.f32.mrb[0].mxu0
      %v498 = vadd.f32 0.0, %v497
      %v499 = vpop.f32.mrb[0].mxu0
      %v500 = vadd.f32 0.0, %v499
      %501 = vmatprep.mubr.bf16.mxu0 0
      %502 = vmatmul.mubr.bf16.gmra.mrb[0].mxu0 %v254
      %v503 = vpop.f32.mrb[0].mxu0
      %v504 = vadd.f32 0.0, %v503
      %v505 = vpop.f32.mrb[0].mxu0
      %v506 = vadd.f32 0.0, %v505
      %v507 = vpop.f32.mrb[0].mxu0
      %v508 = vadd.f32 0.0, %v507
      %v509 = vpop.f32.mrb[0].mxu0
      %v510 = vadd.f32 0.0, %v509
      %511 = vmatprep.mubr.bf16.mxu0 0
      %512 = vmatmul.mubr.bf16.gmra.mrb[0].mxu0 %v255
      %v513 = vpop.f32.mrb[0].mxu0
      %v514 = vadd.f32 0.0, %v513
      %v515 = vpop.f32.mrb[0].mxu0
      %v516 = vadd.f32 0.0, %v515
      %v517 = vpop.f32.mrb[0].mxu0
      %v518 = vadd.f32 0.0, %v517
      %v519 = vpop.f32.mrb[0].mxu0
      %v520 = vadd.f32 0.0, %v519
      %521 = vmatprep.mubr.bf16.mxu0 0
      %522 = vmatmul.mubr.bf16.gmra.mrb[0].mxu0 %v256
      %v523 = vpop.f32.mrb[0].mxu0
      %v524 = vadd.f32 0.0, %v523
      %v525 = vpop.f32.mrb[0].mxu0
      %v526 = vadd.f32 0.0, %v525
      %v527 = vpop.f32.mrb[0].mxu0
      %v528 = vadd.f32 0.0, %v527
      %v529 = vpop.f32.mrb[0].mxu0
      %v530 = vadd.f32 0.0, %v529
      %531 = vmatprep.mubr.bf16.mxu0 0
      %532 = vmatmul.mubr.bf16.gmra.mrb[0].mxu0 %v257
      %v533 = vpop.f32.mrb[0].mxu0
      %v534 = vadd.f32 0.0, %v533
      %v535 = vpop.f32.mrb[0].mxu0
      %v536 = vadd.f32 0.0, %v535
      %v537 = vpop.f32.mrb[0].mxu0
      %v538 = vadd.f32 0.0, %v537
      %v539 = vpop.f32.mrb[0].mxu0
      %v540 = vadd.f32 0.0, %v539
      %541 = vmatprep.mubr.bf16.mxu0 0
      %542 = vmatmul.mubr.bf16.gmra.mrb[0].mxu0 %v258
      %v543 = vpop.f32.mrb[0].mxu0
      %v544 = vadd.f32 0.0, %v543
      %v545 = vpop.f32.mrb[0].mxu0
      %v546 = vadd.f32 0.0, %v545
      %v547 = vpop.f32.mrb[0].mxu0
      %v548 = vadd.f32 0.0, %v547
      %v549 = vpop.f32.mrb[0].mxu0
      %v550 = vadd.f32 0.0, %v549
      %551 = vdwg.mxu0
      %552 = vmatprep.subr.bf16.mxu0 0
      %553 = vmatpush1.bf16.msra.mxu0 %v373
      %554 = vmatprep.subr.bf16.mxu0 0
      %555 = vmatpush1.bf16.msra.mxu0 %v376
      %556 = vmatprep.subr.bf16.mxu0 0
      %557 = vmatpush1.bf16.msra.mxu0 %v379
      %558 = vmatprep.subr.bf16.mxu0 0
      %559 = vmatpush1.bf16.msra.mxu0 %v382
      %560 = vmatprep.subr.bf16.mxu0 0
      %561 = vmatpush1.bf16.msra.mxu0 %v385
      %562 = vmatprep.subr.bf16.mxu0 0
      %563 = vmatpush1.bf16.msra.mxu0 %v388
      %564 = vmatprep.subr.bf16.mxu0 0
      %565 = vmatpush1.bf16.msra.mxu0 %v391
      %566 = vmatprep.subr.bf16.mxu0 0
      %567 = vmatpush1.bf16.msra.mxu0 %v394
      %568 = vmatprep.subr.bf16.mxu0 0
      %569 = vmatpush1.bf16.msra.mxu0 0
      %570 = vmatprep.subr.bf16.mxu0 0
      %571 = vmatpush1.bf16.msra.mxu0 0
      %572 = vmatprep.subr.bf16.mxu0 0
      %573 = vmatpush1.bf16.msra.mxu0 0
      %574 = vmatprep.subr.bf16.mxu0 0
      %575 = vmatpush1.bf16.msra.mxu0 0
      %576 = vmatprep.subr.bf16.mxu0 0
      %577 = vmatpush1.bf16.msra.mxu0 0
      %578 = vmatprep.subr.bf16.mxu0 0
      %579 = vmatpush1.bf16.msra.mxu0 0
      %580 = vmatprep.subr.bf16.mxu0 0
      %581 = vmatpush1.bf16.msra.mxu0 0
      %582 = vmatprep.subr.bf16.mxu0 0
      %583 = vmatpush1.bf16.msra.mxu0 0
      %584 = vmatprep.mubr.bf16.mxu0 0
      %585 = vmatmul.mubr.bf16.gmra.mrb[0].mxu0 %v249
      %v586 = vpop.f32.mrb[0].mxu0
      %v587 = vadd.f32 0.0, %v586
      %v588 = vpop.f32.mrb[0].mxu0
      %v589 = vpop.f32.mrb[0].mxu0
      %v590 = vadd.f32 0.0, %v589
      %v591 = vpop.f32.mrb[0].mxu0
      %592 = vmatprep.mubr.bf16.mxu0 0
      %593 = vmatmul.mubr.bf16.gmra.mrb[0].mxu0 %v250
      %v594 = vpop.f32.mrb[0].mxu0
      %v595 = vadd.f32 0.0, %v594
      %v596 = vpop.f32.mrb[0].mxu0
      %v597 = vpop.f32.mrb[0].mxu0
      %v598 = vadd.f32 0.0, %v597
      %v599 = vpop.f32.mrb[0].mxu0
      %600 = vmatprep.mubr.bf16.mxu0 0
      %601 = vmatmul.mubr.bf16.gmra.mrb[0].mxu0 %v251
      %v602 = vpop.f32.mrb[0].mxu0
      %v603 = vadd.f32 0.0, %v602
      %v604 = vpop.f32.mrb[0].mxu0
      %v605 = vpop.f32.mrb[0].mxu0
      %v606 = vadd.f32 0.0, %v605
      %v607 = vpop.f32.mrb[0].mxu0
      %608 = vmatprep.mubr.bf16.mxu0 0
      %609 = vmatmul.mubr.bf16.gmra.mrb[0].mxu0 %v252
      %v610 = vpop.f32.mrb[0].mxu0
      %v611 = vadd.f32 0.0, %v610
      %v612 = vpop.f32.mrb[0].mxu0
      %v613 = vpop.f32.mrb[0].mxu0
      %v614 = vadd.f32 0.0, %v613
      %v615 = vpop.f32.mrb[0].mxu0
      %616 = vmatprep.mubr.bf16.mxu0 0
      %617 = vmatmul.mubr.bf16.gmra.mrb[0].mxu0 %v253
      %v618 = vpop.f32.mrb[0].mxu0
      %v619 = vadd.f32 0.0, %v618
      %v620 = vpop.f32.mrb[0].mxu0
      %v621 = vpop.f32.mrb[0].mxu0
      %v622 = vadd.f32 0.0, %v621
      %v623 = vpop.f32.mrb[0].mxu0
      %624 = vmatprep.mubr.bf16.mxu0 0
      %625 = vmatmul.mubr.bf16.gmra.mrb[0].mxu0 %v254
      %v626 = vpop.f32.mrb[0].mxu0
      %v627 = vadd.f32 0.0, %v626
      %v628 = vpop.f32.mrb[0].mxu0
      %v629 = vpop.f32.mrb[0].mxu0
      %v630 = vadd.f32 0.0, %v629
      %v631 = vpop.f32.mrb[0].mxu0
      %632 = vmatprep.mubr.bf16.mxu0 0
      %633 = vmatmul.mubr.bf16.gmra.mrb[0].mxu0 %v255
      %v634 = vpop.f32.mrb[0].mxu0
      %v635 = vadd.f32 0.0, %v634
      %v636 = vpop.f32.mrb[0].mxu0
      %v637 = vpop.f32.mrb[0].mxu0
      %v638 = vadd.f32 0.0, %v637
      %v639 = vpop.f32.mrb[0].mxu0
      %640 = vmatprep.mubr.bf16.mxu0 0
      %641 = vmatmul.mubr.bf16.gmra.mrb[0].mxu0 %v256
      %v642 = vpop.f32.mrb[0].mxu0
      %v643 = vadd.f32 0.0, %v642
      %v644 = vpop.f32.mrb[0].mxu0
      %v645 = vpop.f32.mrb[0].mxu0
      %v646 = vadd.f32 0.0, %v645
      %v647 = vpop.f32.mrb[0].mxu0
      %648 = vmatprep.mubr.bf16.mxu0 0
      %649 = vmatmul.mubr.bf16.gmra.mrb[0].mxu0 %v257
      %v650 = vpop.f32.mrb[0].mxu0
      %v651 = vadd.f32 0.0, %v650
      %v652 = vpop.f32.mrb[0].mxu0
      %v653 = vpop.f32.mrb[0].mxu0
      %v654 = vadd.f32 0.0, %v653
      %v655 = vpop.f32.mrb[0].mxu0
      %656 = vmatprep.mubr.bf16.mxu0 0
      %657 = vmatmul.mubr.bf16.gmra.mrb[0].mxu0 %v258
      %v658 = vpop.f32.mrb[0].mxu0
      %v659 = vadd.f32 0.0, %v658
      %v660 = vpop.f32.mrb[0].mxu0
      %v661 = vpop.f32.mrb[0].mxu0
      %v662 = vadd.f32 0.0, %v661
      %v663 = vpop.f32.mrb[0].mxu0
      %664 = vdwg.mxu0
      %v665 = vld [vmem:[%s4] sm:$0xf]
      %v666 = vld [vmem:[%s4 + $0x4] sm:$0xf]
      %v667 = vld [vmem:[%s4 + $0x8] sm:$0xf]
      %v668 = vld [vmem:[%s4 + $0xc] sm:$0xf]
      %v669 = vld [vmem:[%s4 + $0x10] sm:$0xf]
      %v670 = vld [vmem:[%s4 + $0x14] sm:$0xf]
      %v671 = vld [vmem:[%s4 + $0x18] sm:$0xf]
      %v672 = vld [vmem:[%s4 + $0x1c] sm:$0xf]
      %v673 = vld [vmem:[%s4 + $0x20] sm:$0xf]
      %v674 = vld [vmem:[%s4 + $0x24] sm:$0xf]
      %v675 = vld [vmem:[%s4 + $0x28] sm:$0xf]
      %v676 = vld [vmem:[%s4 + $0x2c] sm:$0xf]
      %v677 = vld [vmem:[%s4 + $0x30] sm:$0xf]
      %v678 = vld [vmem:[%s4 + $0x34] sm:$0xf]
      %v679 = vld [vmem:[%s4 + $0x38] sm:$0xf]
      %v680 = vld [vmem:[%s4 + $0x3c] sm:$0xf]
      %v681 = vmul.f32 %v454, %v456
      %v682 = vmul.f32 %v458, %v460
      %v683 = vmul.f32 %v464, %v466
      %v684 = vmul.f32 %v468, %v470
      %v685 = vmul.f32 %v474, %v476
      %v686 = vmul.f32 %v478, %v480
      %v687 = vmul.f32 %v484, %v486
      %v688 = vmul.f32 %v488, %v490
      %v689 = vmul.f32 %v494, %v496
      %v690 = vmul.f32 %v498, %v500
      %v691 = vmul.f32 %v504, %v506
      %v692 = vmul.f32 %v508, %v510
      %v693 = vmul.f32 %v514, %v516
      %v694 = vmul.f32 %v518, %v520
      %v695 = vmul.f32 %v524, %v526
      %v696 = vmul.f32 %v528, %v530
      %v697 = vmul.f32 %v534, %v536
      %v698 = vmul.f32 %v538, %v540
      %v699 = vmul.f32 %v544, %v546
      %v700 = vmul.f32 %v548, %v550
      %v701 = vpack.c.bf16 %v682, %v681
      %v702 = vpack.c.bf16 %v684, %v683
      %v703 = vpack.c.bf16 %v686, %v685
      %v704 = vpack.c.bf16 %v688, %v687
      %v705 = vpack.c.bf16 %v690, %v689
      %v706 = vpack.c.bf16 %v692, %v691
      %v707 = vpack.c.bf16 %v694, %v693
      %v708 = vpack.c.bf16 %v696, %v695
      %v709 = vpack.c.bf16 %v698, %v697
      %v710 = vpack.c.bf16 %v700, %v699
      %v727 = vunpack.c.l.b16 %v665
      %v728 = vunpack.c.l.b16 %v666
      %v729 = vunpack.c.l.b16 %v667
      %v730 = vunpack.c.l.b16 %v668
      %v731 = vunpack.c.l.b16 %v669
      %v732 = vunpack.c.l.b16 %v670
      %v733 = vunpack.c.l.b16 %v671
      %v734 = vunpack.c.l.b16 %v672
      %v735 = vunpack.c.l.b16 %v673
      %v736 = vunpack.c.l.b16 %v674
      %v737 = vunpack.c.l.b16 %v675
      %v738 = vunpack.c.l.b16 %v676
      %v739 = vunpack.c.l.b16 %v677
      %v740 = vunpack.c.l.b16 %v678
      %v741 = vunpack.c.l.b16 %v679
      %v742 = vunpack.c.l.b16 %v680
      %v743 = vpack.c.b16 %v728, %v727
      %v744 = vpack.c.b16 %v730, %v729
      %v745 = vpack.c.b16 %v732, %v731
      %v746 = vpack.c.b16 %v734, %v733
      %v747 = vpack.c.b16 %v736, %v735
      %v748 = vpack.c.b16 %v738, %v737
      %v749 = vpack.c.b16 %v740, %v739
      %v750 = vpack.c.b16 %v742, %v741
      %759 = vmatprep.subr.bf16.mxu0 0
      %760 = vmatpush1.bf16.msra.mxu0 %v743
      %761 = vmatprep.subr.bf16.mxu0 0
      %762 = vmatpush1.bf16.msra.mxu0 %v744
      %763 = vmatprep.subr.bf16.mxu0 0
      %764 = vmatpush1.bf16.msra.mxu0 %v745
      %765 = vmatprep.subr.bf16.mxu0 0
      %766 = vmatpush1.bf16.msra.mxu0 %v746
      %767 = vmatprep.subr.bf16.mxu0 0
      %768 = vmatpush1.bf16.msra.mxu0 %v747
      %769 = vmatprep.subr.bf16.mxu0 0
      %770 = vmatpush1.bf16.msra.mxu0 %v748
      %771 = vmatprep.subr.bf16.mxu0 0
      %772 = vmatpush1.bf16.msra.mxu0 %v749
      %773 = vmatprep.subr.bf16.mxu0 0
      %774 = vmatpush1.bf16.msra.mxu0 %v750
      %775 = vmatprep.subr.bf16.mxu0 0
      %776 = vmatpush1.bf16.msra.mxu0 0
      %777 = vmatprep.subr.bf16.mxu0 0
      %778 = vmatpush1.bf16.msra.mxu0 0
      %779 = vmatprep.subr.bf16.mxu0 0
      %780 = vmatpush1.bf16.msra.mxu0 0
      %781 = vmatprep.subr.bf16.mxu0 0
      %782 = vmatpush1.bf16.msra.mxu0 0
      %783 = vmatprep.subr.bf16.mxu0 0
      %784 = vmatpush1.bf16.msra.mxu0 0
      %785 = vmatprep.subr.bf16.mxu0 0
      %786 = vmatpush1.bf16.msra.mxu0 0
      %787 = vmatprep.subr.bf16.mxu0 0
      %788 = vmatpush1.bf16.msra.mxu0 0
      %789 = vmatprep.subr.bf16.mxu0 0
      %790 = vmatpush1.bf16.msra.mxu0 0
      %791 = vmatprep.mubr.bf16.mxu0 0
      %792 = vmatmul.mubr.bf16.gmra.mrb[0].mxu0 %v701
      %v793 = vpop.f32.mrb[0].mxu0
      %v794 = vadd.f32 0.0, %v793
      %v795 = vpop.f32.mrb[0].mxu0
      %v796 = vpop.f32.mrb[0].mxu0
      %v797 = vadd.f32 0.0, %v796
      %v798 = vpop.f32.mrb[0].mxu0
      %799 = vmatprep.mubr.bf16.mxu0 0
      %800 = vmatmul.mubr.bf16.gmra.mrb[0].mxu0 %v702
      %v801 = vpop.f32.mrb[0].mxu0
      %v802 = vadd.f32 0.0, %v801
      %v803 = vpop.f32.mrb[0].mxu0
      %v804 = vpop.f32.mrb[0].mxu0
      %v805 = vadd.f32 0.0, %v804
      %v806 = vpop.f32.mrb[0].mxu0
      %807 = vmatprep.mubr.bf16.mxu0 0
      %808 = vmatmul.mubr.bf16.gmra.mrb[0].mxu0 %v703
      %v809 = vpop.f32.mrb[0].mxu0
      %v810 = vadd.f32 0.0, %v809
      %v811 = vpop.f32.mrb[0].mxu0
      %v812 = vpop.f32.mrb[0].mxu0
      %v813 = vadd.f32 0.0, %v812
      %v814 = vpop.f32.mrb[0].mxu0
      %815 = vmatprep.mubr.bf16.mxu0 0
      %816 = vmatmul.mubr.bf16.gmra.mrb[0].mxu0 %v704
      %v817 = vpop.f32.mrb[0].mxu0
      %v818 = vadd.f32 0.0, %v817
      %v819 = vpop.f32.mrb[0].mxu0
      %v820 = vpop.f32.mrb[0].mxu0
      %v821 = vadd.f32 0.0, %v820
      %v822 = vpop.f32.mrb[0].mxu0
      %823 = vmatprep.mubr.bf16.mxu0 0
      %824 = vmatmul.mubr.bf16.gmra.mrb[0].mxu0 %v705
      %v825 = vpop.f32.mrb[0].mxu0
      %v826 = vadd.f32 0.0, %v825
      %v827 = vpop.f32.mrb[0].mxu0
      %v828 = vpop.f32.mrb[0].mxu0
      %v829 = vadd.f32 0.0, %v828
      %v830 = vpop.f32.mrb[0].mxu0
      %831 = vmatprep.mubr.bf16.mxu0 0
      %832 = vmatmul.mubr.bf16.gmra.mrb[0].mxu0 %v706
      %v833 = vpop.f32.mrb[0].mxu0
      %v834 = vadd.f32 0.0, %v833
      %v835 = vpop.f32.mrb[0].mxu0
      %v836 = vpop.f32.mrb[0].mxu0
      %v837 = vadd.f32 0.0, %v836
      %v838 = vpop.f32.mrb[0].mxu0
      %839 = vmatprep.mubr.bf16.mxu0 0
      %840 = vmatmul.mubr.bf16.gmra.mrb[0].mxu0 %v707
      %v841 = vpop.f32.mrb[0].mxu0
      %v842 = vadd.f32 0.0, %v841
      %v843 = vpop.f32.mrb[0].mxu0
      %v844 = vpop.f32.mrb[0].mxu0
      %v845 = vadd.f32 0.0, %v844
      %v846 = vpop.f32.mrb[0].mxu0
      %847 = vmatprep.mubr.bf16.mxu0 0
      %848 = vmatmul.mubr.bf16.gmra.mrb[0].mxu0 %v708
      %v849 = vpop.f32.mrb[0].mxu0
      %v850 = vadd.f32 0.0, %v849
      %v851 = vpop.f32.mrb[0].mxu0
      %v852 = vpop.f32.mrb[0].mxu0
      %v853 = vadd.f32 0.0, %v852
      %v854 = vpop.f32.mrb[0].mxu0
      %855 = vmatprep.mubr.bf16.mxu0 0
      %856 = vmatmul.mubr.bf16.gmra.mrb[0].mxu0 %v709
      %v857 = vpop.f32.mrb[0].mxu0
      %v858 = vadd.f32 0.0, %v857
      %v859 = vpop.f32.mrb[0].mxu0
      %v860 = vpop.f32.mrb[0].mxu0
      %v861 = vadd.f32 0.0, %v860
      %v862 = vpop.f32.mrb[0].mxu0
      %863 = vmatprep.mubr.bf16.mxu0 0
      %864 = vmatmul.mubr.bf16.gmra.mrb[0].mxu0 %v710
      %v865 = vpop.f32.mrb[0].mxu0
      %v866 = vadd.f32 0.0, %v865
      %v867 = vpop.f32.mrb[0].mxu0
      %v868 = vpop.f32.mrb[0].mxu0
      %v869 = vadd.f32 0.0, %v868
      %v870 = vpop.f32.mrb[0].mxu0
      %871 = vdwg.mxu0
      %872 = vrot.lane.b32.xlu0 %v456, 16
      %v873 = vpop.permute.xlu0 %872
      %874 = vrot.lane.b32.xlu0 %v460, 16
      %v875 = vpop.permute.xlu0 %874
      %876 = vrot.lane.b32.xlu0 %v466, 16
      %v877 = vpop.permute.xlu0 %876
      %878 = vrot.lane.b32.xlu0 %v470, 16
      %v879 = vpop.permute.xlu0 %878
      %880 = vrot.lane.b32.xlu0 %v476, 16
      %v881 = vpop.permute.xlu0 %880
      %882 = vrot.lane.b32.xlu0 %v480, 16
      %v883 = vpop.permute.xlu0 %882
      %884 = vrot.lane.b32.xlu0 %v486, 16
      %v885 = vpop.permute.xlu0 %884
      %886 = vrot.lane.b32.xlu0 %v490, 16
      %v887 = vpop.permute.xlu0 %886
      %888 = vrot.lane.b32.xlu0 %v496, 16
      %v889 = vpop.permute.xlu0 %888
      %890 = vrot.lane.b32.xlu0 %v500, 16
      %v891 = vpop.permute.xlu0 %890
      %892 = vrot.lane.b32.xlu0 %v506, 16
      %v893 = vpop.permute.xlu0 %892
      %894 = vrot.lane.b32.xlu0 %v510, 16
      %v895 = vpop.permute.xlu0 %894
      %896 = vrot.lane.b32.xlu0 %v516, 16
      %v897 = vpop.permute.xlu0 %896
      %898 = vrot.lane.b32.xlu0 %v520, 16
      %v899 = vpop.permute.xlu0 %898
      %900 = vrot.lane.b32.xlu0 %v526, 16
      %v901 = vpop.permute.xlu0 %900
      %902 = vrot.lane.b32.xlu0 %v530, 16
      %v903 = vpop.permute.xlu0 %902
      %904 = vrot.lane.b32.xlu0 %v536, 16
      %v905 = vpop.permute.xlu0 %904
      %906 = vrot.lane.b32.xlu0 %v540, 16
      %v907 = vpop.permute.xlu0 %906
      %908 = vrot.lane.b32.xlu0 %v546, 16
      %v909 = vpop.permute.xlu0 %908
      %910 = vrot.lane.b32.xlu0 %v550, 16
      %v911 = vpop.permute.xlu0 %910
      %912 = vrot.lane.b32.xlu0 %v587, 16
      %v913 = vpop.permute.xlu0 %912
      %914 = vrot.lane.b32.xlu0 %v590, 16
      %v915 = vpop.permute.xlu0 %914
      %916 = vrot.lane.b32.xlu0 %v595, 16
      %v917 = vpop.permute.xlu0 %916
      %918 = vrot.lane.b32.xlu0 %v598, 16
      %v919 = vpop.permute.xlu0 %918
      %920 = vrot.lane.b32.xlu0 %v603, 16
      %v921 = vpop.permute.xlu0 %920
      %922 = vrot.lane.b32.xlu0 %v606, 16
      %v923 = vpop.permute.xlu0 %922
      %924 = vrot.lane.b32.xlu0 %v611, 16
      %v925 = vpop.permute.xlu0 %924
      %926 = vrot.lane.b32.xlu0 %v614, 16
      %v927 = vpop.permute.xlu0 %926
      %928 = vrot.lane.b32.xlu0 %v619, 16
      %v929 = vpop.permute.xlu0 %928
      %930 = vrot.lane.b32.xlu0 %v622, 16
      %v931 = vpop.permute.xlu0 %930
      %932 = vrot.lane.b32.xlu0 %v627, 16
      %v933 = vpop.permute.xlu0 %932
      %934 = vrot.lane.b32.xlu0 %v630, 16
      %v935 = vpop.permute.xlu0 %934
      %936 = vrot.lane.b32.xlu0 %v635, 16
      %v937 = vpop.permute.xlu0 %936
      %938 = vrot.lane.b32.xlu0 %v638, 16
      %v939 = vpop.permute.xlu0 %938
      %940 = vrot.lane.b32.xlu0 %v643, 16
      %v941 = vpop.permute.xlu0 %940
      %942 = vrot.lane.b32.xlu0 %v646, 16
      %v943 = vpop.permute.xlu0 %942
      %944 = vrot.lane.b32.xlu0 %v651, 16
      %v945 = vpop.permute.xlu0 %944
      %946 = vrot.lane.b32.xlu0 %v654, 16
      %v947 = vpop.permute.xlu0 %946
      %948 = vrot.lane.b32.xlu0 %v659, 16
      %v949 = vpop.permute.xlu0 %948
      %950 = vrot.lane.b32.xlu0 %v662, 16
      %v951 = vpop.permute.xlu0 %950
      %v952 = vmul.f32 %v454, %v873
      %v953 = vmul.f32 %v458, %v875
      %v954 = vmul.f32 %v464, %v877
      %v955 = vmul.f32 %v468, %v879
      %v956 = vmul.f32 %v474, %v881
      %v957 = vmul.f32 %v478, %v883
      %v958 = vmul.f32 %v484, %v885
      %v959 = vmul.f32 %v488, %v887
      %v960 = vmul.f32 %v494, %v889
      %v961 = vmul.f32 %v498, %v891
      %v962 = vmul.f32 %v504, %v893
      %v963 = vmul.f32 %v508, %v895
      %v964 = vmul.f32 %v514, %v897
      %v965 = vmul.f32 %v518, %v899
      %v966 = vmul.f32 %v524, %v901
      %v967 = vmul.f32 %v528, %v903
      %v968 = vmul.f32 %v534, %v905
      %v969 = vmul.f32 %v538, %v907
      %v970 = vmul.f32 %v544, %v909
      %v971 = vmul.f32 %v548, %v911
      %v972 = vpack.c.bf16 %v953, %v952
      %v973 = vpack.c.bf16 %v955, %v954
      %v974 = vpack.c.bf16 %v957, %v956
      %v975 = vpack.c.bf16 %v959, %v958
      %v976 = vpack.c.bf16 %v961, %v960
      %v977 = vpack.c.bf16 %v963, %v962
      %v978 = vpack.c.bf16 %v965, %v964
      %v979 = vpack.c.bf16 %v967, %v966
      %v980 = vpack.c.bf16 %v969, %v968
      %v981 = vpack.c.bf16 %v971, %v970
      %982 = vmatprep.subr.bf16.mxu0 0
      %983 = vmatpush1.bf16.msra.mxu0 %v743
      %984 = vmatprep.subr.bf16.mxu0 0
      %985 = vmatpush1.bf16.msra.mxu0 %v744
      %986 = vmatprep.subr.bf16.mxu0 0
      %987 = vmatpush1.bf16.msra.mxu0 %v745
      %988 = vmatprep.subr.bf16.mxu0 0
      %989 = vmatpush1.bf16.msra.mxu0 %v746
      %990 = vmatprep.subr.bf16.mxu0 0
      %991 = vmatpush1.bf16.msra.mxu0 %v747
      %992 = vmatprep.subr.bf16.mxu0 0
      %993 = vmatpush1.bf16.msra.mxu0 %v748
      %994 = vmatprep.subr.bf16.mxu0 0
      %995 = vmatpush1.bf16.msra.mxu0 %v749
      %996 = vmatprep.subr.bf16.mxu0 0
      %997 = vmatpush1.bf16.msra.mxu0 %v750
      %998 = vmatprep.subr.bf16.mxu0 0
      %999 = vmatpush1.bf16.msra.mxu0 0
      %1000 = vmatprep.subr.bf16.mxu0 0
      %1001 = vmatpush1.bf16.msra.mxu0 0
      %1002 = vmatprep.subr.bf16.mxu0 0
      %1003 = vmatpush1.bf16.msra.mxu0 0
      %1004 = vmatprep.subr.bf16.mxu0 0
      %1005 = vmatpush1.bf16.msra.mxu0 0
      %1006 = vmatprep.subr.bf16.mxu0 0
      %1007 = vmatpush1.bf16.msra.mxu0 0
      %1008 = vmatprep.subr.bf16.mxu0 0
      %1009 = vmatpush1.bf16.msra.mxu0 0
      %1010 = vmatprep.subr.bf16.mxu0 0
      %1011 = vmatpush1.bf16.msra.mxu0 0
      %1012 = vmatprep.subr.bf16.mxu0 0
      %1013 = vmatpush1.bf16.msra.mxu0 0
      %1014 = vmatprep.mubr.bf16.mxu0 0
      %1015 = vmatmul.mubr.bf16.gmra.mrb[0].mxu0 %v972
      %v1016 = vpop.f32.mrb[0].mxu0
      %v1017 = vadd.f32 0.0, %v1016
      %v1018 = vpop.f32.mrb[0].mxu0
      %v1019 = vpop.f32.mrb[0].mxu0
      %v1020 = vadd.f32 0.0, %v1019
      %v1021 = vpop.f32.mrb[0].mxu0
      %1022 = vmatprep.mubr.bf16.mxu0 0
      %1023 = vmatmul.mubr.bf16.gmra.mrb[0].mxu0 %v973
      %v1024 = vpop.f32.mrb[0].mxu0
      %v1025 = vadd.f32 0.0, %v1024
      %v1026 = vpop.f32.mrb[0].mxu0
      %v1027 = vpop.f32.mrb[0].mxu0
      %v1028 = vadd.f32 0.0, %v1027
      %v1029 = vpop.f32.mrb[0].mxu0
      %1030 = vmatprep.mubr.bf16.mxu0 0
      %1031 = vmatmul.mubr.bf16.gmra.mrb[0].mxu0 %v974
      %v1032 = vpop.f32.mrb[0].mxu0
      %v1033 = vadd.f32 0.0, %v1032
      %v1034 = vpop.f32.mrb[0].mxu0
      %v1035 = vpop.f32.mrb[0].mxu0
      %v1036 = vadd.f32 0.0, %v1035
      %v1037 = vpop.f32.mrb[0].mxu0
      %1038 = vmatprep.mubr.bf16.mxu0 0
      %1039 = vmatmul.mubr.bf16.gmra.mrb[0].mxu0 %v975
      %v1040 = vpop.f32.mrb[0].mxu0
      %v1041 = vadd.f32 0.0, %v1040
      %v1042 = vpop.f32.mrb[0].mxu0
      %v1043 = vpop.f32.mrb[0].mxu0
      %v1044 = vadd.f32 0.0, %v1043
      %v1045 = vpop.f32.mrb[0].mxu0
      %1046 = vmatprep.mubr.bf16.mxu0 0
      %1047 = vmatmul.mubr.bf16.gmra.mrb[0].mxu0 %v976
      %v1048 = vpop.f32.mrb[0].mxu0
      %v1049 = vadd.f32 0.0, %v1048
      %v1050 = vpop.f32.mrb[0].mxu0
      %v1051 = vpop.f32.mrb[0].mxu0
      %v1052 = vadd.f32 0.0, %v1051
      %v1053 = vpop.f32.mrb[0].mxu0
      %1054 = vmatprep.mubr.bf16.mxu0 0
      %1055 = vmatmul.mubr.bf16.gmra.mrb[0].mxu0 %v977
      %v1056 = vpop.f32.mrb[0].mxu0
      %v1057 = vadd.f32 0.0, %v1056
      %v1058 = vpop.f32.mrb[0].mxu0
      %v1059 = vpop.f32.mrb[0].mxu0
      %v1060 = vadd.f32 0.0, %v1059
      %v1061 = vpop.f32.mrb[0].mxu0
      %1062 = vmatprep.mubr.bf16.mxu0 0
      %1063 = vmatmul.mubr.bf16.gmra.mrb[0].mxu0 %v978
      %v1064 = vpop.f32.mrb[0].mxu0
      %v1065 = vadd.f32 0.0, %v1064
      %v1066 = vpop.f32.mrb[0].mxu0
      %v1067 = vpop.f32.mrb[0].mxu0
      %v1068 = vadd.f32 0.0, %v1067
      %v1069 = vpop.f32.mrb[0].mxu0
      %1070 = vmatprep.mubr.bf16.mxu0 0
      %1071 = vmatmul.mubr.bf16.gmra.mrb[0].mxu0 %v979
      %v1072 = vpop.f32.mrb[0].mxu0
      %v1073 = vadd.f32 0.0, %v1072
      %v1074 = vpop.f32.mrb[0].mxu0
      %v1075 = vpop.f32.mrb[0].mxu0
      %v1076 = vadd.f32 0.0, %v1075
      %v1077 = vpop.f32.mrb[0].mxu0
      %1078 = vmatprep.mubr.bf16.mxu0 0
      %1079 = vmatmul.mubr.bf16.gmra.mrb[0].mxu0 %v980
      %v1080 = vpop.f32.mrb[0].mxu0
      %v1081 = vadd.f32 0.0, %v1080
      %v1082 = vpop.f32.mrb[0].mxu0
      %v1083 = vpop.f32.mrb[0].mxu0
      %v1084 = vadd.f32 0.0, %v1083
      %v1085 = vpop.f32.mrb[0].mxu0
      %1086 = vmatprep.mubr.bf16.mxu0 0
      %1087 = vmatmul.mubr.bf16.gmra.mrb[0].mxu0 %v981
      %v1088 = vpop.f32.mrb[0].mxu0
      %v1089 = vadd.f32 0.0, %v1088
      %v1090 = vpop.f32.mrb[0].mxu0
      %v1091 = vpop.f32.mrb[0].mxu0
      %v1092 = vadd.f32 0.0, %v1091
      %v1093 = vpop.f32.mrb[0].mxu0
      %1094 = vdwg.mxu0
      %1095 = vrot.lane.b32.xlu0 %v456, 32
      %v1096 = vpop.permute.xlu0 %1095
      %1097 = vrot.lane.b32.xlu0 %v460, 32
      %v1098 = vpop.permute.xlu0 %1097
      %1099 = vrot.lane.b32.xlu0 %v466, 32
      %v1100 = vpop.permute.xlu0 %1099
      %1101 = vrot.lane.b32.xlu0 %v470, 32
      %v1102 = vpop.permute.xlu0 %1101
      %1103 = vrot.lane.b32.xlu0 %v476, 32
      %v1104 = vpop.permute.xlu0 %1103
      %1105 = vrot.lane.b32.xlu0 %v480, 32
      %v1106 = vpop.permute.xlu0 %1105
      %1107 = vrot.lane.b32.xlu0 %v486, 32
      %v1108 = vpop.permute.xlu0 %1107
      %1109 = vrot.lane.b32.xlu0 %v490, 32
      %v1110 = vpop.permute.xlu0 %1109
      %1111 = vrot.lane.b32.xlu0 %v496, 32
      %v1112 = vpop.permute.xlu0 %1111
      %1113 = vrot.lane.b32.xlu0 %v500, 32
      %v1114 = vpop.permute.xlu0 %1113
      %1115 = vrot.lane.b32.xlu0 %v506, 32
      %v1116 = vpop.permute.xlu0 %1115
      %1117 = vrot.lane.b32.xlu0 %v510, 32
      %v1118 = vpop.permute.xlu0 %1117
      %1119 = vrot.lane.b32.xlu0 %v516, 32
      %v1120 = vpop.permute.xlu0 %1119
      %1121 = vrot.lane.b32.xlu0 %v520, 32
      %v1122 = vpop.permute.xlu0 %1121
      %1123 = vrot.lane.b32.xlu0 %v526, 32
      %v1124 = vpop.permute.xlu0 %1123
      %1125 = vrot.lane.b32.xlu0 %v530, 32
      %v1126 = vpop.permute.xlu0 %1125
      %1127 = vrot.lane.b32.xlu0 %v536, 32
      %v1128 = vpop.permute.xlu0 %1127
      %1129 = vrot.lane.b32.xlu0 %v540, 32
      %v1130 = vpop.permute.xlu0 %1129
      %1131 = vrot.lane.b32.xlu0 %v546, 32
      %v1132 = vpop.permute.xlu0 %1131
      %1133 = vrot.lane.b32.xlu0 %v550, 32
      %v1134 = vpop.permute.xlu0 %1133
      %1135 = vrot.lane.b32.xlu0 %v587, 32
      %v1136 = vpop.permute.xlu0 %1135
      %1137 = vrot.lane.b32.xlu0 %v590, 32
      %v1138 = vpop.permute.xlu0 %1137
      %1139 = vrot.lane.b32.xlu0 %v595, 32
      %v1140 = vpop.permute.xlu0 %1139
      %1141 = vrot.lane.b32.xlu0 %v598, 32
      %v1142 = vpop.permute.xlu0 %1141
      %1143 = vrot.lane.b32.xlu0 %v603, 32
      %v1144 = vpop.permute.xlu0 %1143
      %1145 = vrot.lane.b32.xlu0 %v606, 32
      %v1146 = vpop.permute.xlu0 %1145
      %1147 = vrot.lane.b32.xlu0 %v611, 32
      %v1148 = vpop.permute.xlu0 %1147
      %1149 = vrot.lane.b32.xlu0 %v614, 32
      %v1150 = vpop.permute.xlu0 %1149
      %1151 = vrot.lane.b32.xlu0 %v619, 32
      %v1152 = vpop.permute.xlu0 %1151
      %1153 = vrot.lane.b32.xlu0 %v622, 32
      %v1154 = vpop.permute.xlu0 %1153
      %1155 = vrot.lane.b32.xlu0 %v627, 32
      %v1156 = vpop.permute.xlu0 %1155
      %1157 = vrot.lane.b32.xlu0 %v630, 32
      %v1158 = vpop.permute.xlu0 %1157
      %1159 = vrot.lane.b32.xlu0 %v635, 32
      %v1160 = vpop.permute.xlu0 %1159
      %1161 = vrot.lane.b32.xlu0 %v638, 32
      %v1162 = vpop.permute.xlu0 %1161
      %1163 = vrot.lane.b32.xlu0 %v643, 32
      %v1164 = vpop.permute.xlu0 %1163
      %1165 = vrot.lane.b32.xlu0 %v646, 32
      %v1166 = vpop.permute.xlu0 %1165
      %1167 = vrot.lane.b32.xlu0 %v651, 32
      %v1168 = vpop.permute.xlu0 %1167
      %1169 = vrot.lane.b32.xlu0 %v654, 32
      %v1170 = vpop.permute.xlu0 %1169
      %1171 = vrot.lane.b32.xlu0 %v659, 32
      %v1172 = vpop.permute.xlu0 %1171
      %1173 = vrot.lane.b32.xlu0 %v662, 32
      %v1174 = vpop.permute.xlu0 %1173
      %v1175 = vmul.f32 %v454, %v1096
      %v1176 = vmul.f32 %v458, %v1098
      %v1177 = vmul.f32 %v464, %v1100
      %v1178 = vmul.f32 %v468, %v1102
      %v1179 = vmul.f32 %v474, %v1104
      %v1180 = vmul.f32 %v478, %v1106
      %v1181 = vmul.f32 %v484, %v1108
      %v1182 = vmul.f32 %v488, %v1110
      %v1183 = vmul.f32 %v494, %v1112
      %v1184 = vmul.f32 %v498, %v1114
      %v1185 = vmul.f32 %v504, %v1116
      %v1186 = vmul.f32 %v508, %v1118
      %v1187 = vmul.f32 %v514, %v1120
      %v1188 = vmul.f32 %v518, %v1122
      %v1189 = vmul.f32 %v524, %v1124
      %v1190 = vmul.f32 %v528, %v1126
      %v1191 = vmul.f32 %v534, %v1128
      %v1192 = vmul.f32 %v538, %v1130
      %v1193 = vmul.f32 %v544, %v1132
      %v1194 = vmul.f32 %v548, %v1134
      %v1195 = vpack.c.bf16 %v1176, %v1175
      %v1196 = vpack.c.bf16 %v1178, %v1177
      %v1197 = vpack.c.bf16 %v1180, %v1179
      %v1198 = vpack.c.bf16 %v1182, %v1181
      %v1199 = vpack.c.bf16 %v1184, %v1183
      %v1200 = vpack.c.bf16 %v1186, %v1185
      %v1201 = vpack.c.bf16 %v1188, %v1187
      %v1202 = vpack.c.bf16 %v1190, %v1189
      %v1203 = vpack.c.bf16 %v1192, %v1191
      %v1204 = vpack.c.bf16 %v1194, %v1193
      %1205 = vmatprep.subr.bf16.mxu0 0
      %1206 = vmatpush1.bf16.msra.mxu0 %v743
      %1207 = vmatprep.subr.bf16.mxu0 0
      %1208 = vmatpush1.bf16.msra.mxu0 %v744
      %1209 = vmatprep.subr.bf16.mxu0 0
      %1210 = vmatpush1.bf16.msra.mxu0 %v745
      %1211 = vmatprep.subr.bf16.mxu0 0
      %1212 = vmatpush1.bf16.msra.mxu0 %v746
      %1213 = vmatprep.subr.bf16.mxu0 0
      %1214 = vmatpush1.bf16.msra.mxu0 %v747
      %1215 = vmatprep.subr.bf16.mxu0 0
      %1216 = vmatpush1.bf16.msra.mxu0 %v748
      %1217 = vmatprep.subr.bf16.mxu0 0
      %1218 = vmatpush1.bf16.msra.mxu0 %v749
      %1219 = vmatprep.subr.bf16.mxu0 0
      %1220 = vmatpush1.bf16.msra.mxu0 %v750
      %1221 = vmatprep.subr.bf16.mxu0 0
      %1222 = vmatpush1.bf16.msra.mxu0 0
      %1223 = vmatprep.subr.bf16.mxu0 0
      %1224 = vmatpush1.bf16.msra.mxu0 0
      %1225 = vmatprep.subr.bf16.mxu0 0
      %1226 = vmatpush1.bf16.msra.mxu0 0
      %1227 = vmatprep.subr.bf16.mxu0 0
      %1228 = vmatpush1.bf16.msra.mxu0 0
      %1229 = vmatprep.subr.bf16.mxu0 0
      %1230 = vmatpush1.bf16.msra.mxu0 0
      %1231 = vmatprep.subr.bf16.mxu0 0
      %1232 = vmatpush1.bf16.msra.mxu0 0
      %1233 = vmatprep.subr.bf16.mxu0 0
      %1234 = vmatpush1.bf16.msra.mxu0 0
      %1235 = vmatprep.subr.bf16.mxu0 0
      %1236 = vmatpush1.bf16.msra.mxu0 0
      %1237 = vmatprep.mubr.bf16.mxu0 0
      %1238 = vmatmul.mubr.bf16.gmra.mrb[0].mxu0 %v1195
      %v1239 = vpop.f32.mrb[0].mxu0
      %v1240 = vadd.f32 0.0, %v1239
      %v1241 = vpop.f32.mrb[0].mxu0
      %v1242 = vpop.f32.mrb[0].mxu0
      %v1243 = vadd.f32 0.0, %v1242
      %v1244 = vpop.f32.mrb[0].mxu0
      %1245 = vmatprep.mubr.bf16.mxu0 0
      %1246 = vmatmul.mubr.bf16.gmra.mrb[0].mxu0 %v1196
      %v1247 = vpop.f32.mrb[0].mxu0
      %v1248 = vadd.f32 0.0, %v1247
      %v1249 = vpop.f32.mrb[0].mxu0
      %v1250 = vpop.f32.mrb[0].mxu0
      %v1251 = vadd.f32 0.0, %v1250
      %v1252 = vpop.f32.mrb[0].mxu0
      %1253 = vmatprep.mubr.bf16.mxu0 0
      %1254 = vmatmul.mubr.bf16.gmra.mrb[0].mxu0 %v1197
      %v1255 = vpop.f32.mrb[0].mxu0
      %v1256 = vadd.f32 0.0, %v1255
      %v1257 = vpop.f32.mrb[0].mxu0
      %v1258 = vpop.f32.mrb[0].mxu0
      %v1259 = vadd.f32 0.0, %v1258
      %v1260 = vpop.f32.mrb[0].mxu0
      %1261 = vmatprep.mubr.bf16.mxu0 0
      %1262 = vmatmul.mubr.bf16.gmra.mrb[0].mxu0 %v1198
      %v1263 = vpop.f32.mrb[0].mxu0
      %v1264 = vadd.f32 0.0, %v1263
      %v1265 = vpop.f32.mrb[0].mxu0
      %v1266 = vpop.f32.mrb[0].mxu0
      %v1267 = vadd.f32 0.0, %v1266
      %v1268 = vpop.f32.mrb[0].mxu0
      %1269 = vmatprep.mubr.bf16.mxu0 0
      %1270 = vmatmul.mubr.bf16.gmra.mrb[0].mxu0 %v1199
      %v1271 = vpop.f32.mrb[0].mxu0
      %v1272 = vadd.f32 0.0, %v1271
      %v1273 = vpop.f32.mrb[0].mxu0
      %v1274 = vpop.f32.mrb[0].mxu0
      %v1275 = vadd.f32 0.0, %v1274
      %v1276 = vpop.f32.mrb[0].mxu0
      %1277 = vmatprep.mubr.bf16.mxu0 0
      %1278 = vmatmul.mubr.bf16.gmra.mrb[0].mxu0 %v1200
      %v1279 = vpop.f32.mrb[0].mxu0
      %v1280 = vadd.f32 0.0, %v1279
      %v1281 = vpop.f32.mrb[0].mxu0
      %v1282 = vpop.f32.mrb[0].mxu0
      %v1283 = vadd.f32 0.0, %v1282
      %v1284 = vpop.f32.mrb[0].mxu0
      %1285 = vmatprep.mubr.bf16.mxu0 0
      %1286 = vmatmul.mubr.bf16.gmra.mrb[0].mxu0 %v1201
      %v1287 = vpop.f32.mrb[0].mxu0
      %v1288 = vadd.f32 0.0, %v1287
      %v1289 = vpop.f32.mrb[0].mxu0
      %v1290 = vpop.f32.mrb[0].mxu0
      %v1291 = vadd.f32 0.0, %v1290
      %v1292 = vpop.f32.mrb[0].mxu0
      %1293 = vmatprep.mubr.bf16.mxu0 0
      %1294 = vmatmul.mubr.bf16.gmra.mrb[0].mxu0 %v1202
      %v1295 = vpop.f32.mrb[0].mxu0
      %v1296 = vadd.f32 0.0, %v1295
      %v1297 = vpop.f32.mrb[0].mxu0
      %v1298 = vpop.f32.mrb[0].mxu0
      %v1299 = vadd.f32 0.0, %v1298
      %v1300 = vpop.f32.mrb[0].mxu0
      %1301 = vmatprep.mubr.bf16.mxu0 0
      %1302 = vmatmul.mubr.bf16.gmra.mrb[0].mxu0 %v1203
      %v1303 = vpop.f32.mrb[0].mxu0
      %v1304 = vadd.f32 0.0, %v1303
      %v1305 = vpop.f32.mrb[0].mxu0
      %v1306 = vpop.f32.mrb[0].mxu0
      %v1307 = vadd.f32 0.0, %v1306
      %v1308 = vpop.f32.mrb[0].mxu0
      %1309 = vmatprep.mubr.bf16.mxu0 0
      %1310 = vmatmul.mubr.bf16.gmra.mrb[0].mxu0 %v1204
      %v1311 = vpop.f32.mrb[0].mxu0
      %v1312 = vadd.f32 0.0, %v1311
      %v1313 = vpop.f32.mrb[0].mxu0
      %v1314 = vpop.f32.mrb[0].mxu0
      %v1315 = vadd.f32 0.0, %v1314
      %v1316 = vpop.f32.mrb[0].mxu0
      %1317 = vdwg.mxu0
      %1318 = vrot.lane.b32.xlu0 %v456, 48
      %v1319 = vpop.permute.xlu0 %1318
      %1320 = vrot.lane.b32.xlu0 %v460, 48
      %v1321 = vpop.permute.xlu0 %1320
      %1322 = vrot.lane.b32.xlu0 %v466, 48
      %v1323 = vpop.permute.xlu0 %1322
      %1324 = vrot.lane.b32.xlu0 %v470, 48
      %v1325 = vpop.permute.xlu0 %1324
      %1326 = vrot.lane.b32.xlu0 %v476, 48
      %v1327 = vpop.permute.xlu0 %1326
      %1328 = vrot.lane.b32.xlu0 %v480, 48
      %v1329 = vpop.permute.xlu0 %1328
      %1330 = vrot.lane.b32.xlu0 %v486, 48
      %v1331 = vpop.permute.xlu0 %1330
      %1332 = vrot.lane.b32.xlu0 %v490, 48
      %v1333 = vpop.permute.xlu0 %1332
      %1334 = vrot.lane.b32.xlu0 %v496, 48
      %v1335 = vpop.permute.xlu0 %1334
      %1336 = vrot.lane.b32.xlu0 %v500, 48
      %v1337 = vpop.permute.xlu0 %1336
      %1338 = vrot.lane.b32.xlu0 %v506, 48
      %v1339 = vpop.permute.xlu0 %1338
      %1340 = vrot.lane.b32.xlu0 %v510, 48
      %v1341 = vpop.permute.xlu0 %1340
      %1342 = vrot.lane.b32.xlu0 %v516, 48
      %v1343 = vpop.permute.xlu0 %1342
      %1344 = vrot.lane.b32.xlu0 %v520, 48
      %v1345 = vpop.permute.xlu0 %1344
      %1346 = vrot.lane.b32.xlu0 %v526, 48
      %v1347 = vpop.permute.xlu0 %1346
      %1348 = vrot.lane.b32.xlu0 %v530, 48
      %v1349 = vpop.permute.xlu0 %1348
      %1350 = vrot.lane.b32.xlu0 %v536, 48
      %v1351 = vpop.permute.xlu0 %1350
      %1352 = vrot.lane.b32.xlu0 %v540, 48
      %v1353 = vpop.permute.xlu0 %1352
      %1354 = vrot.lane.b32.xlu0 %v546, 48
      %v1355 = vpop.permute.xlu0 %1354
      %1356 = vrot.lane.b32.xlu0 %v550, 48
      %v1357 = vpop.permute.xlu0 %1356
      %1358 = vrot.lane.b32.xlu0 %v587, 48
      %v1359 = vpop.permute.xlu0 %1358
      %1360 = vrot.lane.b32.xlu0 %v590, 48
      %v1361 = vpop.permute.xlu0 %1360
      %1362 = vrot.lane.b32.xlu0 %v595, 48
      %v1363 = vpop.permute.xlu0 %1362
      %1364 = vrot.lane.b32.xlu0 %v598, 48
      %v1365 = vpop.permute.xlu0 %1364
      %1366 = vrot.lane.b32.xlu0 %v603, 48
      %v1367 = vpop.permute.xlu0 %1366
      %1368 = vrot.lane.b32.xlu0 %v606, 48
      %v1369 = vpop.permute.xlu0 %1368
      %1370 = vrot.lane.b32.xlu0 %v611, 48
      %v1371 = vpop.permute.xlu0 %1370
      %1372 = vrot.lane.b32.xlu0 %v614, 48
      %v1373 = vpop.permute.xlu0 %1372
      %1374 = vrot.lane.b32.xlu0 %v619, 48
      %v1375 = vpop.permute.xlu0 %1374
      %1376 = vrot.lane.b32.xlu0 %v622, 48
      %v1377 = vpop.permute.xlu0 %1376
      %1378 = vrot.lane.b32.xlu0 %v627, 48
      %v1379 = vpop.permute.xlu0 %1378
      %1380 = vrot.lane.b32.xlu0 %v630, 48
      %v1381 = vpop.permute.xlu0 %1380
      %1382 = vrot.lane.b32.xlu0 %v635, 48
      %v1383 = vpop.permute.xlu0 %1382
      %1384 = vrot.lane.b32.xlu0 %v638, 48
      %v1385 = vpop.permute.xlu0 %1384
      %1386 = vrot.lane.b32.xlu0 %v643, 48
      %v1387 = vpop.permute.xlu0 %1386
      %1388 = vrot.lane.b32.xlu0 %v646, 48
      %v1389 = vpop.permute.xlu0 %1388
      %1390 = vrot.lane.b32.xlu0 %v651, 48
      %v1391 = vpop.permute.xlu0 %1390
      %1392 = vrot.lane.b32.xlu0 %v654, 48
      %v1393 = vpop.permute.xlu0 %1392
      %1394 = vrot.lane.b32.xlu0 %v659, 48
      %v1395 = vpop.permute.xlu0 %1394
      %1396 = vrot.lane.b32.xlu0 %v662, 48
      %v1397 = vpop.permute.xlu0 %1396
      %v1398 = vmul.f32 %v454, %v1319
      %v1399 = vmul.f32 %v458, %v1321
      %v1400 = vmul.f32 %v464, %v1323
      %v1401 = vmul.f32 %v468, %v1325
      %v1402 = vmul.f32 %v474, %v1327
      %v1403 = vmul.f32 %v478, %v1329
      %v1404 = vmul.f32 %v484, %v1331
      %v1405 = vmul.f32 %v488, %v1333
      %v1406 = vmul.f32 %v494, %v1335
      %v1407 = vmul.f32 %v498, %v1337
      %v1408 = vmul.f32 %v504, %v1339
      %v1409 = vmul.f32 %v508, %v1341
      %v1410 = vmul.f32 %v514, %v1343
      %v1411 = vmul.f32 %v518, %v1345
      %v1412 = vmul.f32 %v524, %v1347
      %v1413 = vmul.f32 %v528, %v1349
      %v1414 = vmul.f32 %v534, %v1351
      %v1415 = vmul.f32 %v538, %v1353
      %v1416 = vmul.f32 %v544, %v1355
      %v1417 = vmul.f32 %v548, %v1357
      %v1418 = vpack.c.bf16 %v1399, %v1398
      %v1419 = vpack.c.bf16 %v1401, %v1400
      %v1420 = vpack.c.bf16 %v1403, %v1402
      %v1421 = vpack.c.bf16 %v1405, %v1404
      %v1422 = vpack.c.bf16 %v1407, %v1406
      %v1423 = vpack.c.bf16 %v1409, %v1408
      %v1424 = vpack.c.bf16 %v1411, %v1410
      %v1425 = vpack.c.bf16 %v1413, %v1412
      %v1426 = vpack.c.bf16 %v1415, %v1414
      %v1427 = vpack.c.bf16 %v1417, %v1416
      %1428 = vmatprep.subr.bf16.mxu0 0
      %1429 = vmatpush1.bf16.msra.mxu0 %v743
      %1430 = vmatprep.subr.bf16.mxu0 0
      %1431 = vmatpush1.bf16.msra.mxu0 %v744
      %1432 = vmatprep.subr.bf16.mxu0 0
      %1433 = vmatpush1.bf16.msra.mxu0 %v745
      %1434 = vmatprep.subr.bf16.mxu0 0
      %1435 = vmatpush1.bf16.msra.mxu0 %v746
      %1436 = vmatprep.subr.bf16.mxu0 0
      %1437 = vmatpush1.bf16.msra.mxu0 %v747
      %1438 = vmatprep.subr.bf16.mxu0 0
      %1439 = vmatpush1.bf16.msra.mxu0 %v748
      %1440 = vmatprep.subr.bf16.mxu0 0
      %1441 = vmatpush1.bf16.msra.mxu0 %v749
      %1442 = vmatprep.subr.bf16.mxu0 0
      %1443 = vmatpush1.bf16.msra.mxu0 %v750
      %1444 = vmatprep.subr.bf16.mxu0 0
      %1445 = vmatpush1.bf16.msra.mxu0 0
      %1446 = vmatprep.subr.bf16.mxu0 0
      %1447 = vmatpush1.bf16.msra.mxu0 0
      %1448 = vmatprep.subr.bf16.mxu0 0
      %1449 = vmatpush1.bf16.msra.mxu0 0
      %1450 = vmatprep.subr.bf16.mxu0 0
      %1451 = vmatpush1.bf16.msra.mxu0 0
      %1452 = vmatprep.subr.bf16.mxu0 0
      %1453 = vmatpush1.bf16.msra.mxu0 0
      %1454 = vmatprep.subr.bf16.mxu0 0
      %1455 = vmatpush1.bf16.msra.mxu0 0
      %1456 = vmatprep.subr.bf16.mxu0 0
      %1457 = vmatpush1.bf16.msra.mxu0 0
      %1458 = vmatprep.subr.bf16.mxu0 0
      %1459 = vmatpush1.bf16.msra.mxu0 0
      %1460 = vmatprep.mubr.bf16.mxu0 0
      %1461 = vmatmul.mubr.bf16.gmra.mrb[0].mxu0 %v1418
      %v1462 = vpop.f32.mrb[0].mxu0
      %v1463 = vadd.f32 0.0, %v1462
      %v1464 = vpop.f32.mrb[0].mxu0
      %v1465 = vpop.f32.mrb[0].mxu0
      %v1466 = vadd.f32 0.0, %v1465
      %v1467 = vpop.f32.mrb[0].mxu0
      %1468 = vmatprep.mubr.bf16.mxu0 0
      %1469 = vmatmul.mubr.bf16.gmra.mrb[0].mxu0 %v1419
      %v1470 = vpop.f32.mrb[0].mxu0
      %v1471 = vadd.f32 0.0, %v1470
      %v1472 = vpop.f32.mrb[0].mxu0
      %v1473 = vpop.f32.mrb[0].mxu0
      %v1474 = vadd.f32 0.0, %v1473
      %v1475 = vpop.f32.mrb[0].mxu0
      %1476 = vmatprep.mubr.bf16.mxu0 0
      %1477 = vmatmul.mubr.bf16.gmra.mrb[0].mxu0 %v1420
      %v1478 = vpop.f32.mrb[0].mxu0
      %v1479 = vadd.f32 0.0, %v1478
      %v1480 = vpop.f32.mrb[0].mxu0
      %v1481 = vpop.f32.mrb[0].mxu0
      %v1482 = vadd.f32 0.0, %v1481
      %v1483 = vpop.f32.mrb[0].mxu0
      %1484 = vmatprep.mubr.bf16.mxu0 0
      %1485 = vmatmul.mubr.bf16.gmra.mrb[0].mxu0 %v1421
      %v1486 = vpop.f32.mrb[0].mxu0
      %v1487 = vadd.f32 0.0, %v1486
      %v1488 = vpop.f32.mrb[0].mxu0
      %v1489 = vpop.f32.mrb[0].mxu0
      %v1490 = vadd.f32 0.0, %v1489
      %v1491 = vpop.f32.mrb[0].mxu0
      %1492 = vmatprep.mubr.bf16.mxu0 0
      %1493 = vmatmul.mubr.bf16.gmra.mrb[0].mxu0 %v1422
      %v1494 = vpop.f32.mrb[0].mxu0
      %v1495 = vadd.f32 0.0, %v1494
      %v1496 = vpop.f32.mrb[0].mxu0
      %v1497 = vpop.f32.mrb[0].mxu0
      %v1498 = vadd.f32 0.0, %v1497
      %v1499 = vpop.f32.mrb[0].mxu0
      %1500 = vmatprep.mubr.bf16.mxu0 0
      %1501 = vmatmul.mubr.bf16.gmra.mrb[0].mxu0 %v1423
      %v1502 = vpop.f32.mrb[0].mxu0
      %v1503 = vadd.f32 0.0, %v1502
      %v1504 = vpop.f32.mrb[0].mxu0
      %v1505 = vpop.f32.mrb[0].mxu0
      %v1506 = vadd.f32 0.0, %v1505
      %v1507 = vpop.f32.mrb[0].mxu0
      %1508 = vmatprep.mubr.bf16.mxu0 0
      %1509 = vmatmul.mubr.bf16.gmra.mrb[0].mxu0 %v1424
      %v1510 = vpop.f32.mrb[0].mxu0
      %v1511 = vadd.f32 0.0, %v1510
      %v1512 = vpop.f32.mrb[0].mxu0
      %v1513 = vpop.f32.mrb[0].mxu0
      %v1514 = vadd.f32 0.0, %v1513
      %v1515 = vpop.f32.mrb[0].mxu0
      %1516 = vmatprep.mubr.bf16.mxu0 0
      %1517 = vmatmul.mubr.bf16.gmra.mrb[0].mxu0 %v1425
      %v1518 = vpop.f32.mrb[0].mxu0
      %v1519 = vadd.f32 0.0, %v1518
      %v1520 = vpop.f32.mrb[0].mxu0
      %v1521 = vpop.f32.mrb[0].mxu0
      %v1522 = vadd.f32 0.0, %v1521
      %v1523 = vpop.f32.mrb[0].mxu0
      %1524 = vmatprep.mubr.bf16.mxu0 0
      %1525 = vmatmul.mubr.bf16.gmra.mrb[0].mxu0 %v1426
      %v1526 = vpop.f32.mrb[0].mxu0
      %v1527 = vadd.f32 0.0, %v1526
      %v1528 = vpop.f32.mrb[0].mxu0
      %v1529 = vpop.f32.mrb[0].mxu0
      %v1530 = vadd.f32 0.0, %v1529
      %v1531 = vpop.f32.mrb[0].mxu0
      %1532 = vmatprep.mubr.bf16.mxu0 0
      %1533 = vmatmul.mubr.bf16.gmra.mrb[0].mxu0 %v1427
      %v1534 = vpop.f32.mrb[0].mxu0
      %v1535 = vadd.f32 0.0, %v1534
      %v1536 = vpop.f32.mrb[0].mxu0
      %v1537 = vpop.f32.mrb[0].mxu0
      %v1538 = vadd.f32 0.0, %v1537
      %v1539 = vpop.f32.mrb[0].mxu0
      %1540 = vdwg.mxu0
      %1541 = vrot.lane.b32.xlu0 %v456, 64
      %v1542 = vpop.permute.xlu0 %1541
      %1543 = vrot.lane.b32.xlu0 %v460, 64
      %v1544 = vpop.permute.xlu0 %1543
      %1545 = vrot.lane.b32.xlu0 %v466, 64
      %v1546 = vpop.permute.xlu0 %1545
      %1547 = vrot.lane.b32.xlu0 %v470, 64
      %v1548 = vpop.permute.xlu0 %1547
      %1549 = vrot.lane.b32.xlu0 %v476, 64
      %v1550 = vpop.permute.xlu0 %1549
      %1551 = vrot.lane.b32.xlu0 %v480, 64
      %v1552 = vpop.permute.xlu0 %1551
      %1553 = vrot.lane.b32.xlu0 %v486, 64
      %v1554 = vpop.permute.xlu0 %1553
      %1555 = vrot.lane.b32.xlu0 %v490, 64
      %v1556 = vpop.permute.xlu0 %1555
      %1557 = vrot.lane.b32.xlu0 %v496, 64
      %v1558 = vpop.permute.xlu0 %1557
      %1559 = vrot.lane.b32.xlu0 %v500, 64
      %v1560 = vpop.permute.xlu0 %1559
      %1561 = vrot.lane.b32.xlu0 %v506, 64
      %v1562 = vpop.permute.xlu0 %1561
      %1563 = vrot.lane.b32.xlu0 %v510, 64
      %v1564 = vpop.permute.xlu0 %1563
      %1565 = vrot.lane.b32.xlu0 %v516, 64
      %v1566 = vpop.permute.xlu0 %1565
      %1567 = vrot.lane.b32.xlu0 %v520, 64
      %v1568 = vpop.permute.xlu0 %1567
      %1569 = vrot.lane.b32.xlu0 %v526, 64
      %v1570 = vpop.permute.xlu0 %1569
      %1571 = vrot.lane.b32.xlu0 %v530, 64
      %v1572 = vpop.permute.xlu0 %1571
      %1573 = vrot.lane.b32.xlu0 %v536, 64
      %v1574 = vpop.permute.xlu0 %1573
      %1575 = vrot.lane.b32.xlu0 %v540, 64
      %v1576 = vpop.permute.xlu0 %1575
      %1577 = vrot.lane.b32.xlu0 %v546, 64
      %v1578 = vpop.permute.xlu0 %1577
      %1579 = vrot.lane.b32.xlu0 %v550, 64
      %v1580 = vpop.permute.xlu0 %1579
      %1581 = vrot.lane.b32.xlu0 %v587, 64
      %v1582 = vpop.permute.xlu0 %1581
      %1583 = vrot.lane.b32.xlu0 %v590, 64
      %v1584 = vpop.permute.xlu0 %1583
      %1585 = vrot.lane.b32.xlu0 %v595, 64
      %v1586 = vpop.permute.xlu0 %1585
      %1587 = vrot.lane.b32.xlu0 %v598, 64
      %v1588 = vpop.permute.xlu0 %1587
      %1589 = vrot.lane.b32.xlu0 %v603, 64
      %v1590 = vpop.permute.xlu0 %1589
      %1591 = vrot.lane.b32.xlu0 %v606, 64
      %v1592 = vpop.permute.xlu0 %1591
      %1593 = vrot.lane.b32.xlu0 %v611, 64
      %v1594 = vpop.permute.xlu0 %1593
      %1595 = vrot.lane.b32.xlu0 %v614, 64
      %v1596 = vpop.permute.xlu0 %1595
      %1597 = vrot.lane.b32.xlu0 %v619, 64
      %v1598 = vpop.permute.xlu0 %1597
      %1599 = vrot.lane.b32.xlu0 %v622, 64
      %v1600 = vpop.permute.xlu0 %1599
      %1601 = vrot.lane.b32.xlu0 %v627, 64
      %v1602 = vpop.permute.xlu0 %1601
      %1603 = vrot.lane.b32.xlu0 %v630, 64
      %v1604 = vpop.permute.xlu0 %1603
      %1605 = vrot.lane.b32.xlu0 %v635, 64
      %v1606 = vpop.permute.xlu0 %1605
      %1607 = vrot.lane.b32.xlu0 %v638, 64
      %v1608 = vpop.permute.xlu0 %1607
      %1609 = vrot.lane.b32.xlu0 %v643, 64
      %v1610 = vpop.permute.xlu0 %1609
      %1611 = vrot.lane.b32.xlu0 %v646, 64
      %v1612 = vpop.permute.xlu0 %1611
      %1613 = vrot.lane.b32.xlu0 %v651, 64
      %v1614 = vpop.permute.xlu0 %1613
      %1615 = vrot.lane.b32.xlu0 %v654, 64
      %v1616 = vpop.permute.xlu0 %1615
      %1617 = vrot.lane.b32.xlu0 %v659, 64
      %v1618 = vpop.permute.xlu0 %1617
      %1619 = vrot.lane.b32.xlu0 %v662, 64
      %v1620 = vpop.permute.xlu0 %1619
      %v1621 = vmul.f32 %v454, %v1542
      %v1622 = vmul.f32 %v458, %v1544
      %v1623 = vmul.f32 %v464, %v1546
      %v1624 = vmul.f32 %v468, %v1548
      %v1625 = vmul.f32 %v474, %v1550
      %v1626 = vmul.f32 %v478, %v1552
      %v1627 = vmul.f32 %v484, %v1554
      %v1628 = vmul.f32 %v488, %v1556
      %v1629 = vmul.f32 %v494, %v1558
      %v1630 = vmul.f32 %v498, %v1560
      %v1631 = vmul.f32 %v504, %v1562
      %v1632 = vmul.f32 %v508, %v1564
      %v1633 = vmul.f32 %v514, %v1566
      %v1634 = vmul.f32 %v518, %v1568
      %v1635 = vmul.f32 %v524, %v1570
      %v1636 = vmul.f32 %v528, %v1572
      %v1637 = vmul.f32 %v534, %v1574
      %v1638 = vmul.f32 %v538, %v1576
      %v1639 = vmul.f32 %v544, %v1578
      %v1640 = vmul.f32 %v548, %v1580
      %v1641 = vpack.c.bf16 %v1622, %v1621
      %v1642 = vpack.c.bf16 %v1624, %v1623
      %v1643 = vpack.c.bf16 %v1626, %v1625
      %v1644 = vpack.c.bf16 %v1628, %v1627
      %v1645 = vpack.c.bf16 %v1630, %v1629
      %v1646 = vpack.c.bf16 %v1632, %v1631
      %v1647 = vpack.c.bf16 %v1634, %v1633
      %v1648 = vpack.c.bf16 %v1636, %v1635
      %v1649 = vpack.c.bf16 %v1638, %v1637
      %v1650 = vpack.c.bf16 %v1640, %v1639
      %1651 = vmatprep.subr.bf16.mxu0 0
      %1652 = vmatpush1.bf16.msra.mxu0 %v743
      %1653 = vmatprep.subr.bf16.mxu0 0
      %1654 = vmatpush1.bf16.msra.mxu0 %v744
      %1655 = vmatprep.subr.bf16.mxu0 0
      %1656 = vmatpush1.bf16.msra.mxu0 %v745
      %1657 = vmatprep.subr.bf16.mxu0 0
      %1658 = vmatpush1.bf16.msra.mxu0 %v746
      %1659 = vmatprep.subr.bf16.mxu0 0
      %1660 = vmatpush1.bf16.msra.mxu0 %v747
      %1661 = vmatprep.subr.bf16.mxu0 0
      %1662 = vmatpush1.bf16.msra.mxu0 %v748
      %1663 = vmatprep.subr.bf16.mxu0 0
      %1664 = vmatpush1.bf16.msra.mxu0 %v749
      %1665 = vmatprep.subr.bf16.mxu0 0
      %1666 = vmatpush1.bf16.msra.mxu0 %v750
      %1667 = vmatprep.subr.bf16.mxu0 0
      %1668 = vmatpush1.bf16.msra.mxu0 0
      %1669 = vmatprep.subr.bf16.mxu0 0
      %1670 = vmatpush1.bf16.msra.mxu0 0
      %1671 = vmatprep.subr.bf16.mxu0 0
      %1672 = vmatpush1.bf16.msra.mxu0 0
      %1673 = vmatprep.subr.bf16.mxu0 0
      %1674 = vmatpush1.bf16.msra.mxu0 0
      %1675 = vmatprep.subr.bf16.mxu0 0
      %1676 = vmatpush1.bf16.msra.mxu0 0
      %1677 = vmatprep.subr.bf16.mxu0 0
      %1678 = vmatpush1.bf16.msra.mxu0 0
      %1679 = vmatprep.subr.bf16.mxu0 0
      %1680 = vmatpush1.bf16.msra.mxu0 0
      %1681 = vmatprep.subr.bf16.mxu0 0
      %1682 = vmatpush1.bf16.msra.mxu0 0
      %1683 = vmatprep.mubr.bf16.mxu0 0
      %1684 = vmatmul.mubr.bf16.gmra.mrb[0].mxu0 %v1641
      %v1685 = vpop.f32.mrb[0].mxu0
      %v1686 = vadd.f32 0.0, %v1685
      %v1687 = vpop.f32.mrb[0].mxu0
      %v1688 = vpop.f32.mrb[0].mxu0
      %v1689 = vadd.f32 0.0, %v1688
      %v1690 = vpop.f32.mrb[0].mxu0
      %1691 = vmatprep.mubr.bf16.mxu0 0
      %1692 = vmatmul.mubr.bf16.gmra.mrb[0].mxu0 %v1642
      %v1693 = vpop.f32.mrb[0].mxu0
      %v1694 = vadd.f32 0.0, %v1693
      %v1695 = vpop.f32.mrb[0].mxu0
      %v1696 = vpop.f32.mrb[0].mxu0
      %v1697 = vadd.f32 0.0, %v1696
      %v1698 = vpop.f32.mrb[0].mxu0
      %1699 = vmatprep.mubr.bf16.mxu0 0
      %1700 = vmatmul.mubr.bf16.gmra.mrb[0].mxu0 %v1643
      %v1701 = vpop.f32.mrb[0].mxu0
      %v1702 = vadd.f32 0.0, %v1701
      %v1703 = vpop.f32.mrb[0].mxu0
      %v1704 = vpop.f32.mrb[0].mxu0
      %v1705 = vadd.f32 0.0, %v1704
      %v1706 = vpop.f32.mrb[0].mxu0
      %1707 = vmatprep.mubr.bf16.mxu0 0
      %1708 = vmatmul.mubr.bf16.gmra.mrb[0].mxu0 %v1644
      %v1709 = vpop.f32.mrb[0].mxu0
      %v1710 = vadd.f32 0.0, %v1709
      %v1711 = vpop.f32.mrb[0].mxu0
      %v1712 = vpop.f32.mrb[0].mxu0
      %v1713 = vadd.f32 0.0, %v1712
      %v1714 = vpop.f32.mrb[0].mxu0
      %1715 = vmatprep.mubr.bf16.mxu0 0
      %1716 = vmatmul.mubr.bf16.gmra.mrb[0].mxu0 %v1645
      %v1717 = vpop.f32.mrb[0].mxu0
      %v1718 = vadd.f32 0.0, %v1717
      %v1719 = vpop.f32.mrb[0].mxu0
      %v1720 = vpop.f32.mrb[0].mxu0
      %v1721 = vadd.f32 0.0, %v1720
      %v1722 = vpop.f32.mrb[0].mxu0
      %1723 = vmatprep.mubr.bf16.mxu0 0
      %1724 = vmatmul.mubr.bf16.gmra.mrb[0].mxu0 %v1646
      %v1725 = vpop.f32.mrb[0].mxu0
      %v1726 = vadd.f32 0.0, %v1725
      %v1727 = vpop.f32.mrb[0].mxu0
      %v1728 = vpop.f32.mrb[0].mxu0
      %v1729 = vadd.f32 0.0, %v1728
      %v1730 = vpop.f32.mrb[0].mxu0
      %1731 = vmatprep.mubr.bf16.mxu0 0
      %1732 = vmatmul.mubr.bf16.gmra.mrb[0].mxu0 %v1647
      %v1733 = vpop.f32.mrb[0].mxu0
      %v1734 = vadd.f32 0.0, %v1733
      %v1735 = vpop.f32.mrb[0].mxu0
      %v1736 = vpop.f32.mrb[0].mxu0
      %v1737 = vadd.f32 0.0, %v1736
      %v1738 = vpop.f32.mrb[0].mxu0
      %1739 = vmatprep.mubr.bf16.mxu0 0
      %1740 = vmatmul.mubr.bf16.gmra.mrb[0].mxu0 %v1648
      %v1741 = vpop.f32.mrb[0].mxu0
      %v1742 = vadd.f32 0.0, %v1741
      %v1743 = vpop.f32.mrb[0].mxu0
      %v1744 = vpop.f32.mrb[0].mxu0
      %v1745 = vadd.f32 0.0, %v1744
      %v1746 = vpop.f32.mrb[0].mxu0
      %1747 = vmatprep.mubr.bf16.mxu0 0
      %1748 = vmatmul.mubr.bf16.gmra.mrb[0].mxu0 %v1649
      %v1749 = vpop.f32.mrb[0].mxu0
      %v1750 = vadd.f32 0.0, %v1749
      %v1751 = vpop.f32.mrb[0].mxu0
      %v1752 = vpop.f32.mrb[0].mxu0
      %v1753 = vadd.f32 0.0, %v1752
      %v1754 = vpop.f32.mrb[0].mxu0
      %1755 = vmatprep.mubr.bf16.mxu0 0
      %1756 = vmatmul.mubr.bf16.gmra.mrb[0].mxu0 %v1650
      %v1757 = vpop.f32.mrb[0].mxu0
      %v1758 = vadd.f32 0.0, %v1757
      %v1759 = vpop.f32.mrb[0].mxu0
      %v1760 = vpop.f32.mrb[0].mxu0
      %v1761 = vadd.f32 0.0, %v1760
      %v1762 = vpop.f32.mrb[0].mxu0
      %1763 = vdwg.mxu0
      %1764 = vrot.lane.b32.xlu0 %v456, 80
      %v1765 = vpop.permute.xlu0 %1764
      %1766 = vrot.lane.b32.xlu0 %v460, 80
      %v1767 = vpop.permute.xlu0 %1766
      %1768 = vrot.lane.b32.xlu0 %v466, 80
      %v1769 = vpop.permute.xlu0 %1768
      %1770 = vrot.lane.b32.xlu0 %v470, 80
      %v1771 = vpop.permute.xlu0 %1770
      %1772 = vrot.lane.b32.xlu0 %v476, 80
      %v1773 = vpop.permute.xlu0 %1772
      %1774 = vrot.lane.b32.xlu0 %v480, 80
      %v1775 = vpop.permute.xlu0 %1774
      %1776 = vrot.lane.b32.xlu0 %v486, 80
      %v1777 = vpop.permute.xlu0 %1776
      %1778 = vrot.lane.b32.xlu0 %v490, 80
      %v1779 = vpop.permute.xlu0 %1778
      %1780 = vrot.lane.b32.xlu0 %v496, 80
      %v1781 = vpop.permute.xlu0 %1780
      %1782 = vrot.lane.b32.xlu0 %v500, 80
      %v1783 = vpop.permute.xlu0 %1782
      %1784 = vrot.lane.b32.xlu0 %v506, 80
      %v1785 = vpop.permute.xlu0 %1784
      %1786 = vrot.lane.b32.xlu0 %v510, 80
      %v1787 = vpop.permute.xlu0 %1786
      %1788 = vrot.lane.b32.xlu0 %v516, 80
      %v1789 = vpop.permute.xlu0 %1788
      %1790 = vrot.lane.b32.xlu0 %v520, 80
      %v1791 = vpop.permute.xlu0 %1790
      %1792 = vrot.lane.b32.xlu0 %v526, 80
      %v1793 = vpop.permute.xlu0 %1792
      %1794 = vrot.lane.b32.xlu0 %v530, 80
      %v1795 = vpop.permute.xlu0 %1794
      %1796 = vrot.lane.b32.xlu0 %v536, 80
      %v1797 = vpop.permute.xlu0 %1796
      %1798 = vrot.lane.b32.xlu0 %v540, 80
      %v1799 = vpop.permute.xlu0 %1798
      %1800 = vrot.lane.b32.xlu0 %v546, 80
      %v1801 = vpop.permute.xlu0 %1800
      %1802 = vrot.lane.b32.xlu0 %v550, 80
      %v1803 = vpop.permute.xlu0 %1802
      %1804 = vrot.lane.b32.xlu0 %v587, 80
      %v1805 = vpop.permute.xlu0 %1804
      %1806 = vrot.lane.b32.xlu0 %v590, 80
      %v1807 = vpop.permute.xlu0 %1806
      %1808 = vrot.lane.b32.xlu0 %v595, 80
      %v1809 = vpop.permute.xlu0 %1808
      %1810 = vrot.lane.b32.xlu0 %v598, 80
      %v1811 = vpop.permute.xlu0 %1810
      %1812 = vrot.lane.b32.xlu0 %v603, 80
      %v1813 = vpop.permute.xlu0 %1812
      %1814 = vrot.lane.b32.xlu0 %v606, 80
      %v1815 = vpop.permute.xlu0 %1814
      %1816 = vrot.lane.b32.xlu0 %v611, 80
      %v1817 = vpop.permute.xlu0 %1816
      %1818 = vrot.lane.b32.xlu0 %v614, 80
      %v1819 = vpop.permute.xlu0 %1818
      %1820 = vrot.lane.b32.xlu0 %v619, 80
      %v1821 = vpop.permute.xlu0 %1820
      %1822 = vrot.lane.b32.xlu0 %v622, 80
      %v1823 = vpop.permute.xlu0 %1822
      %1824 = vrot.lane.b32.xlu0 %v627, 80
      %v1825 = vpop.permute.xlu0 %1824
      %1826 = vrot.lane.b32.xlu0 %v630, 80
      %v1827 = vpop.permute.xlu0 %1826
      %1828 = vrot.lane.b32.xlu0 %v635, 80
      %v1829 = vpop.permute.xlu0 %1828
      %1830 = vrot.lane.b32.xlu0 %v638, 80
      %v1831 = vpop.permute.xlu0 %1830
      %1832 = vrot.lane.b32.xlu0 %v643, 80
      %v1833 = vpop.permute.xlu0 %1832
      %1834 = vrot.lane.b32.xlu0 %v646, 80
      %v1835 = vpop.permute.xlu0 %1834
      %1836 = vrot.lane.b32.xlu0 %v651, 80
      %v1837 = vpop.permute.xlu0 %1836
      %1838 = vrot.lane.b32.xlu0 %v654, 80
      %v1839 = vpop.permute.xlu0 %1838
      %1840 = vrot.lane.b32.xlu0 %v659, 80
      %v1841 = vpop.permute.xlu0 %1840
      %1842 = vrot.lane.b32.xlu0 %v662, 80
      %v1843 = vpop.permute.xlu0 %1842
      %v1844 = vmul.f32 %v454, %v1765
      %v1845 = vmul.f32 %v458, %v1767
      %v1846 = vmul.f32 %v464, %v1769
      %v1847 = vmul.f32 %v468, %v1771
      %v1848 = vmul.f32 %v474, %v1773
      %v1849 = vmul.f32 %v478, %v1775
      %v1850 = vmul.f32 %v484, %v1777
      %v1851 = vmul.f32 %v488, %v1779
      %v1852 = vmul.f32 %v494, %v1781
      %v1853 = vmul.f32 %v498, %v1783
      %v1854 = vmul.f32 %v504, %v1785
      %v1855 = vmul.f32 %v508, %v1787
      %v1856 = vmul.f32 %v514, %v1789
      %v1857 = vmul.f32 %v518, %v1791
      %v1858 = vmul.f32 %v524, %v1793
      %v1859 = vmul.f32 %v528, %v1795
      %v1860 = vmul.f32 %v534, %v1797
      %v1861 = vmul.f32 %v538, %v1799
      %v1862 = vmul.f32 %v544, %v1801
      %v1863 = vmul.f32 %v548, %v1803
      %v1864 = vpack.c.bf16 %v1845, %v1844
      %v1865 = vpack.c.bf16 %v1847, %v1846
      %v1866 = vpack.c.bf16 %v1849, %v1848
      %v1867 = vpack.c.bf16 %v1851, %v1850
      %v1868 = vpack.c.bf16 %v1853, %v1852
      %v1869 = vpack.c.bf16 %v1855, %v1854
      %v1870 = vpack.c.bf16 %v1857, %v1856
      %v1871 = vpack.c.bf16 %v1859, %v1858
      %v1872 = vpack.c.bf16 %v1861, %v1860
      %v1873 = vpack.c.bf16 %v1863, %v1862
      %1874 = vmatprep.subr.bf16.mxu0 0
      %1875 = vmatpush1.bf16.msra.mxu0 %v743
      %1876 = vmatprep.subr.bf16.mxu0 0
      %1877 = vmatpush1.bf16.msra.mxu0 %v744
      %1878 = vmatprep.subr.bf16.mxu0 0
      %1879 = vmatpush1.bf16.msra.mxu0 %v745
      %1880 = vmatprep.subr.bf16.mxu0 0
      %1881 = vmatpush1.bf16.msra.mxu0 %v746
      %1882 = vmatprep.subr.bf16.mxu0 0
      %1883 = vmatpush1.bf16.msra.mxu0 %v747
      %1884 = vmatprep.subr.bf16.mxu0 0
      %1885 = vmatpush1.bf16.msra.mxu0 %v748
      %1886 = vmatprep.subr.bf16.mxu0 0
      %1887 = vmatpush1.bf16.msra.mxu0 %v749
      %1888 = vmatprep.subr.bf16.mxu0 0
      %1889 = vmatpush1.bf16.msra.mxu0 %v750
      %1890 = vmatprep.subr.bf16.mxu0 0
      %1891 = vmatpush1.bf16.msra.mxu0 0
      %1892 = vmatprep.subr.bf16.mxu0 0
      %1893 = vmatpush1.bf16.msra.mxu0 0
      %1894 = vmatprep.subr.bf16.mxu0 0
      %1895 = vmatpush1.bf16.msra.mxu0 0
      %1896 = vmatprep.subr.bf16.mxu0 0
      %1897 = vmatpush1.bf16.msra.mxu0 0
      %1898 = vmatprep.subr.bf16.mxu0 0
      %1899 = vmatpush1.bf16.msra.mxu0 0
      %1900 = vmatprep.subr.bf16.mxu0 0
      %1901 = vmatpush1.bf16.msra.mxu0 0
      %1902 = vmatprep.subr.bf16.mxu0 0
      %1903 = vmatpush1.bf16.msra.mxu0 0
      %1904 = vmatprep.subr.bf16.mxu0 0
      %1905 = vmatpush1.bf16.msra.mxu0 0
      %1906 = vmatprep.mubr.bf16.mxu0 0
      %1907 = vmatmul.mubr.bf16.gmra.mrb[0].mxu0 %v1864
      %v1908 = vpop.f32.mrb[0].mxu0
      %v1909 = vadd.f32 0.0, %v1908
      %v1910 = vpop.f32.mrb[0].mxu0
      %v1911 = vpop.f32.mrb[0].mxu0
      %v1912 = vadd.f32 0.0, %v1911
      %v1913 = vpop.f32.mrb[0].mxu0
      %1914 = vmatprep.mubr.bf16.mxu0 0
      %1915 = vmatmul.mubr.bf16.gmra.mrb[0].mxu0 %v1865
      %v1916 = vpop.f32.mrb[0].mxu0
      %v1917 = vadd.f32 0.0, %v1916
      %v1918 = vpop.f32.mrb[0].mxu0
      %v1919 = vpop.f32.mrb[0].mxu0
      %v1920 = vadd.f32 0.0, %v1919
      %v1921 = vpop.f32.mrb[0].mxu0
      %1922 = vmatprep.mubr.bf16.mxu0 0
      %1923 = vmatmul.mubr.bf16.gmra.mrb[0].mxu0 %v1866
      %v1924 = vpop.f32.mrb[0].mxu0
      %v1925 = vadd.f32 0.0, %v1924
      %v1926 = vpop.f32.mrb[0].mxu0
      %v1927 = vpop.f32.mrb[0].mxu0
      %v1928 = vadd.f32 0.0, %v1927
      %v1929 = vpop.f32.mrb[0].mxu0
      %1930 = vmatprep.mubr.bf16.mxu0 0
      %1931 = vmatmul.mubr.bf16.gmra.mrb[0].mxu0 %v1867
      %v1932 = vpop.f32.mrb[0].mxu0
      %v1933 = vadd.f32 0.0, %v1932
      %v1934 = vpop.f32.mrb[0].mxu0
      %v1935 = vpop.f32.mrb[0].mxu0
      %v1936 = vadd.f32 0.0, %v1935
      %v1937 = vpop.f32.mrb[0].mxu0
      %1938 = vmatprep.mubr.bf16.mxu0 0
      %1939 = vmatmul.mubr.bf16.gmra.mrb[0].mxu0 %v1868
      %v1940 = vpop.f32.mrb[0].mxu0
      %v1941 = vadd.f32 0.0, %v1940
      %v1942 = vpop.f32.mrb[0].mxu0
      %v1943 = vpop.f32.mrb[0].mxu0
      %v1944 = vadd.f32 0.0, %v1943
      %v1945 = vpop.f32.mrb[0].mxu0
      %1946 = vmatprep.mubr.bf16.mxu0 0
      %1947 = vmatmul.mubr.bf16.gmra.mrb[0].mxu0 %v1869
      %v1948 = vpop.f32.mrb[0].mxu0
      %v1949 = vadd.f32 0.0, %v1948
      %v1950 = vpop.f32.mrb[0].mxu0
      %v1951 = vpop.f32.mrb[0].mxu0
      %v1952 = vadd.f32 0.0, %v1951
      %v1953 = vpop.f32.mrb[0].mxu0
      %1954 = vmatprep.mubr.bf16.mxu0 0
      %1955 = vmatmul.mubr.bf16.gmra.mrb[0].mxu0 %v1870
      %v1956 = vpop.f32.mrb[0].mxu0
      %v1957 = vadd.f32 0.0, %v1956
      %v1958 = vpop.f32.mrb[0].mxu0
      %v1959 = vpop.f32.mrb[0].mxu0
      %v1960 = vadd.f32 0.0, %v1959
      %v1961 = vpop.f32.mrb[0].mxu0
      %1962 = vmatprep.mubr.bf16.mxu0 0
      %1963 = vmatmul.mubr.bf16.gmra.mrb[0].mxu0 %v1871
      %v1964 = vpop.f32.mrb[0].mxu0
      %v1965 = vadd.f32 0.0, %v1964
      %v1966 = vpop.f32.mrb[0].mxu0
      %v1967 = vpop.f32.mrb[0].mxu0
      %v1968 = vadd.f32 0.0, %v1967
      %v1969 = vpop.f32.mrb[0].mxu0
      %1970 = vmatprep.mubr.bf16.mxu0 0
      %1971 = vmatmul.mubr.bf16.gmra.mrb[0].mxu0 %v1872
      %v1972 = vpop.f32.mrb[0].mxu0
      %v1973 = vadd.f32 0.0, %v1972
      %v1974 = vpop.f32.mrb[0].mxu0
      %v1975 = vpop.f32.mrb[0].mxu0
      %v1976 = vadd.f32 0.0, %v1975
      %v1977 = vpop.f32.mrb[0].mxu0
      %1978 = vmatprep.mubr.bf16.mxu0 0
      %1979 = vmatmul.mubr.bf16.gmra.mrb[0].mxu0 %v1873
      %v1980 = vpop.f32.mrb[0].mxu0
      %v1981 = vadd.f32 0.0, %v1980
      %v1982 = vpop.f32.mrb[0].mxu0
      %v1983 = vpop.f32.mrb[0].mxu0
      %v1984 = vadd.f32 0.0, %v1983
      %v1985 = vpop.f32.mrb[0].mxu0
      %1986 = vdwg.mxu0
      %1987 = vrot.lane.b32.xlu0 %v456, 96
      %v1988 = vpop.permute.xlu0 %1987
      %1989 = vrot.lane.b32.xlu0 %v460, 96
      %v1990 = vpop.permute.xlu0 %1989
      %1991 = vrot.lane.b32.xlu0 %v466, 96
      %v1992 = vpop.permute.xlu0 %1991
      %1993 = vrot.lane.b32.xlu0 %v470, 96
      %v1994 = vpop.permute.xlu0 %1993
      %1995 = vrot.lane.b32.xlu0 %v476, 96
      %v1996 = vpop.permute.xlu0 %1995
      %1997 = vrot.lane.b32.xlu0 %v480, 96
      %v1998 = vpop.permute.xlu0 %1997
      %1999 = vrot.lane.b32.xlu0 %v486, 96
      %v2000 = vpop.permute.xlu0 %1999
      %2001 = vrot.lane.b32.xlu0 %v490, 96
      %v2002 = vpop.permute.xlu0 %2001
      %2003 = vrot.lane.b32.xlu0 %v496, 96
      %v2004 = vpop.permute.xlu0 %2003
      %2005 = vrot.lane.b32.xlu0 %v500, 96
      %v2006 = vpop.permute.xlu0 %2005
      %2007 = vrot.lane.b32.xlu0 %v506, 96
      %v2008 = vpop.permute.xlu0 %2007
      %2009 = vrot.lane.b32.xlu0 %v510, 96
      %v2010 = vpop.permute.xlu0 %2009
      %2011 = vrot.lane.b32.xlu0 %v516, 96
      %v2012 = vpop.permute.xlu0 %2011
      %2013 = vrot.lane.b32.xlu0 %v520, 96
      %v2014 = vpop.permute.xlu0 %2013
      %2015 = vrot.lane.b32.xlu0 %v526, 96
      %v2016 = vpop.permute.xlu0 %2015
      %2017 = vrot.lane.b32.xlu0 %v530, 96
      %v2018 = vpop.permute.xlu0 %2017
      %2019 = vrot.lane.b32.xlu0 %v536, 96
      %v2020 = vpop.permute.xlu0 %2019
      %2021 = vrot.lane.b32.xlu0 %v540, 96
      %v2022 = vpop.permute.xlu0 %2021
      %2023 = vrot.lane.b32.xlu0 %v546, 96
      %v2024 = vpop.permute.xlu0 %2023
      %2025 = vrot.lane.b32.xlu0 %v550, 96
      %v2026 = vpop.permute.xlu0 %2025
      %2027 = vrot.lane.b32.xlu0 %v587, 96
      %v2028 = vpop.permute.xlu0 %2027
      %2029 = vrot.lane.b32.xlu0 %v590, 96
      %v2030 = vpop.permute.xlu0 %2029
      %2031 = vrot.lane.b32.xlu0 %v595, 96
      %v2032 = vpop.permute.xlu0 %2031
      %2033 = vrot.lane.b32.xlu0 %v598, 96
      %v2034 = vpop.permute.xlu0 %2033
      %2035 = vrot.lane.b32.xlu0 %v603, 96
      %v2036 = vpop.permute.xlu0 %2035
      %2037 = vrot.lane.b32.xlu0 %v606, 96
      %v2038 = vpop.permute.xlu0 %2037
      %2039 = vrot.lane.b32.xlu0 %v611, 96
      %v2040 = vpop.permute.xlu0 %2039
      %2041 = vrot.lane.b32.xlu0 %v614, 96
      %v2042 = vpop.permute.xlu0 %2041
      %2043 = vrot.lane.b32.xlu0 %v619, 96
      %v2044 = vpop.permute.xlu0 %2043
      %2045 = vrot.lane.b32.xlu0 %v622, 96
      %v2046 = vpop.permute.xlu0 %2045
      %2047 = vrot.lane.b32.xlu0 %v627, 96
      %v2048 = vpop.permute.xlu0 %2047
      %2049 = vrot.lane.b32.xlu0 %v630, 96
      %v2050 = vpop.permute.xlu0 %2049
      %2051 = vrot.lane.b32.xlu0 %v635, 96
      %v2052 = vpop.permute.xlu0 %2051
      %2053 = vrot.lane.b32.xlu0 %v638, 96
      %v2054 = vpop.permute.xlu0 %2053
      %2055 = vrot.lane.b32.xlu0 %v643, 96
      %v2056 = vpop.permute.xlu0 %2055
      %2057 = vrot.lane.b32.xlu0 %v646, 96
      %v2058 = vpop.permute.xlu0 %2057
      %2059 = vrot.lane.b32.xlu0 %v651, 96
      %v2060 = vpop.permute.xlu0 %2059
      %2061 = vrot.lane.b32.xlu0 %v654, 96
      %v2062 = vpop.permute.xlu0 %2061
      %2063 = vrot.lane.b32.xlu0 %v659, 96
      %v2064 = vpop.permute.xlu0 %2063
      %2065 = vrot.lane.b32.xlu0 %v662, 96
      %v2066 = vpop.permute.xlu0 %2065
      %v2067 = vmul.f32 %v454, %v1988
      %v2068 = vmul.f32 %v458, %v1990
      %v2069 = vmul.f32 %v464, %v1992
      %v2070 = vmul.f32 %v468, %v1994
      %v2071 = vmul.f32 %v474, %v1996
      %v2072 = vmul.f32 %v478, %v1998
      %v2073 = vmul.f32 %v484, %v2000
      %v2074 = vmul.f32 %v488, %v2002
      %v2075 = vmul.f32 %v494, %v2004
      %v2076 = vmul.f32 %v498, %v2006
      %v2077 = vmul.f32 %v504, %v2008
      %v2078 = vmul.f32 %v508, %v2010
      %v2079 = vmul.f32 %v514, %v2012
      %v2080 = vmul.f32 %v518, %v2014
      %v2081 = vmul.f32 %v524, %v2016
      %v2082 = vmul.f32 %v528, %v2018
      %v2083 = vmul.f32 %v534, %v2020
      %v2084 = vmul.f32 %v538, %v2022
      %v2085 = vmul.f32 %v544, %v2024
      %v2086 = vmul.f32 %v548, %v2026
      %v2087 = vpack.c.bf16 %v2068, %v2067
      %v2088 = vpack.c.bf16 %v2070, %v2069
      %v2089 = vpack.c.bf16 %v2072, %v2071
      %v2090 = vpack.c.bf16 %v2074, %v2073
      %v2091 = vpack.c.bf16 %v2076, %v2075
      %v2092 = vpack.c.bf16 %v2078, %v2077
      %v2093 = vpack.c.bf16 %v2080, %v2079
      %v2094 = vpack.c.bf16 %v2082, %v2081
      %v2095 = vpack.c.bf16 %v2084, %v2083
      %v2096 = vpack.c.bf16 %v2086, %v2085
      %2097 = vmatprep.subr.bf16.mxu0 0
      %2098 = vmatpush1.bf16.msra.mxu0 %v743
      %2099 = vmatprep.subr.bf16.mxu0 0
      %2100 = vmatpush1.bf16.msra.mxu0 %v744
      %2101 = vmatprep.subr.bf16.mxu0 0
      %2102 = vmatpush1.bf16.msra.mxu0 %v745
      %2103 = vmatprep.subr.bf16.mxu0 0
      %2104 = vmatpush1.bf16.msra.mxu0 %v746
      %2105 = vmatprep.subr.bf16.mxu0 0
      %2106 = vmatpush1.bf16.msra.mxu0 %v747
      %2107 = vmatprep.subr.bf16.mxu0 0
      %2108 = vmatpush1.bf16.msra.mxu0 %v748
      %2109 = vmatprep.subr.bf16.mxu0 0
      %2110 = vmatpush1.bf16.msra.mxu0 %v749
      %2111 = vmatprep.subr.bf16.mxu0 0
      %2112 = vmatpush1.bf16.msra.mxu0 %v750
      %2113 = vmatprep.subr.bf16.mxu0 0
      %2114 = vmatpush1.bf16.msra.mxu0 0
      %2115 = vmatprep.subr.bf16.mxu0 0
      %2116 = vmatpush1.bf16.msra.mxu0 0
      %2117 = vmatprep.subr.bf16.mxu0 0
      %2118 = vmatpush1.bf16.msra.mxu0 0
      %2119 = vmatprep.subr.bf16.mxu0 0
      %2120 = vmatpush1.bf16.msra.mxu0 0
      %2121 = vmatprep.subr.bf16.mxu0 0
      %2122 = vmatpush1.bf16.msra.mxu0 0
      %2123 = vmatprep.subr.bf16.mxu0 0
      %2124 = vmatpush1.bf16.msra.mxu0 0
      %2125 = vmatprep.subr.bf16.mxu0 0
      %2126 = vmatpush1.bf16.msra.mxu0 0
      %2127 = vmatprep.subr.bf16.mxu0 0
      %2128 = vmatpush1.bf16.msra.mxu0 0
      %2129 = vmatprep.mubr.bf16.mxu0 0
      %2130 = vmatmul.mubr.bf16.gmra.mrb[0].mxu0 %v2087
      %v2131 = vpop.f32.mrb[0].mxu0
      %v2132 = vadd.f32 0.0, %v2131
      %v2133 = vpop.f32.mrb[0].mxu0
      %v2134 = vpop.f32.mrb[0].mxu0
      %v2135 = vadd.f32 0.0, %v2134
      %v2136 = vpop.f32.mrb[0].mxu0
      %2137 = vmatprep.mubr.bf16.mxu0 0
      %2138 = vmatmul.mubr.bf16.gmra.mrb[0].mxu0 %v2088
      %v2139 = vpop.f32.mrb[0].mxu0
      %v2140 = vadd.f32 0.0, %v2139
      %v2141 = vpop.f32.mrb[0].mxu0
      %v2142 = vpop.f32.mrb[0].mxu0
      %v2143 = vadd.f32 0.0, %v2142
      %v2144 = vpop.f32.mrb[0].mxu0
      %2145 = vmatprep.mubr.bf16.mxu0 0
      %2146 = vmatmul.mubr.bf16.gmra.mrb[0].mxu0 %v2089
      %v2147 = vpop.f32.mrb[0].mxu0
      %v2148 = vadd.f32 0.0, %v2147
      %v2149 = vpop.f32.mrb[0].mxu0
      %v2150 = vpop.f32.mrb[0].mxu0
      %v2151 = vadd.f32 0.0, %v2150
      %v2152 = vpop.f32.mrb[0].mxu0
      %2153 = vmatprep.mubr.bf16.mxu0 0
      %2154 = vmatmul.mubr.bf16.gmra.mrb[0].mxu0 %v2090
      %v2155 = vpop.f32.mrb[0].mxu0
      %v2156 = vadd.f32 0.0, %v2155
      %v2157 = vpop.f32.mrb[0].mxu0
      %v2158 = vpop.f32.mrb[0].mxu0
      %v2159 = vadd.f32 0.0, %v2158
      %v2160 = vpop.f32.mrb[0].mxu0
      %2161 = vmatprep.mubr.bf16.mxu0 0
      %2162 = vmatmul.mubr.bf16.gmra.mrb[0].mxu0 %v2091
      %v2163 = vpop.f32.mrb[0].mxu0
      %v2164 = vadd.f32 0.0, %v2163
      %v2165 = vpop.f32.mrb[0].mxu0
      %v2166 = vpop.f32.mrb[0].mxu0
      %v2167 = vadd.f32 0.0, %v2166
      %v2168 = vpop.f32.mrb[0].mxu0
      %2169 = vmatprep.mubr.bf16.mxu0 0
      %2170 = vmatmul.mubr.bf16.gmra.mrb[0].mxu0 %v2092
      %v2171 = vpop.f32.mrb[0].mxu0
      %v2172 = vadd.f32 0.0, %v2171
      %v2173 = vpop.f32.mrb[0].mxu0
      %v2174 = vpop.f32.mrb[0].mxu0
      %v2175 = vadd.f32 0.0, %v2174
      %v2176 = vpop.f32.mrb[0].mxu0
      %2177 = vmatprep.mubr.bf16.mxu0 0
      %2178 = vmatmul.mubr.bf16.gmra.mrb[0].mxu0 %v2093
      %v2179 = vpop.f32.mrb[0].mxu0
      %v2180 = vadd.f32 0.0, %v2179
      %v2181 = vpop.f32.mrb[0].mxu0
      %v2182 = vpop.f32.mrb[0].mxu0
      %v2183 = vadd.f32 0.0, %v2182
      %v2184 = vpop.f32.mrb[0].mxu0
      %2185 = vmatprep.mubr.bf16.mxu0 0
      %2186 = vmatmul.mubr.bf16.gmra.mrb[0].mxu0 %v2094
      %v2187 = vpop.f32.mrb[0].mxu0
      %v2188 = vadd.f32 0.0, %v2187
      %v2189 = vpop.f32.mrb[0].mxu0
      %v2190 = vpop.f32.mrb[0].mxu0
      %v2191 = vadd.f32 0.0, %v2190
      %v2192 = vpop.f32.mrb[0].mxu0
      %2193 = vmatprep.mubr.bf16.mxu0 0
      %2194 = vmatmul.mubr.bf16.gmra.mrb[0].mxu0 %v2095
      %v2195 = vpop.f32.mrb[0].mxu0
      %v2196 = vadd.f32 0.0, %v2195
      %v2197 = vpop.f32.mrb[0].mxu0
      %v2198 = vpop.f32.mrb[0].mxu0
      %v2199 = vadd.f32 0.0, %v2198
      %v2200 = vpop.f32.mrb[0].mxu0
      %2201 = vmatprep.mubr.bf16.mxu0 0
      %2202 = vmatmul.mubr.bf16.gmra.mrb[0].mxu0 %v2096
      %v2203 = vpop.f32.mrb[0].mxu0
      %v2204 = vadd.f32 0.0, %v2203
      %v2205 = vpop.f32.mrb[0].mxu0
      %v2206 = vpop.f32.mrb[0].mxu0
      %v2207 = vadd.f32 0.0, %v2206
      %v2208 = vpop.f32.mrb[0].mxu0
      %2209 = vdwg.mxu0
      %2210 = vrot.lane.b32.xlu0 %v456, 112
      %v2211 = vpop.permute.xlu0 %2210
      %2212 = vrot.lane.b32.xlu0 %v460, 112
      %v2213 = vpop.permute.xlu0 %2212
      %2214 = vrot.lane.b32.xlu0 %v466, 112
      %v2215 = vpop.permute.xlu0 %2214
      %2216 = vrot.lane.b32.xlu0 %v470, 112
      %v2217 = vpop.permute.xlu0 %2216
      %2218 = vrot.lane.b32.xlu0 %v476, 112
      %v2219 = vpop.permute.xlu0 %2218
      %2220 = vrot.lane.b32.xlu0 %v480, 112
      %v2221 = vpop.permute.xlu0 %2220
      %2222 = vrot.lane.b32.xlu0 %v486, 112
      %v2223 = vpop.permute.xlu0 %2222
      %2224 = vrot.lane.b32.xlu0 %v490, 112
      %v2225 = vpop.permute.xlu0 %2224
      %2226 = vrot.lane.b32.xlu0 %v496, 112
      %v2227 = vpop.permute.xlu0 %2226
      %2228 = vrot.lane.b32.xlu0 %v500, 112
      %v2229 = vpop.permute.xlu0 %2228
      %2230 = vrot.lane.b32.xlu0 %v506, 112
      %v2231 = vpop.permute.xlu0 %2230
      %2232 = vrot.lane.b32.xlu0 %v510, 112
      %v2233 = vpop.permute.xlu0 %2232
      %2234 = vrot.lane.b32.xlu0 %v516, 112
      %v2235 = vpop.permute.xlu0 %2234
      %2236 = vrot.lane.b32.xlu0 %v520, 112
      %v2237 = vpop.permute.xlu0 %2236
      %2238 = vrot.lane.b32.xlu0 %v526, 112
      %v2239 = vpop.permute.xlu0 %2238
      %2240 = vrot.lane.b32.xlu0 %v530, 112
      %v2241 = vpop.permute.xlu0 %2240
      %2242 = vrot.lane.b32.xlu0 %v536, 112
      %v2243 = vpop.permute.xlu0 %2242
      %2244 = vrot.lane.b32.xlu0 %v540, 112
      %v2245 = vpop.permute.xlu0 %2244
      %2246 = vrot.lane.b32.xlu0 %v546, 112
      %v2247 = vpop.permute.xlu0 %2246
      %2248 = vrot.lane.b32.xlu0 %v550, 112
      %v2249 = vpop.permute.xlu0 %2248
      %2250 = vrot.lane.b32.xlu0 %v587, 112
      %v2251 = vpop.permute.xlu0 %2250
      %2252 = vrot.lane.b32.xlu0 %v590, 112
      %v2253 = vpop.permute.xlu0 %2252
      %2254 = vrot.lane.b32.xlu0 %v595, 112
      %v2255 = vpop.permute.xlu0 %2254
      %2256 = vrot.lane.b32.xlu0 %v598, 112
      %v2257 = vpop.permute.xlu0 %2256
      %2258 = vrot.lane.b32.xlu0 %v603, 112
      %v2259 = vpop.permute.xlu0 %2258
      %2260 = vrot.lane.b32.xlu0 %v606, 112
      %v2261 = vpop.permute.xlu0 %2260
      %2262 = vrot.lane.b32.xlu0 %v611, 112
      %v2263 = vpop.permute.xlu0 %2262
      %2264 = vrot.lane.b32.xlu0 %v614, 112
      %v2265 = vpop.permute.xlu0 %2264
      %2266 = vrot.lane.b32.xlu0 %v619, 112
      %v2267 = vpop.permute.xlu0 %2266
      %2268 = vrot.lane.b32.xlu0 %v622, 112
      %v2269 = vpop.permute.xlu0 %2268
      %2270 = vrot.lane.b32.xlu0 %v627, 112
      %v2271 = vpop.permute.xlu0 %2270
      %2272 = vrot.lane.b32.xlu0 %v630, 112
      %v2273 = vpop.permute.xlu0 %2272
      %2274 = vrot.lane.b32.xlu0 %v635, 112
      %v2275 = vpop.permute.xlu0 %2274
      %2276 = vrot.lane.b32.xlu0 %v638, 112
      %v2277 = vpop.permute.xlu0 %2276
      %2278 = vrot.lane.b32.xlu0 %v643, 112
      %v2279 = vpop.permute.xlu0 %2278
      %2280 = vrot.lane.b32.xlu0 %v646, 112
      %v2281 = vpop.permute.xlu0 %2280
      %2282 = vrot.lane.b32.xlu0 %v651, 112
      %v2283 = vpop.permute.xlu0 %2282
      %2284 = vrot.lane.b32.xlu0 %v654, 112
      %v2285 = vpop.permute.xlu0 %2284
      %2286 = vrot.lane.b32.xlu0 %v659, 112
      %v2287 = vpop.permute.xlu0 %2286
      %2288 = vrot.lane.b32.xlu0 %v662, 112
      %v2289 = vpop.permute.xlu0 %2288
      %v2290 = vmul.f32 %v454, %v2211
      %v2291 = vmul.f32 %v458, %v2213
      %v2292 = vmul.f32 %v464, %v2215
      %v2293 = vmul.f32 %v468, %v2217
      %v2294 = vmul.f32 %v474, %v2219
      %v2295 = vmul.f32 %v478, %v2221
      %v2296 = vmul.f32 %v484, %v2223
      %v2297 = vmul.f32 %v488, %v2225
      %v2298 = vmul.f32 %v494, %v2227
      %v2299 = vmul.f32 %v498, %v2229
      %v2300 = vmul.f32 %v504, %v2231
      %v2301 = vmul.f32 %v508, %v2233
      %v2302 = vmul.f32 %v514, %v2235
      %v2303 = vmul.f32 %v518, %v2237
      %v2304 = vmul.f32 %v524, %v2239
      %v2305 = vmul.f32 %v528, %v2241
      %v2306 = vmul.f32 %v534, %v2243
      %v2307 = vmul.f32 %v538, %v2245
      %v2308 = vmul.f32 %v544, %v2247
      %v2309 = vmul.f32 %v548, %v2249
      %v2310 = vpack.c.bf16 %v2291, %v2290
      %v2311 = vpack.c.bf16 %v2293, %v2292
      %v2312 = vpack.c.bf16 %v2295, %v2294
      %v2313 = vpack.c.bf16 %v2297, %v2296
      %v2314 = vpack.c.bf16 %v2299, %v2298
      %v2315 = vpack.c.bf16 %v2301, %v2300
      %v2316 = vpack.c.bf16 %v2303, %v2302
      %v2317 = vpack.c.bf16 %v2305, %v2304
      %v2318 = vpack.c.bf16 %v2307, %v2306
      %v2319 = vpack.c.bf16 %v2309, %v2308
      %2320 = vmatprep.subr.bf16.mxu0 0
      %2321 = vmatpush1.bf16.msra.mxu0 %v743
      %2322 = vmatprep.subr.bf16.mxu0 0
      %2323 = vmatpush1.bf16.msra.mxu0 %v744
      %2324 = vmatprep.subr.bf16.mxu0 0
      %2325 = vmatpush1.bf16.msra.mxu0 %v745
      %2326 = vmatprep.subr.bf16.mxu0 0
      %2327 = vmatpush1.bf16.msra.mxu0 %v746
      %2328 = vmatprep.subr.bf16.mxu0 0
      %2329 = vmatpush1.bf16.msra.mxu0 %v747
      %2330 = vmatprep.subr.bf16.mxu0 0
      %2331 = vmatpush1.bf16.msra.mxu0 %v748
      %2332 = vmatprep.subr.bf16.mxu0 0
      %2333 = vmatpush1.bf16.msra.mxu0 %v749
      %2334 = vmatprep.subr.bf16.mxu0 0
      %2335 = vmatpush1.bf16.msra.mxu0 %v750
      %2336 = vmatprep.subr.bf16.mxu0 0
      %2337 = vmatpush1.bf16.msra.mxu0 0
      %2338 = vmatprep.subr.bf16.mxu0 0
      %2339 = vmatpush1.bf16.msra.mxu0 0
      %2340 = vmatprep.subr.bf16.mxu0 0
      %2341 = vmatpush1.bf16.msra.mxu0 0
      %2342 = vmatprep.subr.bf16.mxu0 0
      %2343 = vmatpush1.bf16.msra.mxu0 0
      %2344 = vmatprep.subr.bf16.mxu0 0
      %2345 = vmatpush1.bf16.msra.mxu0 0
      %2346 = vmatprep.subr.bf16.mxu0 0
      %2347 = vmatpush1.bf16.msra.mxu0 0
      %2348 = vmatprep.subr.bf16.mxu0 0
      %2349 = vmatpush1.bf16.msra.mxu0 0
      %2350 = vmatprep.subr.bf16.mxu0 0
      %2351 = vmatpush1.bf16.msra.mxu0 0
      %2352 = vmatprep.mubr.bf16.mxu0 0
      %2353 = vmatmul.mubr.bf16.gmra.mrb[0].mxu0 %v2310
      %v2354 = vpop.f32.mrb[0].mxu0
      %v2355 = vadd.f32 0.0, %v2354
      %v2356 = vpop.f32.mrb[0].mxu0
      %v2357 = vpop.f32.mrb[0].mxu0
      %v2358 = vadd.f32 0.0, %v2357
      %v2359 = vpop.f32.mrb[0].mxu0
      %2360 = vmatprep.mubr.bf16.mxu0 0
      %2361 = vmatmul.mubr.bf16.gmra.mrb[0].mxu0 %v2311
      %v2362 = vpop.f32.mrb[0].mxu0
      %v2363 = vadd.f32 0.0, %v2362
      %v2364 = vpop.f32.mrb[0].mxu0
      %v2365 = vpop.f32.mrb[0].mxu0
      %v2366 = vadd.f32 0.0, %v2365
      %v2367 = vpop.f32.mrb[0].mxu0
      %2368 = vmatprep.mubr.bf16.mxu0 0
      %2369 = vmatmul.mubr.bf16.gmra.mrb[0].mxu0 %v2312
      %v2370 = vpop.f32.mrb[0].mxu0
      %v2371 = vadd.f32 0.0, %v2370
      %v2372 = vpop.f32.mrb[0].mxu0
      %v2373 = vpop.f32.mrb[0].mxu0
      %v2374 = vadd.f32 0.0, %v2373
      %v2375 = vpop.f32.mrb[0].mxu0
      %2376 = vmatprep.mubr.bf16.mxu0 0
      %2377 = vmatmul.mubr.bf16.gmra.mrb[0].mxu0 %v2313
      %v2378 = vpop.f32.mrb[0].mxu0
      %v2379 = vadd.f32 0.0, %v2378
      %v2380 = vpop.f32.mrb[0].mxu0
      %v2381 = vpop.f32.mrb[0].mxu0
      %v2382 = vadd.f32 0.0, %v2381
      %v2383 = vpop.f32.mrb[0].mxu0
      %2384 = vmatprep.mubr.bf16.mxu0 0
      %2385 = vmatmul.mubr.bf16.gmra.mrb[0].mxu0 %v2314
      %v2386 = vpop.f32.mrb[0].mxu0
      %v2387 = vadd.f32 0.0, %v2386
      %v2388 = vpop.f32.mrb[0].mxu0
      %v2389 = vpop.f32.mrb[0].mxu0
      %v2390 = vadd.f32 0.0, %v2389
      %v2391 = vpop.f32.mrb[0].mxu0
      %2392 = vmatprep.mubr.bf16.mxu0 0
      %2393 = vmatmul.mubr.bf16.gmra.mrb[0].mxu0 %v2315
      %v2394 = vpop.f32.mrb[0].mxu0
      %v2395 = vadd.f32 0.0, %v2394
      %v2396 = vpop.f32.mrb[0].mxu0
      %v2397 = vpop.f32.mrb[0].mxu0
      %v2398 = vadd.f32 0.0, %v2397
      %v2399 = vpop.f32.mrb[0].mxu0
      %2400 = vmatprep.mubr.bf16.mxu0 0
      %2401 = vmatmul.mubr.bf16.gmra.mrb[0].mxu0 %v2316
      %v2402 = vpop.f32.mrb[0].mxu0
      %v2403 = vadd.f32 0.0, %v2402
      %v2404 = vpop.f32.mrb[0].mxu0
      %v2405 = vpop.f32.mrb[0].mxu0
      %v2406 = vadd.f32 0.0, %v2405
      %v2407 = vpop.f32.mrb[0].mxu0
      %2408 = vmatprep.mubr.bf16.mxu0 0
      %2409 = vmatmul.mubr.bf16.gmra.mrb[0].mxu0 %v2317
      %v2410 = vpop.f32.mrb[0].mxu0
      %v2411 = vadd.f32 0.0, %v2410
      %v2412 = vpop.f32.mrb[0].mxu0
      %v2413 = vpop.f32.mrb[0].mxu0
      %v2414 = vadd.f32 0.0, %v2413
      %v2415 = vpop.f32.mrb[0].mxu0
      %2416 = vmatprep.mubr.bf16.mxu0 0
      %2417 = vmatmul.mubr.bf16.gmra.mrb[0].mxu0 %v2318
      %v2418 = vpop.f32.mrb[0].mxu0
      %v2419 = vadd.f32 0.0, %v2418
      %v2420 = vpop.f32.mrb[0].mxu0
      %v2421 = vpop.f32.mrb[0].mxu0
      %v2422 = vadd.f32 0.0, %v2421
      %v2423 = vpop.f32.mrb[0].mxu0
      %2424 = vmatprep.mubr.bf16.mxu0 0
      %2425 = vmatmul.mubr.bf16.gmra.mrb[0].mxu0 %v2319
      %v2426 = vpop.f32.mrb[0].mxu0
      %v2427 = vadd.f32 0.0, %v2426
      %v2428 = vpop.f32.mrb[0].mxu0
      %v2429 = vpop.f32.mrb[0].mxu0
      %v2430 = vadd.f32 0.0, %v2429
      %v2431 = vpop.f32.mrb[0].mxu0
      %2432 = vdwg.mxu0
      %v2433 = vmax.f32 %v794, %v1017
      %v2434 = vmax.f32 %v797, %v1020
      %v2435 = vmax.f32 %v802, %v1025
      %v2436 = vmax.f32 %v805, %v1028
      %v2437 = vmax.f32 %v810, %v1033
      %v2438 = vmax.f32 %v813, %v1036
      %v2439 = vmax.f32 %v818, %v1041
      %v2440 = vmax.f32 %v821, %v1044
      %v2441 = vmax.f32 %v826, %v1049
      %v2442 = vmax.f32 %v829, %v1052
      %v2443 = vmax.f32 %v834, %v1057
      %v2444 = vmax.f32 %v837, %v1060
      %v2445 = vmax.f32 %v842, %v1065
      %v2446 = vmax.f32 %v845, %v1068
      %v2447 = vmax.f32 %v850, %v1073
      %v2448 = vmax.f32 %v853, %v1076
      %v2449 = vmax.f32 %v858, %v1081
      %v2450 = vmax.f32 %v861, %v1084
      %v2451 = vmax.f32 %v866, %v1089
      %v2452 = vmax.f32 %v869, %v1092
      %v2453 = vmax.f32 %v2433, %v1240
      %v2454 = vmax.f32 %v2434, %v1243
      %v2455 = vmax.f32 %v2435, %v1248
      %v2456 = vmax.f32 %v2436, %v1251
      %v2457 = vmax.f32 %v2437, %v1256
      %v2458 = vmax.f32 %v2438, %v1259
      %v2459 = vmax.f32 %v2439, %v1264
      %v2460 = vmax.f32 %v2440, %v1267
      %v2461 = vmax.f32 %v2441, %v1272
      %v2462 = vmax.f32 %v2442, %v1275
      %v2463 = vmax.f32 %v2443, %v1280
      %v2464 = vmax.f32 %v2444, %v1283
      %v2465 = vmax.f32 %v2445, %v1288
      %v2466 = vmax.f32 %v2446, %v1291
      %v2467 = vmax.f32 %v2447, %v1296
      %v2468 = vmax.f32 %v2448, %v1299
      %v2469 = vmax.f32 %v2449, %v1304
      %v2470 = vmax.f32 %v2450, %v1307
      %v2471 = vmax.f32 %v2451, %v1312
      %v2472 = vmax.f32 %v2452, %v1315
      %v2473 = vmax.f32 %v2453, %v1463
      %v2474 = vmax.f32 %v2454, %v1466
      %v2475 = vmax.f32 %v2455, %v1471
      %v2476 = vmax.f32 %v2456, %v1474
      %v2477 = vmax.f32 %v2457, %v1479
      %v2478 = vmax.f32 %v2458, %v1482
      %v2479 = vmax.f32 %v2459, %v1487
      %v2480 = vmax.f32 %v2460, %v1490
      %v2481 = vmax.f32 %v2461, %v1495
      %v2482 = vmax.f32 %v2462, %v1498
      %v2483 = vmax.f32 %v2463, %v1503
      %v2484 = vmax.f32 %v2464, %v1506
      %v2485 = vmax.f32 %v2465, %v1511
      %v2486 = vmax.f32 %v2466, %v1514
      %v2487 = vmax.f32 %v2467, %v1519
      %v2488 = vmax.f32 %v2468, %v1522
      %v2489 = vmax.f32 %v2469, %v1527
      %v2490 = vmax.f32 %v2470, %v1530
      %v2491 = vmax.f32 %v2471, %v1535
      %v2492 = vmax.f32 %v2472, %v1538
      %v2493 = vmax.f32 %v2473, %v1686
      %v2494 = vmax.f32 %v2474, %v1689
      %v2495 = vmax.f32 %v2475, %v1694
      %v2496 = vmax.f32 %v2476, %v1697
      %v2497 = vmax.f32 %v2477, %v1702
      %v2498 = vmax.f32 %v2478, %v1705
      %v2499 = vmax.f32 %v2479, %v1710
      %v2500 = vmax.f32 %v2480, %v1713
      %v2501 = vmax.f32 %v2481, %v1718
      %v2502 = vmax.f32 %v2482, %v1721
      %v2503 = vmax.f32 %v2483, %v1726
      %v2504 = vmax.f32 %v2484, %v1729
      %v2505 = vmax.f32 %v2485, %v1734
      %v2506 = vmax.f32 %v2486, %v1737
      %v2507 = vmax.f32 %v2487, %v1742
      %v2508 = vmax.f32 %v2488, %v1745
      %v2509 = vmax.f32 %v2489, %v1750
      %v2510 = vmax.f32 %v2490, %v1753
      %v2511 = vmax.f32 %v2491, %v1758
      %v2512 = vmax.f32 %v2492, %v1761
      %v2513 = vmax.f32 %v2493, %v1909
      %v2514 = vmax.f32 %v2494, %v1912
      %v2515 = vmax.f32 %v2495, %v1917
      %v2516 = vmax.f32 %v2496, %v1920
      %v2517 = vmax.f32 %v2497, %v1925
      %v2518 = vmax.f32 %v2498, %v1928
      %v2519 = vmax.f32 %v2499, %v1933
      %v2520 = vmax.f32 %v2500, %v1936
      %v2521 = vmax.f32 %v2501, %v1941
      %v2522 = vmax.f32 %v2502, %v1944
      %v2523 = vmax.f32 %v2503, %v1949
      %v2524 = vmax.f32 %v2504, %v1952
      %v2525 = vmax.f32 %v2505, %v1957
      %v2526 = vmax.f32 %v2506, %v1960
      %v2527 = vmax.f32 %v2507, %v1965
      %v2528 = vmax.f32 %v2508, %v1968
      %v2529 = vmax.f32 %v2509, %v1973
      %v2530 = vmax.f32 %v2510, %v1976
      %v2531 = vmax.f32 %v2511, %v1981
      %v2532 = vmax.f32 %v2512, %v1984
      %v2533 = vmax.f32 %v2513, %v2132
      %v2534 = vmax.f32 %v2514, %v2135
      %v2535 = vmax.f32 %v2515, %v2140
      %v2536 = vmax.f32 %v2516, %v2143
      %v2537 = vmax.f32 %v2517, %v2148
      %v2538 = vmax.f32 %v2518, %v2151
      %v2539 = vmax.f32 %v2519, %v2156
      %v2540 = vmax.f32 %v2520, %v2159
      %v2541 = vmax.f32 %v2521, %v2164
      %v2542 = vmax.f32 %v2522, %v2167
      %v2543 = vmax.f32 %v2523, %v2172
      %v2544 = vmax.f32 %v2524, %v2175
      %v2545 = vmax.f32 %v2525, %v2180
      %v2546 = vmax.f32 %v2526, %v2183
      %v2547 = vmax.f32 %v2527, %v2188
      %v2548 = vmax.f32 %v2528, %v2191
      %v2549 = vmax.f32 %v2529, %v2196
      %v2550 = vmax.f32 %v2530, %v2199
      %v2551 = vmax.f32 %v2531, %v2204
      %v2552 = vmax.f32 %v2532, %v2207
      %v2553 = vmax.f32 %v2533, %v2355
      %v2554 = vmax.f32 %v2534, %v2358
      %v2555 = vmax.f32 %v2535, %v2363
      %v2556 = vmax.f32 %v2536, %v2366
      %v2557 = vmax.f32 %v2537, %v2371
      %v2558 = vmax.f32 %v2538, %v2374
      %v2559 = vmax.f32 %v2539, %v2379
      %v2560 = vmax.f32 %v2540, %v2382
      %v2561 = vmax.f32 %v2541, %v2387
      %v2562 = vmax.f32 %v2542, %v2390
      %v2563 = vmax.f32 %v2543, %v2395
      %v2564 = vmax.f32 %v2544, %v2398
      %v2565 = vmax.f32 %v2545, %v2403
      %v2566 = vmax.f32 %v2546, %v2406
      %v2567 = vmax.f32 %v2547, %v2411
      %v2568 = vmax.f32 %v2548, %v2414
      %v2569 = vmax.f32 %v2549, %v2419
      %v2570 = vmax.f32 %v2550, %v2422
      %v2571 = vmax.f32 %v2551, %v2427
      %v2572 = vmax.f32 %v2552, %v2430
      %v2573 = vsub.f32 %v794, %v2553
      %v2574 = vsub.f32 %v797, %v2554
      %v2575 = vsub.f32 %v802, %v2555
      %v2576 = vsub.f32 %v805, %v2556
      %v2577 = vsub.f32 %v810, %v2557
      %v2578 = vsub.f32 %v813, %v2558
      %v2579 = vsub.f32 %v818, %v2559
      %v2580 = vsub.f32 %v821, %v2560
      %v2581 = vsub.f32 %v826, %v2561
      %v2582 = vsub.f32 %v829, %v2562
      %v2583 = vsub.f32 %v834, %v2563
      %v2584 = vsub.f32 %v837, %v2564
      %v2585 = vsub.f32 %v842, %v2565
      %v2586 = vsub.f32 %v845, %v2566
      %v2587 = vsub.f32 %v850, %v2567
      %v2588 = vsub.f32 %v853, %v2568
      %v2589 = vsub.f32 %v858, %v2569
      %v2590 = vsub.f32 %v861, %v2570
      %v2591 = vsub.f32 %v866, %v2571
      %v2592 = vsub.f32 %v869, %v2572
      %v2593 = vmul.f32 %v2573, 1.442695
      %v2594 = vpow.pop %v2593
      %v2595 = vmul.f32 %v2574, 1.442695
      %v2596 = vpow.pop %v2595
      %v2597 = vmul.f32 %v2575, 1.442695
      %v2598 = vpow.pop %v2597
      %v2599 = vmul.f32 %v2576, 1.442695
      %v2600 = vpow.pop %v2599
      %v2601 = vmul.f32 %v2577, 1.442695
      %v2602 = vpow.pop %v2601
      %v2603 = vmul.f32 %v2578, 1.442695
      %v2604 = vpow.pop %v2603
      %v2605 = vmul.f32 %v2579, 1.442695
      %v2606 = vpow.pop %v2605
      %v2607 = vmul.f32 %v2580, 1.442695
      %v2608 = vpow.pop %v2607
      %v2609 = vmul.f32 %v2581, 1.442695
      %v2610 = vpow.pop %v2609
      %v2611 = vmul.f32 %v2582, 1.442695
      %v2612 = vpow.pop %v2611
      %v2613 = vmul.f32 %v2583, 1.442695
      %v2614 = vpow.pop %v2613
      %v2615 = vmul.f32 %v2584, 1.442695
      %v2616 = vpow.pop %v2615
      %v2617 = vmul.f32 %v2585, 1.442695
      %v2618 = vpow.pop %v2617
      %v2619 = vmul.f32 %v2586, 1.442695
      %v2620 = vpow.pop %v2619
      %v2621 = vmul.f32 %v2587, 1.442695
      %v2622 = vpow.pop %v2621
      %v2623 = vmul.f32 %v2588, 1.442695
      %v2624 = vpow.pop %v2623
      %v2625 = vmul.f32 %v2589, 1.442695
      %v2626 = vpow.pop %v2625
      %v2627 = vmul.f32 %v2590, 1.442695
      %v2628 = vpow.pop %v2627
      %v2629 = vmul.f32 %v2591, 1.442695
      %v2630 = vpow.pop %v2629
      %v2631 = vmul.f32 %v2592, 1.442695
      %v2632 = vpow.pop %v2631
      %v2633 = vsub.f32 %v1017, %v2553
      %v2634 = vsub.f32 %v1020, %v2554
      %v2635 = vsub.f32 %v1025, %v2555
      %v2636 = vsub.f32 %v1028, %v2556
      %v2637 = vsub.f32 %v1033, %v2557
      %v2638 = vsub.f32 %v1036, %v2558
      %v2639 = vsub.f32 %v1041, %v2559
      %v2640 = vsub.f32 %v1044, %v2560
      %v2641 = vsub.f32 %v1049, %v2561
      %v2642 = vsub.f32 %v1052, %v2562
      %v2643 = vsub.f32 %v1057, %v2563
      %v2644 = vsub.f32 %v1060, %v2564
      %v2645 = vsub.f32 %v1065, %v2565
      %v2646 = vsub.f32 %v1068, %v2566
      %v2647 = vsub.f32 %v1073, %v2567
      %v2648 = vsub.f32 %v1076, %v2568
      %v2649 = vsub.f32 %v1081, %v2569
      %v2650 = vsub.f32 %v1084, %v2570
      %v2651 = vsub.f32 %v1089, %v2571
      %v2652 = vsub.f32 %v1092, %v2572
      %v2653 = vmul.f32 %v2633, 1.442695
      %v2654 = vpow.pop %v2653
      %v2655 = vmul.f32 %v2634, 1.442695
      %v2656 = vpow.pop %v2655
      %v2657 = vmul.f32 %v2635, 1.442695
      %v2658 = vpow.pop %v2657
      %v2659 = vmul.f32 %v2636, 1.442695
      %v2660 = vpow.pop %v2659
      %v2661 = vmul.f32 %v2637, 1.442695
      %v2662 = vpow.pop %v2661
      %v2663 = vmul.f32 %v2638, 1.442695
      %v2664 = vpow.pop %v2663
      %v2665 = vmul.f32 %v2639, 1.442695
      %v2666 = vpow.pop %v2665
      %v2667 = vmul.f32 %v2640, 1.442695
      %v2668 = vpow.pop %v2667
      %v2669 = vmul.f32 %v2641, 1.442695
      %v2670 = vpow.pop %v2669
      %v2671 = vmul.f32 %v2642, 1.442695
      %v2672 = vpow.pop %v2671
      %v2673 = vmul.f32 %v2643, 1.442695
      %v2674 = vpow.pop %v2673
      %v2675 = vmul.f32 %v2644, 1.442695
      %v2676 = vpow.pop %v2675
      %v2677 = vmul.f32 %v2645, 1.442695
      %v2678 = vpow.pop %v2677
      %v2679 = vmul.f32 %v2646, 1.442695
      %v2680 = vpow.pop %v2679
      %v2681 = vmul.f32 %v2647, 1.442695
      %v2682 = vpow.pop %v2681
      %v2683 = vmul.f32 %v2648, 1.442695
      %v2684 = vpow.pop %v2683
      %v2685 = vmul.f32 %v2649, 1.442695
      %v2686 = vpow.pop %v2685
      %v2687 = vmul.f32 %v2650, 1.442695
      %v2688 = vpow.pop %v2687
      %v2689 = vmul.f32 %v2651, 1.442695
      %v2690 = vpow.pop %v2689
      %v2691 = vmul.f32 %v2652, 1.442695
      %v2692 = vpow.pop %v2691
      %v2693 = vsub.f32 %v1240, %v2553
      %v2694 = vsub.f32 %v1243, %v2554
      %v2695 = vsub.f32 %v1248, %v2555
      %v2696 = vsub.f32 %v1251, %v2556
      %v2697 = vsub.f32 %v1256, %v2557
      %v2698 = vsub.f32 %v1259, %v2558
      %v2699 = vsub.f32 %v1264, %v2559
      %v2700 = vsub.f32 %v1267, %v2560
      %v2701 = vsub.f32 %v1272, %v2561
      %v2702 = vsub.f32 %v1275, %v2562
      %v2703 = vsub.f32 %v1280, %v2563
      %v2704 = vsub.f32 %v1283, %v2564
      %v2705 = vsub.f32 %v1288, %v2565
      %v2706 = vsub.f32 %v1291, %v2566
      %v2707 = vsub.f32 %v1296, %v2567
      %v2708 = vsub.f32 %v1299, %v2568
      %v2709 = vsub.f32 %v1304, %v2569
      %v2710 = vsub.f32 %v1307, %v2570
      %v2711 = vsub.f32 %v1312, %v2571
      %v2712 = vsub.f32 %v1315, %v2572
      %v2713 = vmul.f32 %v2693, 1.442695
      %v2714 = vpow.pop %v2713
      %v2715 = vmul.f32 %v2694, 1.442695
      %v2716 = vpow.pop %v2715
      %v2717 = vmul.f32 %v2695, 1.442695
      %v2718 = vpow.pop %v2717
      %v2719 = vmul.f32 %v2696, 1.442695
      %v2720 = vpow.pop %v2719
      %v2721 = vmul.f32 %v2697, 1.442695
      %v2722 = vpow.pop %v2721
      %v2723 = vmul.f32 %v2698, 1.442695
      %v2724 = vpow.pop %v2723
      %v2725 = vmul.f32 %v2699, 1.442695
      %v2726 = vpow.pop %v2725
      %v2727 = vmul.f32 %v2700, 1.442695
      %v2728 = vpow.pop %v2727
      %v2729 = vmul.f32 %v2701, 1.442695
      %v2730 = vpow.pop %v2729
      %v2731 = vmul.f32 %v2702, 1.442695
      %v2732 = vpow.pop %v2731
      %v2733 = vmul.f32 %v2703, 1.442695
      %v2734 = vpow.pop %v2733
      %v2735 = vmul.f32 %v2704, 1.442695
      %v2736 = vpow.pop %v2735
      %v2737 = vmul.f32 %v2705, 1.442695
      %v2738 = vpow.pop %v2737
      %v2739 = vmul.f32 %v2706, 1.442695
      %v2740 = vpow.pop %v2739
      %v2741 = vmul.f32 %v2707, 1.442695
      %v2742 = vpow.pop %v2741
      %v2743 = vmul.f32 %v2708, 1.442695
      %v2744 = vpow.pop %v2743
      %v2745 = vmul.f32 %v2709, 1.442695
      %v2746 = vpow.pop %v2745
      %v2747 = vmul.f32 %v2710, 1.442695
      %v2748 = vpow.pop %v2747
      %v2749 = vmul.f32 %v2711, 1.442695
      %v2750 = vpow.pop %v2749
      %v2751 = vmul.f32 %v2712, 1.442695
      %v2752 = vpow.pop %v2751
      %v2753 = vsub.f32 %v1463, %v2553
      %v2754 = vsub.f32 %v1466, %v2554
      %v2755 = vsub.f32 %v1471, %v2555
      %v2756 = vsub.f32 %v1474, %v2556
      %v2757 = vsub.f32 %v1479, %v2557
      %v2758 = vsub.f32 %v1482, %v2558
      %v2759 = vsub.f32 %v1487, %v2559
      %v2760 = vsub.f32 %v1490, %v2560
      %v2761 = vsub.f32 %v1495, %v2561
      %v2762 = vsub.f32 %v1498, %v2562
      %v2763 = vsub.f32 %v1503, %v2563
      %v2764 = vsub.f32 %v1506, %v2564
      %v2765 = vsub.f32 %v1511, %v2565
      %v2766 = vsub.f32 %v1514, %v2566
      %v2767 = vsub.f32 %v1519, %v2567
      %v2768 = vsub.f32 %v1522, %v2568
      %v2769 = vsub.f32 %v1527, %v2569
      %v2770 = vsub.f32 %v1530, %v2570
      %v2771 = vsub.f32 %v1535, %v2571
      %v2772 = vsub.f32 %v1538, %v2572
      %v2773 = vmul.f32 %v2753, 1.442695
      %v2774 = vpow.pop %v2773
      %v2775 = vmul.f32 %v2754, 1.442695
      %v2776 = vpow.pop %v2775
      %v2777 = vmul.f32 %v2755, 1.442695
      %v2778 = vpow.pop %v2777
      %v2779 = vmul.f32 %v2756, 1.442695
      %v2780 = vpow.pop %v2779
      %v2781 = vmul.f32 %v2757, 1.442695
      %v2782 = vpow.pop %v2781
      %v2783 = vmul.f32 %v2758, 1.442695
      %v2784 = vpow.pop %v2783
      %v2785 = vmul.f32 %v2759, 1.442695
      %v2786 = vpow.pop %v2785
      %v2787 = vmul.f32 %v2760, 1.442695
      %v2788 = vpow.pop %v2787
      %v2789 = vmul.f32 %v2761, 1.442695
      %v2790 = vpow.pop %v2789
      %v2791 = vmul.f32 %v2762, 1.442695
      %v2792 = vpow.pop %v2791
      %v2793 = vmul.f32 %v2763, 1.442695
      %v2794 = vpow.pop %v2793
      %v2795 = vmul.f32 %v2764, 1.442695
      %v2796 = vpow.pop %v2795
      %v2797 = vmul.f32 %v2765, 1.442695
      %v2798 = vpow.pop %v2797
      %v2799 = vmul.f32 %v2766, 1.442695
      %v2800 = vpow.pop %v2799
      %v2801 = vmul.f32 %v2767, 1.442695
      %v2802 = vpow.pop %v2801
      %v2803 = vmul.f32 %v2768, 1.442695
      %v2804 = vpow.pop %v2803
      %v2805 = vmul.f32 %v2769, 1.442695
      %v2806 = vpow.pop %v2805
      %v2807 = vmul.f32 %v2770, 1.442695
      %v2808 = vpow.pop %v2807
      %v2809 = vmul.f32 %v2771, 1.442695
      %v2810 = vpow.pop %v2809
      %v2811 = vmul.f32 %v2772, 1.442695
      %v2812 = vpow.pop %v2811
      %v2813 = vsub.f32 %v1686, %v2553
      %v2814 = vsub.f32 %v1689, %v2554
      %v2815 = vsub.f32 %v1694, %v2555
      %v2816 = vsub.f32 %v1697, %v2556
      %v2817 = vsub.f32 %v1702, %v2557
      %v2818 = vsub.f32 %v1705, %v2558
      %v2819 = vsub.f32 %v1710, %v2559
      %v2820 = vsub.f32 %v1713, %v2560
      %v2821 = vsub.f32 %v1718, %v2561
      %v2822 = vsub.f32 %v1721, %v2562
      %v2823 = vsub.f32 %v1726, %v2563
      %v2824 = vsub.f32 %v1729, %v2564
      %v2825 = vsub.f32 %v1734, %v2565
      %v2826 = vsub.f32 %v1737, %v2566
      %v2827 = vsub.f32 %v1742, %v2567
      %v2828 = vsub.f32 %v1745, %v2568
      %v2829 = vsub.f32 %v1750, %v2569
      %v2830 = vsub.f32 %v1753, %v2570
      %v2831 = vsub.f32 %v1758, %v2571
      %v2832 = vsub.f32 %v1761, %v2572
      %v2833 = vmul.f32 %v2813, 1.442695
      %v2834 = vpow.pop %v2833
      %v2835 = vmul.f32 %v2814, 1.442695
      %v2836 = vpow.pop %v2835
      %v2837 = vmul.f32 %v2815, 1.442695
      %v2838 = vpow.pop %v2837
      %v2839 = vmul.f32 %v2816, 1.442695
      %v2840 = vpow.pop %v2839
      %v2841 = vmul.f32 %v2817, 1.442695
      %v2842 = vpow.pop %v2841
      %v2843 = vmul.f32 %v2818, 1.442695
      %v2844 = vpow.pop %v2843
      %v2845 = vmul.f32 %v2819, 1.442695
      %v2846 = vpow.pop %v2845
      %v2847 = vmul.f32 %v2820, 1.442695
      %v2848 = vpow.pop %v2847
      %v2849 = vmul.f32 %v2821, 1.442695
      %v2850 = vpow.pop %v2849
      %v2851 = vmul.f32 %v2822, 1.442695
      %v2852 = vpow.pop %v2851
      %v2853 = vmul.f32 %v2823, 1.442695
      %v2854 = vpow.pop %v2853
      %v2855 = vmul.f32 %v2824, 1.442695
      %v2856 = vpow.pop %v2855
      %v2857 = vmul.f32 %v2825, 1.442695
      %v2858 = vpow.pop %v2857
      %v2859 = vmul.f32 %v2826, 1.442695
      %v2860 = vpow.pop %v2859
      %v2861 = vmul.f32 %v2827, 1.442695
      %v2862 = vpow.pop %v2861
      %v2863 = vmul.f32 %v2828, 1.442695
      %v2864 = vpow.pop %v2863
      %v2865 = vmul.f32 %v2829, 1.442695
      %v2866 = vpow.pop %v2865
      %v2867 = vmul.f32 %v2830, 1.442695
      %v2868 = vpow.pop %v2867
      %v2869 = vmul.f32 %v2831, 1.442695
      %v2870 = vpow.pop %v2869
      %v2871 = vmul.f32 %v2832, 1.442695
      %v2872 = vpow.pop %v2871
      %v2873 = vsub.f32 %v1909, %v2553
      %v2874 = vsub.f32 %v1912, %v2554
      %v2875 = vsub.f32 %v1917, %v2555
      %v2876 = vsub.f32 %v1920, %v2556
      %v2877 = vsub.f32 %v1925, %v2557
      %v2878 = vsub.f32 %v1928, %v2558
      %v2879 = vsub.f32 %v1933, %v2559
      %v2880 = vsub.f32 %v1936, %v2560
      %v2881 = vsub.f32 %v1941, %v2561
      %v2882 = vsub.f32 %v1944, %v2562
      %v2883 = vsub.f32 %v1949, %v2563
      %v2884 = vsub.f32 %v1952, %v2564
      %v2885 = vsub.f32 %v1957, %v2565
      %v2886 = vsub.f32 %v1960, %v2566
      %v2887 = vsub.f32 %v1965, %v2567
      %v2888 = vsub.f32 %v1968, %v2568
      %v2889 = vsub.f32 %v1973, %v2569
      %v2890 = vsub.f32 %v1976, %v2570
      %v2891 = vsub.f32 %v1981, %v2571
      %v2892 = vsub.f32 %v1984, %v2572
      %v2893 = vmul.f32 %v2873, 1.442695
      %v2894 = vpow.pop %v2893
      %v2895 = vmul.f32 %v2874, 1.442695
      %v2896 = vpow.pop %v2895
      %v2897 = vmul.f32 %v2875, 1.442695
      %v2898 = vpow.pop %v2897
      %v2899 = vmul.f32 %v2876, 1.442695
      %v2900 = vpow.pop %v2899
      %v2901 = vmul.f32 %v2877, 1.442695
      %v2902 = vpow.pop %v2901
      %v2903 = vmul.f32 %v2878, 1.442695
      %v2904 = vpow.pop %v2903
      %v2905 = vmul.f32 %v2879, 1.442695
      %v2906 = vpow.pop %v2905
      %v2907 = vmul.f32 %v2880, 1.442695
      %v2908 = vpow.pop %v2907
      %v2909 = vmul.f32 %v2881, 1.442695
      %v2910 = vpow.pop %v2909
      %v2911 = vmul.f32 %v2882, 1.442695
      %v2912 = vpow.pop %v2911
      %v2913 = vmul.f32 %v2883, 1.442695
      %v2914 = vpow.pop %v2913
      %v2915 = vmul.f32 %v2884, 1.442695
      %v2916 = vpow.pop %v2915
      %v2917 = vmul.f32 %v2885, 1.442695
      %v2918 = vpow.pop %v2917
      %v2919 = vmul.f32 %v2886, 1.442695
      %v2920 = vpow.pop %v2919
      %v2921 = vmul.f32 %v2887, 1.442695
      %v2922 = vpow.pop %v2921
      %v2923 = vmul.f32 %v2888, 1.442695
      %v2924 = vpow.pop %v2923
      %v2925 = vmul.f32 %v2889, 1.442695
      %v2926 = vpow.pop %v2925
      %v2927 = vmul.f32 %v2890, 1.442695
      %v2928 = vpow.pop %v2927
      %v2929 = vmul.f32 %v2891, 1.442695
      %v2930 = vpow.pop %v2929
      %v2931 = vmul.f32 %v2892, 1.442695
      %v2932 = vpow.pop %v2931
      %v2933 = vsub.f32 %v2132, %v2553
      %v2934 = vsub.f32 %v2135, %v2554
      %v2935 = vsub.f32 %v2140, %v2555
      %v2936 = vsub.f32 %v2143, %v2556
      %v2937 = vsub.f32 %v2148, %v2557
      %v2938 = vsub.f32 %v2151, %v2558
      %v2939 = vsub.f32 %v2156, %v2559
      %v2940 = vsub.f32 %v2159, %v2560
      %v2941 = vsub.f32 %v2164, %v2561
      %v2942 = vsub.f32 %v2167, %v2562
      %v2943 = vsub.f32 %v2172, %v2563
      %v2944 = vsub.f32 %v2175, %v2564
      %v2945 = vsub.f32 %v2180, %v2565
      %v2946 = vsub.f32 %v2183, %v2566
      %v2947 = vsub.f32 %v2188, %v2567
      %v2948 = vsub.f32 %v2191, %v2568
      %v2949 = vsub.f32 %v2196, %v2569
      %v2950 = vsub.f32 %v2199, %v2570
      %v2951 = vsub.f32 %v2204, %v2571
      %v2952 = vsub.f32 %v2207, %v2572
      %v2953 = vmul.f32 %v2933, 1.442695
      %v2954 = vpow.pop %v2953
      %v2955 = vmul.f32 %v2934, 1.442695
      %v2956 = vpow.pop %v2955
      %v2957 = vmul.f32 %v2935, 1.442695
      %v2958 = vpow.pop %v2957
      %v2959 = vmul.f32 %v2936, 1.442695
      %v2960 = vpow.pop %v2959
      %v2961 = vmul.f32 %v2937, 1.442695
      %v2962 = vpow.pop %v2961
      %v2963 = vmul.f32 %v2938, 1.442695
      %v2964 = vpow.pop %v2963
      %v2965 = vmul.f32 %v2939, 1.442695
      %v2966 = vpow.pop %v2965
      %v2967 = vmul.f32 %v2940, 1.442695
      %v2968 = vpow.pop %v2967
      %v2969 = vmul.f32 %v2941, 1.442695
      %v2970 = vpow.pop %v2969
      %v2971 = vmul.f32 %v2942, 1.442695
      %v2972 = vpow.pop %v2971
      %v2973 = vmul.f32 %v2943, 1.442695
      %v2974 = vpow.pop %v2973
      %v2975 = vmul.f32 %v2944, 1.442695
      %v2976 = vpow.pop %v2975
      %v2977 = vmul.f32 %v2945, 1.442695
      %v2978 = vpow.pop %v2977
      %v2979 = vmul.f32 %v2946, 1.442695
      %v2980 = vpow.pop %v2979
      %v2981 = vmul.f32 %v2947, 1.442695
      %v2982 = vpow.pop %v2981
      %v2983 = vmul.f32 %v2948, 1.442695
      %v2984 = vpow.pop %v2983
      %v2985 = vmul.f32 %v2949, 1.442695
      %v2986 = vpow.pop %v2985
      %v2987 = vmul.f32 %v2950, 1.442695
      %v2988 = vpow.pop %v2987
      %v2989 = vmul.f32 %v2951, 1.442695
      %v2990 = vpow.pop %v2989
      %v2991 = vmul.f32 %v2952, 1.442695
      %v2992 = vpow.pop %v2991
      %v2993 = vsub.f32 %v2355, %v2553
      %v2994 = vsub.f32 %v2358, %v2554
      %v2995 = vsub.f32 %v2363, %v2555
      %v2996 = vsub.f32 %v2366, %v2556
      %v2997 = vsub.f32 %v2371, %v2557
      %v2998 = vsub.f32 %v2374, %v2558
      %v2999 = vsub.f32 %v2379, %v2559
      %v3000 = vsub.f32 %v2382, %v2560
      %v3001 = vsub.f32 %v2387, %v2561
      %v3002 = vsub.f32 %v2390, %v2562
      %v3003 = vsub.f32 %v2395, %v2563
      %v3004 = vsub.f32 %v2398, %v2564
      %v3005 = vsub.f32 %v2403, %v2565
      %v3006 = vsub.f32 %v2406, %v2566
      %v3007 = vsub.f32 %v2411, %v2567
      %v3008 = vsub.f32 %v2414, %v2568
      %v3009 = vsub.f32 %v2419, %v2569
      %v3010 = vsub.f32 %v2422, %v2570
      %v3011 = vsub.f32 %v2427, %v2571
      %v3012 = vsub.f32 %v2430, %v2572
      %v3013 = vmul.f32 %v2993, 1.442695
      %v3014 = vpow.pop %v3013
      %v3015 = vmul.f32 %v2994, 1.442695
      %v3016 = vpow.pop %v3015
      %v3017 = vmul.f32 %v2995, 1.442695
      %v3018 = vpow.pop %v3017
      %v3019 = vmul.f32 %v2996, 1.442695
      %v3020 = vpow.pop %v3019
      %v3021 = vmul.f32 %v2997, 1.442695
      %v3022 = vpow.pop %v3021
      %v3023 = vmul.f32 %v2998, 1.442695
      %v3024 = vpow.pop %v3023
      %v3025 = vmul.f32 %v2999, 1.442695
      %v3026 = vpow.pop %v3025
      %v3027 = vmul.f32 %v3000, 1.442695
      %v3028 = vpow.pop %v3027
      %v3029 = vmul.f32 %v3001, 1.442695
      %v3030 = vpow.pop %v3029
      %v3031 = vmul.f32 %v3002, 1.442695
      %v3032 = vpow.pop %v3031
      %v3033 = vmul.f32 %v3003, 1.442695
      %v3034 = vpow.pop %v3033
      %v3035 = vmul.f32 %v3004, 1.442695
      %v3036 = vpow.pop %v3035
      %v3037 = vmul.f32 %v3005, 1.442695
      %v3038 = vpow.pop %v3037
      %v3039 = vmul.f32 %v3006, 1.442695
      %v3040 = vpow.pop %v3039
      %v3041 = vmul.f32 %v3007, 1.442695
      %v3042 = vpow.pop %v3041
      %v3043 = vmul.f32 %v3008, 1.442695
      %v3044 = vpow.pop %v3043
      %v3045 = vmul.f32 %v3009, 1.442695
      %v3046 = vpow.pop %v3045
      %v3047 = vmul.f32 %v3010, 1.442695
      %v3048 = vpow.pop %v3047
      %v3049 = vmul.f32 %v3011, 1.442695
      %v3050 = vpow.pop %v3049
      %v3051 = vmul.f32 %v3012, 1.442695
      %v3052 = vpow.pop %v3051
      %v3053 = vadd.f32 %v2594, %v2654
      %v3054 = vadd.f32 %v2596, %v2656
      %v3055 = vadd.f32 %v2598, %v2658
      %v3056 = vadd.f32 %v2600, %v2660
      %v3057 = vadd.f32 %v2602, %v2662
      %v3058 = vadd.f32 %v2604, %v2664
      %v3059 = vadd.f32 %v2606, %v2666
      %v3060 = vadd.f32 %v2608, %v2668
      %v3061 = vadd.f32 %v2610, %v2670
      %v3062 = vadd.f32 %v2612, %v2672
      %v3063 = vadd.f32 %v2614, %v2674
      %v3064 = vadd.f32 %v2616, %v2676
      %v3065 = vadd.f32 %v2618, %v2678
      %v3066 = vadd.f32 %v2620, %v2680
      %v3067 = vadd.f32 %v2622, %v2682
      %v3068 = vadd.f32 %v2624, %v2684
      %v3069 = vadd.f32 %v2626, %v2686
      %v3070 = vadd.f32 %v2628, %v2688
      %v3071 = vadd.f32 %v2630, %v2690
      %v3072 = vadd.f32 %v2632, %v2692
      %v3073 = vadd.f32 %v3053, %v2714
      %v3074 = vadd.f32 %v3054, %v2716
      %v3075 = vadd.f32 %v3055, %v2718
      %v3076 = vadd.f32 %v3056, %v2720
      %v3077 = vadd.f32 %v3057, %v2722
      %v3078 = vadd.f32 %v3058, %v2724
      %v3079 = vadd.f32 %v3059, %v2726
      %v3080 = vadd.f32 %v3060, %v2728
      %v3081 = vadd.f32 %v3061, %v2730
      %v3082 = vadd.f32 %v3062, %v2732
      %v3083 = vadd.f32 %v3063, %v2734
      %v3084 = vadd.f32 %v3064, %v2736
      %v3085 = vadd.f32 %v3065, %v2738
      %v3086 = vadd.f32 %v3066, %v2740
      %v3087 = vadd.f32 %v3067, %v2742
      %v3088 = vadd.f32 %v3068, %v2744
      %v3089 = vadd.f32 %v3069, %v2746
      %v3090 = vadd.f32 %v3070, %v2748
      %v3091 = vadd.f32 %v3071, %v2750
      %v3092 = vadd.f32 %v3072, %v2752
      %v3093 = vadd.f32 %v3073, %v2774
      %v3094 = vadd.f32 %v3074, %v2776
      %v3095 = vadd.f32 %v3075, %v2778
      %v3096 = vadd.f32 %v3076, %v2780
      %v3097 = vadd.f32 %v3077, %v2782
      %v3098 = vadd.f32 %v3078, %v2784
      %v3099 = vadd.f32 %v3079, %v2786
      %v3100 = vadd.f32 %v3080, %v2788
      %v3101 = vadd.f32 %v3081, %v2790
      %v3102 = vadd.f32 %v3082, %v2792
      %v3103 = vadd.f32 %v3083, %v2794
      %v3104 = vadd.f32 %v3084, %v2796
      %v3105 = vadd.f32 %v3085, %v2798
      %v3106 = vadd.f32 %v3086, %v2800
      %v3107 = vadd.f32 %v3087, %v2802
      %v3108 = vadd.f32 %v3088, %v2804
      %v3109 = vadd.f32 %v3089, %v2806
      %v3110 = vadd.f32 %v3090, %v2808
      %v3111 = vadd.f32 %v3091, %v2810
      %v3112 = vadd.f32 %v3092, %v2812
      %v3113 = vadd.f32 %v3093, %v2834
      %v3114 = vadd.f32 %v3094, %v2836
      %v3115 = vadd.f32 %v3095, %v2838
      %v3116 = vadd.f32 %v3096, %v2840
      %v3117 = vadd.f32 %v3097, %v2842
      %v3118 = vadd.f32 %v3098, %v2844
      %v3119 = vadd.f32 %v3099, %v2846
      %v3120 = vadd.f32 %v3100, %v2848
      %v3121 = vadd.f32 %v3101, %v2850
      %v3122 = vadd.f32 %v3102, %v2852
      %v3123 = vadd.f32 %v3103, %v2854
      %v3124 = vadd.f32 %v3104, %v2856
      %v3125 = vadd.f32 %v3105, %v2858
      %v3126 = vadd.f32 %v3106, %v2860
      %v3127 = vadd.f32 %v3107, %v2862
      %v3128 = vadd.f32 %v3108, %v2864
      %v3129 = vadd.f32 %v3109, %v2866
      %v3130 = vadd.f32 %v3110, %v2868
      %v3131 = vadd.f32 %v3111, %v2870
      %v3132 = vadd.f32 %v3112, %v2872
      %v3133 = vadd.f32 %v3113, %v2894
      %v3134 = vadd.f32 %v3114, %v2896
      %v3135 = vadd.f32 %v3115, %v2898
      %v3136 = vadd.f32 %v3116, %v2900
      %v3137 = vadd.f32 %v3117, %v2902
      %v3138 = vadd.f32 %v3118, %v2904
      %v3139 = vadd.f32 %v3119, %v2906
      %v3140 = vadd.f32 %v3120, %v2908
      %v3141 = vadd.f32 %v3121, %v2910
      %v3142 = vadd.f32 %v3122, %v2912
      %v3143 = vadd.f32 %v3123, %v2914
      %v3144 = vadd.f32 %v3124, %v2916
      %v3145 = vadd.f32 %v3125, %v2918
      %v3146 = vadd.f32 %v3126, %v2920
      %v3147 = vadd.f32 %v3127, %v2922
      %v3148 = vadd.f32 %v3128, %v2924
      %v3149 = vadd.f32 %v3129, %v2926
      %v3150 = vadd.f32 %v3130, %v2928
      %v3151 = vadd.f32 %v3131, %v2930
      %v3152 = vadd.f32 %v3132, %v2932
      %v3153 = vadd.f32 %v3133, %v2954
      %v3154 = vadd.f32 %v3134, %v2956
      %v3155 = vadd.f32 %v3135, %v2958
      %v3156 = vadd.f32 %v3136, %v2960
      %v3157 = vadd.f32 %v3137, %v2962
      %v3158 = vadd.f32 %v3138, %v2964
      %v3159 = vadd.f32 %v3139, %v2966
      %v3160 = vadd.f32 %v3140, %v2968
      %v3161 = vadd.f32 %v3141, %v2970
      %v3162 = vadd.f32 %v3142, %v2972
      %v3163 = vadd.f32 %v3143, %v2974
      %v3164 = vadd.f32 %v3144, %v2976
      %v3165 = vadd.f32 %v3145, %v2978
      %v3166 = vadd.f32 %v3146, %v2980
      %v3167 = vadd.f32 %v3147, %v2982
      %v3168 = vadd.f32 %v3148, %v2984
      %v3169 = vadd.f32 %v3149, %v2986
      %v3170 = vadd.f32 %v3150, %v2988
      %v3171 = vadd.f32 %v3151, %v2990
      %v3172 = vadd.f32 %v3152, %v2992
      %v3173 = vadd.f32 %v3153, %v3014
      %v3174 = vadd.f32 %v3154, %v3016
      %v3175 = vadd.f32 %v3155, %v3018
      %v3176 = vadd.f32 %v3156, %v3020
      %v3177 = vadd.f32 %v3157, %v3022
      %v3178 = vadd.f32 %v3158, %v3024
      %v3179 = vadd.f32 %v3159, %v3026
      %v3180 = vadd.f32 %v3160, %v3028
      %v3181 = vadd.f32 %v3161, %v3030
      %v3182 = vadd.f32 %v3162, %v3032
      %v3183 = vadd.f32 %v3163, %v3034
      %v3184 = vadd.f32 %v3164, %v3036
      %v3185 = vadd.f32 %v3165, %v3038
      %v3186 = vadd.f32 %v3166, %v3040
      %v3187 = vadd.f32 %v3167, %v3042
      %v3188 = vadd.f32 %v3168, %v3044
      %v3189 = vadd.f32 %v3169, %v3046
      %v3190 = vadd.f32 %v3170, %v3048
      %v3191 = vadd.f32 %v3171, %v3050
      %v3192 = vadd.f32 %v3172, %v3052
      %v3193 = vmul.f32 %v2594, %v587
      %v3194 = vmul.f32 %v2596, %v590
      %v3195 = vmul.f32 %v2598, %v595
      %v3196 = vmul.f32 %v2600, %v598
      %v3197 = vmul.f32 %v2602, %v603
      %v3198 = vmul.f32 %v2604, %v606
      %v3199 = vmul.f32 %v2606, %v611
      %v3200 = vmul.f32 %v2608, %v614
      %v3201 = vmul.f32 %v2610, %v619
      %v3202 = vmul.f32 %v2612, %v622
      %v3203 = vmul.f32 %v2614, %v627
      %v3204 = vmul.f32 %v2616, %v630
      %v3205 = vmul.f32 %v2618, %v635
      %v3206 = vmul.f32 %v2620, %v638
      %v3207 = vmul.f32 %v2622, %v643
      %v3208 = vmul.f32 %v2624, %v646
      %v3209 = vmul.f32 %v2626, %v651
      %v3210 = vmul.f32 %v2628, %v654
      %v3211 = vmul.f32 %v2630, %v659
      %v3212 = vmul.f32 %v2632, %v662
      %v3213 = vmul.f32 %v2654, %v913
      %v3214 = vmul.f32 %v2656, %v915
      %v3215 = vmul.f32 %v2658, %v917
      %v3216 = vmul.f32 %v2660, %v919
      %v3217 = vmul.f32 %v2662, %v921
      %v3218 = vmul.f32 %v2664, %v923
      %v3219 = vmul.f32 %v2666, %v925
      %v3220 = vmul.f32 %v2668, %v927
      %v3221 = vmul.f32 %v2670, %v929
      %v3222 = vmul.f32 %v2672, %v931
      %v3223 = vmul.f32 %v2674, %v933
      %v3224 = vmul.f32 %v2676, %v935
      %v3225 = vmul.f32 %v2678, %v937
      %v3226 = vmul.f32 %v2680, %v939
      %v3227 = vmul.f32 %v2682, %v941
      %v3228 = vmul.f32 %v2684, %v943
      %v3229 = vmul.f32 %v2686, %v945
      %v3230 = vmul.f32 %v2688, %v947
      %v3231 = vmul.f32 %v2690, %v949
      %v3232 = vmul.f32 %v2692, %v951
      %v3233 = vadd.f32 %v3193, %v3213
      %v3234 = vadd.f32 %v3194, %v3214
      %v3235 = vadd.f32 %v3195, %v3215
      %v3236 = vadd.f32 %v3196, %v3216
      %v3237 = vadd.f32 %v3197, %v3217
      %v3238 = vadd.f32 %v3198, %v3218
      %v3239 = vadd.f32 %v3199, %v3219
      %v3240 = vadd.f32 %v3200, %v3220
      %v3241 = vadd.f32 %v3201, %v3221
      %v3242 = vadd.f32 %v3202, %v3222
      %v3243 = vadd.f32 %v3203, %v3223
      %v3244 = vadd.f32 %v3204, %v3224
      %v3245 = vadd.f32 %v3205, %v3225
      %v3246 = vadd.f32 %v3206, %v3226
      %v3247 = vadd.f32 %v3207, %v3227
      %v3248 = vadd.f32 %v3208, %v3228
      %v3249 = vadd.f32 %v3209, %v3229
      %v3250 = vadd.f32 %v3210, %v3230
      %v3251 = vadd.f32 %v3211, %v3231
      %v3252 = vadd.f32 %v3212, %v3232
      %v3253 = vmul.f32 %v2714, %v1136
      %v3254 = vmul.f32 %v2716, %v1138
      %v3255 = vmul.f32 %v2718, %v1140
      %v3256 = vmul.f32 %v2720, %v1142
      %v3257 = vmul.f32 %v2722, %v1144
      %v3258 = vmul.f32 %v2724, %v1146
      %v3259 = vmul.f32 %v2726, %v1148
      %v3260 = vmul.f32 %v2728, %v1150
      %v3261 = vmul.f32 %v2730, %v1152
      %v3262 = vmul.f32 %v2732, %v1154
      %v3263 = vmul.f32 %v2734, %v1156
      %v3264 = vmul.f32 %v2736, %v1158
      %v3265 = vmul.f32 %v2738, %v1160
      %v3266 = vmul.f32 %v2740, %v1162
      %v3267 = vmul.f32 %v2742, %v1164
      %v3268 = vmul.f32 %v2744, %v1166
      %v3269 = vmul.f32 %v2746, %v1168
      %v3270 = vmul.f32 %v2748, %v1170
      %v3271 = vmul.f32 %v2750, %v1172
      %v3272 = vmul.f32 %v2752, %v1174
      %v3273 = vadd.f32 %v3233, %v3253
      %v3274 = vadd.f32 %v3234, %v3254
      %v3275 = vadd.f32 %v3235, %v3255
      %v3276 = vadd.f32 %v3236, %v3256
      %v3277 = vadd.f32 %v3237, %v3257
      %v3278 = vadd.f32 %v3238, %v3258
      %v3279 = vadd.f32 %v3239, %v3259
      %v3280 = vadd.f32 %v3240, %v3260
      %v3281 = vadd.f32 %v3241, %v3261
      %v3282 = vadd.f32 %v3242, %v3262
      %v3283 = vadd.f32 %v3243, %v3263
      %v3284 = vadd.f32 %v3244, %v3264
      %v3285 = vadd.f32 %v3245, %v3265
      %v3286 = vadd.f32 %v3246, %v3266
      %v3287 = vadd.f32 %v3247, %v3267
      %v3288 = vadd.f32 %v3248, %v3268
      %v3289 = vadd.f32 %v3249, %v3269
      %v3290 = vadd.f32 %v3250, %v3270
      %v3291 = vadd.f32 %v3251, %v3271
      %v3292 = vadd.f32 %v3252, %v3272
      %v3293 = vmul.f32 %v2774, %v1359
      %v3294 = vmul.f32 %v2776, %v1361
      %v3295 = vmul.f32 %v2778, %v1363
      %v3296 = vmul.f32 %v2780, %v1365
      %v3297 = vmul.f32 %v2782, %v1367
      %v3298 = vmul.f32 %v2784, %v1369
      %v3299 = vmul.f32 %v2786, %v1371
      %v3300 = vmul.f32 %v2788, %v1373
      %v3301 = vmul.f32 %v2790, %v1375
      %v3302 = vmul.f32 %v2792, %v1377
      %v3303 = vmul.f32 %v2794, %v1379
      %v3304 = vmul.f32 %v2796, %v1381
      %v3305 = vmul.f32 %v2798, %v1383
      %v3306 = vmul.f32 %v2800, %v1385
      %v3307 = vmul.f32 %v2802, %v1387
      %v3308 = vmul.f32 %v2804, %v1389
      %v3309 = vmul.f32 %v2806, %v1391
      %v3310 = vmul.f32 %v2808, %v1393
      %v3311 = vmul.f32 %v2810, %v1395
      %v3312 = vmul.f32 %v2812, %v1397
      %v3313 = vadd.f32 %v3273, %v3293
      %v3314 = vadd.f32 %v3274, %v3294
      %v3315 = vadd.f32 %v3275, %v3295
      %v3316 = vadd.f32 %v3276, %v3296
      %v3317 = vadd.f32 %v3277, %v3297
      %v3318 = vadd.f32 %v3278, %v3298
      %v3319 = vadd.f32 %v3279, %v3299
      %v3320 = vadd.f32 %v3280, %v3300
      %v3321 = vadd.f32 %v3281, %v3301
      %v3322 = vadd.f32 %v3282, %v3302
      %v3323 = vadd.f32 %v3283, %v3303
      %v3324 = vadd.f32 %v3284, %v3304
      %v3325 = vadd.f32 %v3285, %v3305
      %v3326 = vadd.f32 %v3286, %v3306
      %v3327 = vadd.f32 %v3287, %v3307
      %v3328 = vadd.f32 %v3288, %v3308
      %v3329 = vadd.f32 %v3289, %v3309
      %v3330 = vadd.f32 %v3290, %v3310
      %v3331 = vadd.f32 %v3291, %v3311
      %v3332 = vadd.f32 %v3292, %v3312
      %v3333 = vmul.f32 %v2834, %v1582
      %v3334 = vmul.f32 %v2836, %v1584
      %v3335 = vmul.f32 %v2838, %v1586
      %v3336 = vmul.f32 %v2840, %v1588
      %v3337 = vmul.f32 %v2842, %v1590
      %v3338 = vmul.f32 %v2844, %v1592
      %v3339 = vmul.f32 %v2846, %v1594
      %v3340 = vmul.f32 %v2848, %v1596
      %v3341 = vmul.f32 %v2850, %v1598
      %v3342 = vmul.f32 %v2852, %v1600
      %v3343 = vmul.f32 %v2854, %v1602
      %v3344 = vmul.f32 %v2856, %v1604
      %v3345 = vmul.f32 %v2858, %v1606
      %v3346 = vmul.f32 %v2860, %v1608
      %v3347 = vmul.f32 %v2862, %v1610
      %v3348 = vmul.f32 %v2864, %v1612
      %v3349 = vmul.f32 %v2866, %v1614
      %v3350 = vmul.f32 %v2868, %v1616
      %v3351 = vmul.f32 %v2870, %v1618
      %v3352 = vmul.f32 %v2872, %v1620
      %v3353 = vadd.f32 %v3313, %v3333
      %v3354 = vadd.f32 %v3314, %v3334
      %v3355 = vadd.f32 %v3315, %v3335
      %v3356 = vadd.f32 %v3316, %v3336
      %v3357 = vadd.f32 %v3317, %v3337
      %v3358 = vadd.f32 %v3318, %v3338
      %v3359 = vadd.f32 %v3319, %v3339
      %v3360 = vadd.f32 %v3320, %v3340
      %v3361 = vadd.f32 %v3321, %v3341
      %v3362 = vadd.f32 %v3322, %v3342
      %v3363 = vadd.f32 %v3323, %v3343
      %v3364 = vadd.f32 %v3324, %v3344
      %v3365 = vadd.f32 %v3325, %v3345
      %v3366 = vadd.f32 %v3326, %v3346
      %v3367 = vadd.f32 %v3327, %v3347
      %v3368 = vadd.f32 %v3328, %v3348
      %v3369 = vadd.f32 %v3329, %v3349
      %v3370 = vadd.f32 %v3330, %v3350
      %v3371 = vadd.f32 %v3331, %v3351
      %v3372 = vadd.f32 %v3332, %v3352
      %v3373 = vmul.f32 %v2894, %v1805
      %v3374 = vmul.f32 %v2896, %v1807
      %v3375 = vmul.f32 %v2898, %v1809
      %v3376 = vmul.f32 %v2900, %v1811
      %v3377 = vmul.f32 %v2902, %v1813
      %v3378 = vmul.f32 %v2904, %v1815
      %v3379 = vmul.f32 %v2906, %v1817
      %v3380 = vmul.f32 %v2908, %v1819
      %v3381 = vmul.f32 %v2910, %v1821
      %v3382 = vmul.f32 %v2912, %v1823
      %v3383 = vmul.f32 %v2914, %v1825
      %v3384 = vmul.f32 %v2916, %v1827
      %v3385 = vmul.f32 %v2918, %v1829
      %v3386 = vmul.f32 %v2920, %v1831
      %v3387 = vmul.f32 %v2922, %v1833
      %v3388 = vmul.f32 %v2924, %v1835
      %v3389 = vmul.f32 %v2926, %v1837
      %v3390 = vmul.f32 %v2928, %v1839
      %v3391 = vmul.f32 %v2930, %v1841
      %v3392 = vmul.f32 %v2932, %v1843
      %v3393 = vadd.f32 %v3353, %v3373
      %v3394 = vadd.f32 %v3354, %v3374
      %v3395 = vadd.f32 %v3355, %v3375
      %v3396 = vadd.f32 %v3356, %v3376
      %v3397 = vadd.f32 %v3357, %v3377
      %v3398 = vadd.f32 %v3358, %v3378
      %v3399 = vadd.f32 %v3359, %v3379
      %v3400 = vadd.f32 %v3360, %v3380
      %v3401 = vadd.f32 %v3361, %v3381
      %v3402 = vadd.f32 %v3362, %v3382
      %v3403 = vadd.f32 %v3363, %v3383
      %v3404 = vadd.f32 %v3364, %v3384
      %v3405 = vadd.f32 %v3365, %v3385
      %v3406 = vadd.f32 %v3366, %v3386
      %v3407 = vadd.f32 %v3367, %v3387
      %v3408 = vadd.f32 %v3368, %v3388
      %v3409 = vadd.f32 %v3369, %v3389
      %v3410 = vadd.f32 %v3370, %v3390
      %v3411 = vadd.f32 %v3371, %v3391
      %v3412 = vadd.f32 %v3372, %v3392
      %v3413 = vmul.f32 %v2954, %v2028
      %v3414 = vmul.f32 %v2956, %v2030
      %v3415 = vmul.f32 %v2958, %v2032
      %v3416 = vmul.f32 %v2960, %v2034
      %v3417 = vmul.f32 %v2962, %v2036
      %v3418 = vmul.f32 %v2964, %v2038
      %v3419 = vmul.f32 %v2966, %v2040
      %v3420 = vmul.f32 %v2968, %v2042
      %v3421 = vmul.f32 %v2970, %v2044
      %v3422 = vmul.f32 %v2972, %v2046
      %v3423 = vmul.f32 %v2974, %v2048
      %v3424 = vmul.f32 %v2976, %v2050
      %v3425 = vmul.f32 %v2978, %v2052
      %v3426 = vmul.f32 %v2980, %v2054
      %v3427 = vmul.f32 %v2982, %v2056
      %v3428 = vmul.f32 %v2984, %v2058
      %v3429 = vmul.f32 %v2986, %v2060
      %v3430 = vmul.f32 %v2988, %v2062
      %v3431 = vmul.f32 %v2990, %v2064
      %v3432 = vmul.f32 %v2992, %v2066
      %v3433 = vadd.f32 %v3393, %v3413
      %v3434 = vadd.f32 %v3394, %v3414
      %v3435 = vadd.f32 %v3395, %v3415
      %v3436 = vadd.f32 %v3396, %v3416
      %v3437 = vadd.f32 %v3397, %v3417
      %v3438 = vadd.f32 %v3398, %v3418
      %v3439 = vadd.f32 %v3399, %v3419
      %v3440 = vadd.f32 %v3400, %v3420
      %v3441 = vadd.f32 %v3401, %v3421
      %v3442 = vadd.f32 %v3402, %v3422
      %v3443 = vadd.f32 %v3403, %v3423
      %v3444 = vadd.f32 %v3404, %v3424
      %v3445 = vadd.f32 %v3405, %v3425
      %v3446 = vadd.f32 %v3406, %v3426
      %v3447 = vadd.f32 %v3407, %v3427
      %v3448 = vadd.f32 %v3408, %v3428
      %v3449 = vadd.f32 %v3409, %v3429
      %v3450 = vadd.f32 %v3410, %v3430
      %v3451 = vadd.f32 %v3411, %v3431
      %v3452 = vadd.f32 %v3412, %v3432
      %v3453 = vmul.f32 %v3014, %v2251
      %v3454 = vmul.f32 %v3016, %v2253
      %v3455 = vmul.f32 %v3018, %v2255
      %v3456 = vmul.f32 %v3020, %v2257
      %v3457 = vmul.f32 %v3022, %v2259
      %v3458 = vmul.f32 %v3024, %v2261
      %v3459 = vmul.f32 %v3026, %v2263
      %v3460 = vmul.f32 %v3028, %v2265
      %v3461 = vmul.f32 %v3030, %v2267
      %v3462 = vmul.f32 %v3032, %v2269
      %v3463 = vmul.f32 %v3034, %v2271
      %v3464 = vmul.f32 %v3036, %v2273
      %v3465 = vmul.f32 %v3038, %v2275
      %v3466 = vmul.f32 %v3040, %v2277
      %v3467 = vmul.f32 %v3042, %v2279
      %v3468 = vmul.f32 %v3044, %v2281
      %v3469 = vmul.f32 %v3046, %v2283
      %v3470 = vmul.f32 %v3048, %v2285
      %v3471 = vmul.f32 %v3050, %v2287
      %v3472 = vmul.f32 %v3052, %v2289
      %v3473 = vadd.f32 %v3433, %v3453
      %v3474 = vadd.f32 %v3434, %v3454
      %v3475 = vadd.f32 %v3435, %v3455
      %v3476 = vadd.f32 %v3436, %v3456
      %v3477 = vadd.f32 %v3437, %v3457
      %v3478 = vadd.f32 %v3438, %v3458
      %v3479 = vadd.f32 %v3439, %v3459
      %v3480 = vadd.f32 %v3440, %v3460
      %v3481 = vadd.f32 %v3441, %v3461
      %v3482 = vadd.f32 %v3442, %v3462
      %v3483 = vadd.f32 %v3443, %v3463
      %v3484 = vadd.f32 %v3444, %v3464
      %v3485 = vadd.f32 %v3445, %v3465
      %v3486 = vadd.f32 %v3446, %v3466
      %v3487 = vadd.f32 %v3447, %v3467
      %v3488 = vadd.f32 %v3448, %v3468
      %v3489 = vadd.f32 %v3449, %v3469
      %v3490 = vadd.f32 %v3450, %v3470
      %v3491 = vadd.f32 %v3451, %v3471
      %v3492 = vadd.f32 %v3452, %v3472
      %v3493 = vrcp.pop %v3173
      %v3494 = vrcp.pop %v3174
      %v3495 = vrcp.pop %v3175
      %v3496 = vrcp.pop %v3176
      %v3497 = vrcp.pop %v3177
      %v3498 = vrcp.pop %v3178
      %v3499 = vrcp.pop %v3179
      %v3500 = vrcp.pop %v3180
      %v3501 = vrcp.pop %v3181
      %v3502 = vrcp.pop %v3182
      %v3503 = vrcp.pop %v3183
      %v3504 = vrcp.pop %v3184
      %v3505 = vrcp.pop %v3185
      %v3506 = vrcp.pop %v3186
      %v3507 = vrcp.pop %v3187
      %v3508 = vrcp.pop %v3188
      %v3509 = vrcp.pop %v3189
      %v3510 = vrcp.pop %v3190
      %v3511 = vrcp.pop %v3191
      %v3512 = vrcp.pop %v3192
      %v3513 = vmul.f32 %v3473, %v3493
      %v3514 = vmul.f32 %v3474, %v3494
      %v3515 = vmul.f32 %v3475, %v3495
      %v3516 = vmul.f32 %v3476, %v3496
      %v3517 = vmul.f32 %v3477, %v3497
      %v3518 = vmul.f32 %v3478, %v3498
      %v3519 = vmul.f32 %v3479, %v3499
      %v3520 = vmul.f32 %v3480, %v3500
      %v3521 = vmul.f32 %v3481, %v3501
      %v3522 = vmul.f32 %v3482, %v3502
      %v3523 = vmul.f32 %v3483, %v3503
      %v3524 = vmul.f32 %v3484, %v3504
      %v3525 = vmul.f32 %v3485, %v3505
      %v3526 = vmul.f32 %v3486, %v3506
      %v3527 = vmul.f32 %v3487, %v3507
      %v3528 = vmul.f32 %v3488, %v3508
      %v3529 = vmul.f32 %v3489, %v3509
      %v3530 = vmul.f32 %v3490, %v3510
      %v3531 = vmul.f32 %v3491, %v3511
      %v3532 = vmul.f32 %v3492, %v3512
      %v3533 = vpack.c.bf16 %v3514, %v3513
      %v3534 = vpack.c.bf16 %v3516, %v3515
      %v3535 = vpack.c.bf16 %v3518, %v3517
      %v3536 = vpack.c.bf16 %v3520, %v3519
      %v3537 = vpack.c.bf16 %v3522, %v3521
      %v3538 = vpack.c.bf16 %v3524, %v3523
      %v3539 = vpack.c.bf16 %v3526, %v3525
      %v3540 = vpack.c.bf16 %v3528, %v3527
      %v3541 = vpack.c.bf16 %v3530, %v3529
      %v3542 = vpack.c.bf16 %v3532, %v3531
      %v3543 = vld [vmem:[%s2] sm:$0xf]
      %v3544 = vld [vmem:[%s2 + $0x4] sm:$0xf]
      %v3545 = vld [vmem:[%s2 + $0x8] sm:$0xf]
      %v3546 = vld [vmem:[%s2 + $0xc] sm:$0xf]
      %v3547 = vld [vmem:[%s2 + $0x10] sm:$0xf]
      %v3548 = vld [vmem:[%s2 + $0x14] sm:$0xf]
      %v3549 = vld [vmem:[%s2 + $0x18] sm:$0xf]
      %v3550 = vld [vmem:[%s2 + $0x1c] sm:$0xf]
      %v3551 = vld [vmem:[%s2 + $0x20] sm:$0xf]
      %v3552 = vld [vmem:[%s2 + $0x24] sm:$0xf]
      %v3553 = vld [vmem:[%s2 + $0x28] sm:$0xf]
      %v3554 = vld [vmem:[%s2 + $0x2c] sm:$0xf]
      %v3555 = vld [vmem:[%s2 + $0x30] sm:$0xf]
      %v3556 = vld [vmem:[%s2 + $0x34] sm:$0xf]
      %v3557 = vld [vmem:[%s2 + $0x38] sm:$0xf]
      %v3558 = vld [vmem:[%s2 + $0x3c] sm:$0xf]
      %v3559 = vld [vmem:[%s3] sm:$0x1]
      %v3561 = vlaneseq
      %v3562 = vshrl.u32 %v3561, 7
      %v3563 = vsub.s32 0, %v3562
      %v3564 = vrot.slane %v3559, %v3563
      %v3582 = vunpack.c.l.b16 %v3543
      %v3583 = vunpack.c.l.b16 %v3544
      %v3584 = vunpack.c.l.b16 %v3545
      %v3585 = vunpack.c.l.b16 %v3546
      %v3586 = vunpack.c.l.b16 %v3547
      %v3587 = vunpack.c.l.b16 %v3548
      %v3588 = vunpack.c.l.b16 %v3549
      %v3589 = vunpack.c.l.b16 %v3550
      %v3590 = vunpack.c.l.b16 %v3551
      %v3591 = vunpack.c.l.b16 %v3552
      %v3592 = vunpack.c.l.b16 %v3553
      %v3593 = vunpack.c.l.b16 %v3554
      %v3594 = vunpack.c.l.b16 %v3555
      %v3595 = vunpack.c.l.b16 %v3556
      %v3596 = vunpack.c.l.b16 %v3557
      %v3597 = vunpack.c.l.b16 %v3558
      %v3598 = vpack.c.b16 %v3583, %v3582
      %v3599 = vpack.c.b16 %v3585, %v3584
      %v3600 = vpack.c.b16 %v3587, %v3586
      %v3601 = vpack.c.b16 %v3589, %v3588
      %v3602 = vpack.c.b16 %v3591, %v3590
      %v3603 = vpack.c.b16 %v3593, %v3592
      %v3604 = vpack.c.b16 %v3595, %v3594
      %v3605 = vpack.c.b16 %v3597, %v3596
      %3614 = vmatprep.subr.bf16.mxu0 0
      %3615 = vmatpush1.bf16.msra.mxu0 %v3598
      %3616 = vmatprep.subr.bf16.mxu0 0
      %3617 = vmatpush1.bf16.msra.mxu0 %v3599
      %3618 = vmatprep.subr.bf16.mxu0 0
      %3619 = vmatpush1.bf16.msra.mxu0 %v3600
      %3620 = vmatprep.subr.bf16.mxu0 0
      %3621 = vmatpush1.bf16.msra.mxu0 %v3601
      %3622 = vmatprep.subr.bf16.mxu0 0
      %3623 = vmatpush1.bf16.msra.mxu0 %v3602
      %3624 = vmatprep.subr.bf16.mxu0 0
      %3625 = vmatpush1.bf16.msra.mxu0 %v3603
      %3626 = vmatprep.subr.bf16.mxu0 0
      %3627 = vmatpush1.bf16.msra.mxu0 %v3604
      %3628 = vmatprep.subr.bf16.mxu0 0
      %3629 = vmatpush1.bf16.msra.mxu0 %v3605
      %3630 = vmatprep.subr.bf16.mxu0 0
      %3631 = vmatpush1.bf16.msra.mxu0 0
      %3632 = vmatprep.subr.bf16.mxu0 0
      %3633 = vmatpush1.bf16.msra.mxu0 0
      %3634 = vmatprep.subr.bf16.mxu0 0
      %3635 = vmatpush1.bf16.msra.mxu0 0
      %3636 = vmatprep.subr.bf16.mxu0 0
      %3637 = vmatpush1.bf16.msra.mxu0 0
      %3638 = vmatprep.subr.bf16.mxu0 0
      %3639 = vmatpush1.bf16.msra.mxu0 0
      %3640 = vmatprep.subr.bf16.mxu0 0
      %3641 = vmatpush1.bf16.msra.mxu0 0
      %3642 = vmatprep.subr.bf16.mxu0 0
      %3643 = vmatpush1.bf16.msra.mxu0 0
      %3644 = vmatprep.subr.bf16.mxu0 0
      %3645 = vmatpush1.bf16.msra.mxu0 0
      %3646 = vmatprep.mubr.bf16.mxu0 0
      %3647 = vmatmul.mubr.bf16.gmra.mrb[0].mxu0 %v3533
      %v3648 = vpop.f32.mrb[0].mxu0
      %v3649 = vadd.f32 %v3564, %v3648
      %v3650 = vpop.f32.mrb[0].mxu0
      %v3651 = vpop.f32.mrb[0].mxu0
      %v3652 = vadd.f32 %v3564, %v3651
      %v3653 = vpop.f32.mrb[0].mxu0
      %3654 = vmatprep.mubr.bf16.mxu0 0
      %3655 = vmatmul.mubr.bf16.gmra.mrb[0].mxu0 %v3534
      %v3656 = vpop.f32.mrb[0].mxu0
      %v3657 = vadd.f32 %v3564, %v3656
      %v3658 = vpop.f32.mrb[0].mxu0
      %v3659 = vpop.f32.mrb[0].mxu0
      %v3660 = vadd.f32 %v3564, %v3659
      %v3661 = vpop.f32.mrb[0].mxu0
      %3662 = vmatprep.mubr.bf16.mxu0 0
      %3663 = vmatmul.mubr.bf16.gmra.mrb[0].mxu0 %v3535
      %v3664 = vpop.f32.mrb[0].mxu0
      %v3665 = vadd.f32 %v3564, %v3664
      %v3666 = vpop.f32.mrb[0].mxu0
      %v3667 = vpop.f32.mrb[0].mxu0
      %v3668 = vadd.f32 %v3564, %v3667
      %v3669 = vpop.f32.mrb[0].mxu0
      %3670 = vmatprep.mubr.bf16.mxu0 0
      %3671 = vmatmul.mubr.bf16.gmra.mrb[0].mxu0 %v3536
      %v3672 = vpop.f32.mrb[0].mxu0
      %v3673 = vadd.f32 %v3564, %v3672
      %v3674 = vpop.f32.mrb[0].mxu0
      %v3675 = vpop.f32.mrb[0].mxu0
      %v3676 = vadd.f32 %v3564, %v3675
      %v3677 = vpop.f32.mrb[0].mxu0
      %3678 = vmatprep.mubr.bf16.mxu0 0
      %3679 = vmatmul.mubr.bf16.gmra.mrb[0].mxu0 %v3537
      %v3680 = vpop.f32.mrb[0].mxu0
      %v3681 = vadd.f32 %v3564, %v3680
      %v3682 = vpop.f32.mrb[0].mxu0
      %v3683 = vpop.f32.mrb[0].mxu0
      %v3684 = vadd.f32 %v3564, %v3683
      %v3685 = vpop.f32.mrb[0].mxu0
      %3686 = vmatprep.mubr.bf16.mxu0 0
      %3687 = vmatmul.mubr.bf16.gmra.mrb[0].mxu0 %v3538
      %v3688 = vpop.f32.mrb[0].mxu0
      %v3689 = vadd.f32 %v3564, %v3688
      %v3690 = vpop.f32.mrb[0].mxu0
      %v3691 = vpop.f32.mrb[0].mxu0
      %v3692 = vadd.f32 %v3564, %v3691
      %v3693 = vpop.f32.mrb[0].mxu0
      %3694 = vmatprep.mubr.bf16.mxu0 0
      %3695 = vmatmul.mubr.bf16.gmra.mrb[0].mxu0 %v3539
      %v3696 = vpop.f32.mrb[0].mxu0
      %v3697 = vadd.f32 %v3564, %v3696
      %v3698 = vpop.f32.mrb[0].mxu0
      %v3699 = vpop.f32.mrb[0].mxu0
      %v3700 = vadd.f32 %v3564, %v3699
      %v3701 = vpop.f32.mrb[0].mxu0
      %3702 = vmatprep.mubr.bf16.mxu0 0
      %3703 = vmatmul.mubr.bf16.gmra.mrb[0].mxu0 %v3540
      %v3704 = vpop.f32.mrb[0].mxu0
      %v3705 = vadd.f32 %v3564, %v3704
      %v3706 = vpop.f32.mrb[0].mxu0
      %v3707 = vpop.f32.mrb[0].mxu0
      %v3708 = vadd.f32 %v3564, %v3707
      %v3709 = vpop.f32.mrb[0].mxu0
      %3710 = vmatprep.mubr.bf16.mxu0 0
      %3711 = vmatmul.mubr.bf16.gmra.mrb[0].mxu0 %v3541
      %v3712 = vpop.f32.mrb[0].mxu0
      %v3713 = vadd.f32 %v3564, %v3712
      %v3714 = vpop.f32.mrb[0].mxu0
      %v3715 = vpop.f32.mrb[0].mxu0
      %v3716 = vadd.f32 %v3564, %v3715
      %v3717 = vpop.f32.mrb[0].mxu0
      %3718 = vmatprep.mubr.bf16.mxu0 0
      %3719 = vmatmul.mubr.bf16.gmra.mrb[0].mxu0 %v3542
      %v3720 = vpop.f32.mrb[0].mxu0
      %v3721 = vadd.f32 %v3564, %v3720
      %v3722 = vpop.f32.mrb[0].mxu0
      %v3723 = vpop.f32.mrb[0].mxu0
      %v3724 = vadd.f32 %v3564, %v3723
      %v3725 = vpop.f32.mrb[0].mxu0
      %3726 = vdwg.mxu0
      %3727 = vst [vmem:[%s226] sm:$0xff] %v3649
      %3728 = vst [vmem:[%s226 + $0x8] sm:$0xff] %v3652
      %3729 = vst [vmem:[%s226 + $0x10] sm:$0xff] %v3657
      %3730 = vst [vmem:[%s226 + $0x18] sm:$0xff] %v3660
      %3731 = vst [vmem:[%s226 + $0x20] sm:$0xff] %v3665
      %3732 = vst [vmem:[%s226 + $0x28] sm:$0xff] %v3668
      %3733 = vst [vmem:[%s226 + $0x30] sm:$0xff] %v3673
      %3734 = vst [vmem:[%s226 + $0x38] sm:$0xff] %v3676
      %3735 = vst [vmem:[%s226 + $0x40] sm:$0xff] %v3681
      %3736 = vst [vmem:[%s226 + $0x48] sm:$0xff] %v3684
      %3737 = vst [vmem:[%s226 + $0x50] sm:$0xff] %v3689
      %3738 = vst [vmem:[%s226 + $0x58] sm:$0xff] %v3692
      %3739 = vst [vmem:[%s226 + $0x60] sm:$0xff] %v3697
      %3740 = vst [vmem:[%s226 + $0x68] sm:$0xff] %v3700
      %3741 = vst [vmem:[%s226 + $0x70] sm:$0xff] %v3705
      %3742 = vst [vmem:[%s226 + $0x78] sm:$0xff] %v3708
      %3743 = vst [vmem:[%s226 + $0x80] sm:$0xff] %v3713
      %3744 = vst [vmem:[%s226 + $0x88] sm:$0xff] %v3716
      %3745 = vst [vmem:[%s226 + $0x90] sm:$0xff] %v3721
      %3746 = vst [vmem:[%s226 + $0x98] sm:$0xff] %v3724
      %s3747 = smul.u32 20, %s16
      %p3748 = scmp.lt.s32.totalorder %s3747, 39
      %s3749 = scalar_select %p3748, %s3747, 39
      %s3750 = smul.addr %s3749, 8
      %s3751 = scalar_lea.vmem %s5, %s3750
      // Predicated region
      $region41: #{multi_head_attention.1} parent=39 // pred_check
        %p3752 = pneg %p144
      $region42: #{multi_head_attention.1} parent=39 // pred_check_branch
        %3754 = sbr.rel (%p3752) target = $region44
      $region43: #{multi_head_attention.1} parent=39 // pred_region
        %s3755 = smul.u32 20, %s16
      $region44: #{multi_head_attention.1} parent=39 // pred_fallthru
        _
    $region40: #{multi_head_attention.1} parent=5 // pred_fallthru
      _
    %p3756 = scmp.le.s32.totalorder 2, %s11
    // Predicated region
    $region45: #{multi_head_attention.1} parent=5 // pred_check
      %p3757 = pneg %p3756
    $region46: #{multi_head_attention.1} parent=5 // pred_check_branch
      %3759 = sbr.rel (%p3757) target = $region48
    $region47: #{multi_head_attention.1} parent=5 // pred_region
      %s3760 = ssub.s32 %s11, 2
      // Predicated region
      $region49: #{multi_head_attention.1} parent=47 // pred_check
        %p3761 = pneg %p150
      $region50: #{multi_head_attention.1} parent=47 // pred_check_branch
        %3763 = sbr.rel (%p3761) target = $region52
      $region51: #{multi_head_attention.1} parent=47 // pred_region
        %s3764 = smul.u32 20, %s17
        %p3765 = scmp.lt.s32.totalorder %s3764, 39
        %s3766 = scalar_select %p3765, %s3764, 39
        %s3767 = smul.addr %s3766, 8
        %s3768 = scalar_lea.vmem %s5, %s3767
      $region52: #{multi_head_attention.1} parent=47 // pred_fallthru
        _
    $region48: #{multi_head_attention.1} parent=5 // pred_fallthru
      _
  $region6: #{multi_head_attention.1} parent=0 // loop_footer
    %s15 = sadd.s32 1, %s11
  $region7: #{multi_head_attention.1} parent=0 // loop_footer_branch
    %10 = sbr.rel target = $region3
  $region8: #{multi_head_attention.1} parent=0 // loop_exit
    _

</llo_original>
